<compile_context>
chip_gen: v7x
topology: tpu7x:2x2x1
jax: 0.10.0
libtpu: 0.0.40
codegen_flags: <defaults>
</compile_context>

<pallas_src>
import math

import jax
import jax.numpy as jnp
import numpy as np
from jax.experimental import pallas as pl
from jax.experimental.pallas import tpu as pltpu

NEG_SLOPE = 0.01   # nn.LeakyReLU() default negative_slope
LANE = 128


def _round_up(v, m):
    return (v + m - 1) // m * m


def _pad_to(x, shape):
    return jnp.pad(x, [(0, s - d) for d, s in zip(x.shape, shape)])


def _leaky_relu(x):
    return jnp.where(x >= 0, x, NEG_SLOPE * x)


_VMEM_LIMIT_CACHE = None


def _vmem_limit():
    """Chip-aware VMEM cap: ~cap-16MiB, clamped to [32 MiB, 100 MiB]."""
    global _VMEM_LIMIT_CACHE
    if _VMEM_LIMIT_CACHE is None:
        try:
            cap = int(pltpu.get_tpu_info().vmem_capacity_bytes)
        except Exception:                       # unknown chip / interpret mode
            cap = 64 * 1024 * 1024
        _VMEM_LIMIT_CACHE = int(min(max(cap - 16 * 1024 * 1024, 32 * 1024 * 1024),
                                    100 * 1024 * 1024))
    return _VMEM_LIMIT_CACHE


def _block_spec(shape, index_map, *, single_buffer=False):
    """BlockSpec; truly grid-invariant operands get a single buffer."""
    if single_buffer and hasattr(pl, "Buffered"):
        try:
            return pl.BlockSpec(shape, index_map, pipeline_mode=pl.Buffered(1))
        except TypeError:                       # older jax without pipeline_mode
            pass
    return pl.BlockSpec(shape, index_map)


# ----------------------------------------------------------------------------
# Conv2d(3x3, stride=2, pad=1) + LeakyReLU kernel (head layers, spatial >= 8)
# ----------------------------------------------------------------------------
def _conv_s2_lrelu_kernel(xr_ref, w1_ref, w2_ref, b_ref, o_ref):
    """One (batch tile, Cout tile) of a stride-2 3x3 conv + LeakyReLU.

    xr_ref : (bt, Hp/2, 2, Wp/2, 2*Cin)  padded input with row/col parity folded by a
             pure reshape: xr[n, a, p, b, q*Cin + c] == x_pad[n, 2a+p, 2b+q, c]
    w1_ref : (3, 2*Cin, tn)  taps (ky, kx in {0,1})  -> one K=2*Cin matmul per ky
    w2_ref : (3,   Cin, tn)  taps (ky, kx == 2)      -> one K=  Cin matmul per ky
    b_ref  : (1, tn) f32
    o_ref  : (bt*Hout*Wout, tn)  lane-dense output, rows ordered (n, i, j)
    """
    bt, hp2, _, wp2, c2 = xr_ref.shape
    h_out, w_out, c_in = hp2 - 1, wp2 - 1, c2 // 2
    m = bt * h_out * w_out

    # Local f32 accumulation (no VMEM scratch, no zero-fill, single store at the end).
    # TODO(synk): if the Mosaic dump shows materialized copies from these reshapes,
    # switch to a 4-D accumulate + single flatten at the store.
    acc = None
    for ky in range(3):
        a0, p = ky // 2, ky % 2
        # taps (ky,0) and (ky,1) are one contiguous lane slab -> single K=2*Cin matmul
        s1 = xr_ref[:, a0:a0 + h_out, p, 0:w_out, :].reshape(m, 2 * c_in)
        d = jnp.dot(s1, w1_ref[ky], preferred_element_type=jnp.float32)
        acc = d if acc is None else acc + d
        # tap (ky,2): next column block, first channel half (lane prefix -> no shuffle)
        s2 = xr_ref[:, a0:a0 + h_out, p, 1:1 + w_out, 0:c_in].reshape(m, c_in)
        acc = acc + jnp.dot(s2, w2_ref[ky], preferred_element_type=jnp.float32)

    o_ref[...] = _leaky_relu(acc + b_ref[0]).astype(o_ref.dtype)


def _pick_batch_tile(n, hw, target_rows=256):
    # Fold the whole (small) batch into one matmul-M block; tile only large batches.
    if n * hw <= 2048:
        return n
    want = max(1, -(-target_rows // hw))
    for bt in range(min(want, n), 0, -1):
        if n % bt == 0 and (bt * hw) % 8 == 0:
            return bt
    return n   # hw not a multiple of 8 only if spatial < 8; full-dim block stays legal


def _pick_cout_tile(cp, target=256):
    # cp is a multiple of 128; prefer the MXU-native N width, fall back to 128.
    for tn in (target, 128):
        if cp >= tn and cp % tn == 0:
            return tn
    return cp


def conv_stride2_lrelu(x_nhwc, w1, w2, b):
    """(N,H,W,Cin) -> (N,H/2,W/2,Cout) with Conv2d(3, stride=2, pad=1) + LeakyReLU."""
    n, h, w, c_in = x_nhwc.shape
    cp = w1.shape[-1]
    ho, wo = h // 2, w // 2
    hp, wp = h + 2, w + 2                       # even for even H, W

    # TODO(synk): the padded activation round-trips HBM once per layer; predicate the
    # border taps in-kernel (or write pre-padded outputs) to remove this extra traffic.
    xp = jnp.pad(x_nhwc, ((0, 0), (1, 1), (1, 1), (0, 0)))
    # copy-free reshape: fold the stride-2 row/col parity next to the channel dim
    xr = xp.reshape(n, hp // 2, 2, wp // 2, 2 * c_in)

    bt = _pick_batch_tile(n, ho * wo)
    m = bt * ho * wo
    tn = _pick_cout_tile(cp)
    grid_b, grid_n = n // bt, cp // tn

    out = pl.pallas_call(
        _conv_s2_lrelu_kernel,
        out_shape=jax.ShapeDtypeStruct((n * ho * wo, cp), x_nhwc.dtype),
        grid=(grid_b, grid_n),                  # Cout innermost: activation stays resident
        in_specs=[
            _block_spec((bt, hp // 2, 2, wp // 2, 2 * c_in),
                        lambda g, j: (g, 0, 0, 0, 0),
                        single_buffer=(grid_b == 1)),
            _block_spec((3, 2 * c_in, tn), lambda g, j: (0, 0, j),
                        single_buffer=(grid_n == 1)),
            _block_spec((3, c_in, tn), lambda g, j: (0, 0, j),
                        single_buffer=(grid_n == 1)),
            _block_spec((1, tn), lambda g, j: (0, j),
                        single_buffer=(grid_n == 1)),
        ],
        out_specs=pl.BlockSpec((m, tn), lambda g, j: (g, j)),
        compiler_params=pltpu.CompilerParams(
            dimension_semantics=("parallel", "parallel"),
            vmem_limit_bytes=_vmem_limit()),
    )(xr, w1, w2, b)
    return out.reshape(n, ho, wo, cp)


# ----------------------------------------------------------------------------
# Fused tail: conv(4x4->2x2) + conv(2x2->1x1) + EqualLinear in one pallas_call
# ----------------------------------------------------------------------------
def _tail_kernel(x_ref, w3_ref, b3_ref, w4_ref, b4_ref, wl_ref, bl_ref, o_ref):
    """x_ref : (6, 6, N, C)  zero-padded 4x4 activation, spatial-major layout
    w3_ref: (9*C, C)  3x3 conv flattened; all 4 output pixels folded into one M=4N dot
    w4_ref: (4*C, C)  last conv: only the 4 interior taps see non-padding data
    wl_ref: (C, C)    (W * 1/sqrt(in_dim) * lr_mul).T, zero padded
    o_ref : (N, C)
    """
    n, c = x_ref.shape[2], x_ref.shape[3]

    # conv 4x4 -> 2x2 : one (4N, 9C) x (9C, C) matmul (pixel-major row blocks)
    patches = []
    for i in range(2):
        for j in range(2):
            patches.append(jnp.concatenate(
                [x_ref[2 * i + ky, 2 * j + kx]
                 for ky in range(3) for kx in range(3)],
                axis=-1))                                       # (N, 9*C), lane aligned
    big = jnp.concatenate(patches, axis=0)                      # (4N, 9*C)
    z3 = jnp.dot(big, w3_ref[...], preferred_element_type=jnp.float32) + b3_ref[0]
    y3 = _leaky_relu(z3)                                        # (4N, C) f32

    # conv 2x2 -> 1x1 : single matmul, K = 4*C (taps ordered (0,0),(0,1),(1,0),(1,1))
    patch4 = jnp.concatenate([y3[k * n:(k + 1) * n] for k in range(4)],
                             axis=-1).astype(w4_ref.dtype)      # (N, 4*C)
    z4 = jnp.dot(patch4, w4_ref[...], preferred_element_type=jnp.float32) + b4_ref[0]
    y4 = _leaky_relu(z4)

    # EqualLinear (activation=None): y @ (W*scale).T + bias*lr_mul
    out = jnp.dot(y4.astype(wl_ref.dtype), wl_ref[...],
                  preferred_element_type=jnp.float32) + bl_ref[0]
    o_ref[...] = out.astype(o_ref.dtype)


def fused_tail(x_nhwc, tail):
    """(N,4,4,C) -> (N,C): last two convs + EqualLinear in a single kernel."""
    n, h, w, c = x_nhwc.shape
    assert h == 4 and w == 4
    xp = jnp.pad(x_nhwc, ((0, 0), (1, 1), (1, 1), (0, 0)))     # (N,6,6,C)
    xt = jnp.transpose(xp, (1, 2, 0, 3))                       # (6,6,N,C): layout plumbing
    w3, b3, w4, b4, wl, bl = tail

    def full(*shape):
        # grid=(1,): every operand is grid-invariant -> single buffer halves tail VMEM
        return _block_spec(shape, lambda *_: (0,) * len(shape), single_buffer=True)

    return pl.pallas_call(
        _tail_kernel,
        out_shape=jax.ShapeDtypeStruct((n, c), jnp.float32),
        grid=(1,),
        in_specs=[
            full(6, 6, n, c),
            full(9 * c, c), full(1, c),
            full(4 * c, c), full(1, c),
            full(c, c), full(1, c),
        ],
        out_specs=pl.BlockSpec((n, c), lambda *_: (0, 0)),
        compiler_params=pltpu.CompilerParams(
            dimension_semantics=("arbitrary",),
            vmem_limit_bytes=_vmem_limit()),
    )(xt, w3, b3, w4, b4, wl, bl)


# ----------------------------------------------------------------------------
# One-time parameter preprocessing (hoisted out of the forward path)
# ----------------------------------------------------------------------------
def prepare_params(params, in_c, out_c, lr_mul=1.0, compute_dtype=jnp.bfloat16):
    convs = params["convs"]
    num_pools = len(convs)
    assert num_pools >= 3, "fused tail expects spatial >= 8"
    # TODO(synk): add a tail-only variant for spatial in {2, 4} (num_pools < 3).

    cp = _round_up(out_c, LANE)

    head = []
    for idx, (w, b) in enumerate(convs[:-2]):
        cin_eff = in_c if idx == 0 else cp
        assert w.shape[2] == (in_c if idx == 0 else out_c)
        # NOTE: layer-0 in_c is used as-is; pad it to a lane multiple upstream if it is
        # neither tiny nor already a multiple of 128 (no-op for the real restyle config).
        wpad = _pad_to(w, (3, 3, cin_eff, cp))
        w1 = wpad[:, 0:2].reshape(3, 2 * cin_eff, cp).astype(compute_dtype)
        w2 = wpad[:, 2].astype(compute_dtype)
        bb = _pad_to(b, (cp,)).reshape(1, cp).astype(jnp.float32)
        head.append((w1, w2, bb))

    (w3, b3), (w4, b4) = convs[-2], convs[-1]
    w3m = _pad_to(w3, (3, 3, cp, cp)).reshape(9 * cp, cp).astype(compute_dtype)
    b3m = _pad_to(b3, (cp,)).reshape(1, cp).astype(jnp.float32)
    w4m = _pad_to(w4, (3, 3, cp, cp))[1:3, 1:3].reshape(4 * cp, cp).astype(compute_dtype)
    b4m = _pad_to(b4, (cp,)).reshape(1, cp).astype(jnp.float32)

    wl, bl = params["lin_w"], params["lin_b"]
    scale = (1.0 / math.sqrt(wl.shape[1])) * lr_mul
    wlm = _pad_to((wl * scale).T, (cp, cp)).astype(compute_dtype)
    blm = _pad_to(bl * lr_mul, (cp,)).reshape(1, cp).astype(jnp.float32)

    return {"dtype": compute_dtype, "out_c": out_c,
            "head": head, "tail": (w3m, b3m, w4m, b4m, wlm, blm)}


# ----------------------------------------------------------------------------
# GradualStyleBlock forward
# ----------------------------------------------------------------------------
def gradual_style_block(x_nchw, prep):
    x = jnp.transpose(x_nchw, (0, 2, 3, 1)).astype(prep["dtype"])   # NCHW -> NHWC
    for (w1, w2, b) in prep["head"]:
        x = conv_stride2_lrelu(x, w1, w2, b)
    out = fused_tail(x, prep["tail"])                               # (N, cp) f32
    return out[:, :prep["out_c"]]


def init_params(key, in_c, out_c, spatial):
    num_pools = int(np.log2(spatial))
    convs = []
    c_prev = in_c
    for _ in range(num_pools):
        key, k1, k2 = jax.random.split(key, 3)
        w = jax.random.normal(k1, (3, 3, c_prev, out_c), jnp.float32) * 0.1
        b = jax.random.normal(k2, (out_c,), jnp.float32) * 0.1
        convs.append((w, b))
        c_prev = out_c
    key, k3 = jax.random.split(key)
    lin_w = jax.random.normal(k3, (out_c, out_c), jnp.float32)   # randn / lr_mul(=1)
    lin_b = jnp.zeros((out_c,), jnp.float32)                     # bias_init = 0
    return {"convs": convs, "lin_w": lin_w, "lin_b": lin_b}


# ----------------------------------------------------------------------------
# Pure-JAX reference (mirrors the PyTorch forward)
# ----------------------------------------------------------------------------
def reference(x_nchw, params, out_c):
    x = x_nchw
    for w, b in params["convs"]:
        w_oihw = jnp.transpose(w, (3, 2, 0, 1))
        x = jax.lax.conv_general_dilated(
            x, w_oihw, window_strides=(2, 2), padding=((1, 1), (1, 1)),
            dimension_numbers=("NCHW", "OIHW", "NCHW"))
        x = x + b[None, :, None, None]
        x = jnp.where(x >= 0, x, NEG_SLOPE * x)
    x = x.reshape(-1, out_c)
    scale = 1.0 / math.sqrt(params["lin_w"].shape[1])
    return x @ (params["lin_w"] * scale).T + params["lin_b"]


if __name__ == "__main__":
    batch, in_c, out_c, spatial = 2, 4, 32, 16

    key = jax.random.PRNGKey(0)
    key, kx = jax.random.split(key)
    x = jax.random.normal(kx, (batch, in_c, spatial, spatial), jnp.float32)
    params = init_params(key, in_c, out_c, spatial)

    ref = jax.block_until_ready(reference(x, params, out_c))

    # float32 path (exact check)
    prep32 = prepare_params(params, in_c, out_c, compute_dtype=jnp.float32)
    out32 = jax.block_until_ready(jax.jit(lambda xx: gradual_style_block(xx, prep32))(x))
    np.testing.assert_allclose(np.asarray(out32), np.asarray(ref), rtol=1e-4, atol=1e-4)
    assert out32.shape == (batch, out_c)

    # bf16 weights/activations (production default), f32 accumulation (loose check)
    prep16 = prepare_params(params, in_c, out_c)                 # default: bfloat16
    out16 = jax.block_until_ready(jax.jit(lambda xx: gradual_style_block(xx, prep16))(x))
    np.testing.assert_allclose(np.asarray(out16).astype(np.float32), np.asarray(ref),
                               rtol=1e-1, atol=1e-1)

    print("KERNEL_OK")
</pallas_src>

<mosaic_0001>
module attributes {stable_mosaic.version = 11 : i64} {
  func.func @_conv_s2_lrelu_kernel(%arg0: i32, %arg1: i32, %arg2: memref<2x9x2x9x8xf32, #tpu.memory_space<vmem>>, %arg3: memref<3x8x128xf32, #tpu.memory_space<vmem>>, %arg4: memref<3x4x128xf32, #tpu.memory_space<vmem>>, %arg5: memref<1x128xf32, #tpu.memory_space<vmem>>, %arg6: memref<128x128xf32, #tpu.memory_space<vmem>>) attributes {dimension_semantics = [#tpu.dimension_semantics<parallel>, #tpu.dimension_semantics<parallel>], iteration_bounds = array<i64: 1, 1>, scalar_prefetch = 0 : i64, scratch_operands = 0 : i64, tpu.core_type = #tpu.core_type<tc>, window_params = [{pipeline_mode = #tpu.pipeline_mode<synchronous>, transform_indices = @transform_0, window_bounds = array<i64: 2, 9, 2, 9, 8>}, {pipeline_mode = #tpu.pipeline_mode<synchronous>, transform_indices = @transform_1, window_bounds = array<i64: 3, 8, 128>}, {pipeline_mode = #tpu.pipeline_mode<synchronous>, transform_indices = @transform_2, window_bounds = array<i64: 3, 4, 128>}, {pipeline_mode = #tpu.pipeline_mode<synchronous>, transform_indices = @transform_3, window_bounds = array<i64: 1, 128>}, {transform_indices = @transform_4, window_bounds = array<i64: 128, 128>}]} {
    %c0 = arith.constant 0 : index
    %c0_0 = arith.constant 0 : index
    %c0_1 = arith.constant 0 : index
    %c0_2 = arith.constant 0 : index
    %c0_3 = arith.constant 0 : index
    %0 = vector.load %arg2[%c0, %c0_0, %c0_1, %c0_2, %c0_3] : memref<2x9x2x9x8xf32, #tpu.memory_space<vmem>>, vector<2x8x1x8x8xf32>
    %1 = vector.shape_cast %0 : vector<2x8x1x8x8xf32> to vector<2x8x8x8xf32>
    %2 = vector.shape_cast %1 : vector<2x8x8x8xf32> to vector<128x8xf32>
    %c0_4 = arith.constant 0 : index
    %c0_5 = arith.constant 0 : index
    %c0_6 = arith.constant 0 : index
    %3 = vector.load %arg3[%c0_4, %c0_5, %c0_6] : memref<3x8x128xf32, #tpu.memory_space<vmem>>, vector<1x8x128xf32>
    %4 = vector.shape_cast %3 : vector<1x8x128xf32> to vector<8x128xf32>
    %cst = arith.constant dense<0.000000e+00> : vector<128x128xf32>
    %5 = tpu.matmul %2, %4, %cst {dimension_numbers = #tpu.dot_dimension_numbers<[1], [0], [0], [1], [0, 0, 1, 1], [], []>} : vector<128x8xf32>, vector<8x128xf32>, vector<128x128xf32> -> vector<128x128xf32>
    %c0_7 = arith.constant 0 : index
    %c0_8 = arith.constant 0 : index
    %c0_9 = arith.constant 0 : index
    %c1 = arith.constant 1 : index
    %c0_10 = arith.constant 0 : index
    %6 = vector.load %arg2[%c0_7, %c0_8, %c0_9, %c1, %c0_10] : memref<2x9x2x9x8xf32, #tpu.memory_space<vmem>>, vector<2x8x1x8x4xf32>
    %7 = vector.shape_cast %6 : vector<2x8x1x8x4xf32> to vector<2x8x8x4xf32>
    %8 = vector.shape_cast %7 : vector<2x8x8x4xf32> to vector<128x4xf32>
    %c0_11 = arith.constant 0 : index
    %c0_12 = arith.constant 0 : index
    %c0_13 = arith.constant 0 : index
    %9 = vector.load %arg4[%c0_11, %c0_12, %c0_13] : memref<3x4x128xf32, #tpu.memory_space<vmem>>, vector<1x4x128xf32>
    %10 = vector.shape_cast %9 : vector<1x4x128xf32> to vector<4x128xf32>
    %cst_14 = arith.constant dense<0.000000e+00> : vector<128x128xf32>
    %11 = tpu.matmul %8, %10, %cst_14 {dimension_numbers = #tpu.dot_dimension_numbers<[1], [0], [0], [1], [0, 0, 1, 1], [], []>} : vector<128x4xf32>, vector<4x128xf32>, vector<128x128xf32> -> vector<128x128xf32>
    %12 = arith.addf %5, %11 : vector<128x128xf32>
    %c0_15 = arith.constant 0 : index
    %c0_16 = arith.constant 0 : index
    %c1_17 = arith.constant 1 : index
    %c0_18 = arith.constant 0 : index
    %c0_19 = arith.constant 0 : index
    %13 = vector.load %arg2[%c0_15, %c0_16, %c1_17, %c0_18, %c0_19] : memref<2x9x2x9x8xf32, #tpu.memory_space<vmem>>, vector<2x8x1x8x8xf32>
    %14 = vector.shape_cast %13 : vector<2x8x1x8x8xf32> to vector<2x8x8x8xf32>
    %15 = vector.shape_cast %14 : vector<2x8x8x8xf32> to vector<128x8xf32>
    %c1_20 = arith.constant 1 : index
    %c0_21 = arith.constant 0 : index
    %c0_22 = arith.constant 0 : index
    %16 = vector.load %arg3[%c1_20, %c0_21, %c0_22] : memref<3x8x128xf32, #tpu.memory_space<vmem>>, vector<1x8x128xf32>
    %17 = vector.shape_cast %16 : vector<1x8x128xf32> to vector<8x128xf32>
    %cst_23 = arith.constant dense<0.000000e+00> : vector<128x128xf32>
    %18 = tpu.matmul %15, %17, %cst_23 {dimension_numbers = #tpu.dot_dimension_numbers<[1], [0], [0], [1], [0, 0, 1, 1], [], []>} : vector<128x8xf32>, vector<8x128xf32>, vector<128x128xf32> -> vector<128x128xf32>
    %19 = arith.addf %12, %18 : vector<128x128xf32>
    %c0_24 = arith.constant 0 : index
    %c0_25 = arith.constant 0 : index
    %c1_26 = arith.constant 1 : index
    %c1_27 = arith.constant 1 : index
    %c0_28 = arith.constant 0 : index
    %20 = vector.load %arg2[%c0_24, %c0_25, %c1_26, %c1_27, %c0_28] : memref<2x9x2x9x8xf32, #tpu.memory_space<vmem>>, vector<2x8x1x8x4xf32>
    %21 = vector.shape_cast %20 : vector<2x8x1x8x4xf32> to vector<2x8x8x4xf32>
    %22 = vector.shape_cast %21 : vector<2x8x8x4xf32> to vector<128x4xf32>
    %c1_29 = arith.constant 1 : index
    %c0_30 = arith.constant 0 : index
    %c0_31 = arith.constant 0 : index
    %23 = vector.load %arg4[%c1_29, %c0_30, %c0_31] : memref<3x4x128xf32, #tpu.memory_space<vmem>>, vector<1x4x128xf32>
    %24 = vector.shape_cast %23 : vector<1x4x128xf32> to vector<4x128xf32>
    %cst_32 = arith.constant dense<0.000000e+00> : vector<128x128xf32>
    %25 = tpu.matmul %22, %24, %cst_32 {dimension_numbers = #tpu.dot_dimension_numbers<[1], [0], [0], [1], [0, 0, 1, 1], [], []>} : vector<128x4xf32>, vector<4x128xf32>, vector<128x128xf32> -> vector<128x128xf32>
    %26 = arith.addf %19, %25 : vector<128x128xf32>
    %c0_33 = arith.constant 0 : index
    %c1_34 = arith.constant 1 : index
    %c0_35 = arith.constant 0 : index
    %c0_36 = arith.constant 0 : index
    %c0_37 = arith.constant 0 : index
    %27 = vector.load %arg2[%c0_33, %c1_34, %c0_35, %c0_36, %c0_37] : memref<2x9x2x9x8xf32, #tpu.memory_space<vmem>>, vector<2x8x1x8x8xf32>
    %28 = vector.shape_cast %27 : vector<2x8x1x8x8xf32> to vector<2x8x8x8xf32>
    %29 = vector.shape_cast %28 : vector<2x8x8x8xf32> to vector<128x8xf32>
    %c2 = arith.constant 2 : index
    %c0_38 = arith.constant 0 : index
    %c0_39 = arith.constant 0 : index
    %30 = vector.load %arg3[%c2, %c0_38, %c0_39] : memref<3x8x128xf32, #tpu.memory_space<vmem>>, vector<1x8x128xf32>
    %31 = vector.shape_cast %30 : vector<1x8x128xf32> to vector<8x128xf32>
    %cst_40 = arith.constant dense<0.000000e+00> : vector<128x128xf32>
    %32 = tpu.matmul %29, %31, %cst_40 {dimension_numbers = #tpu.dot_dimension_numbers<[1], [0], [0], [1], [0, 0, 1, 1], [], []>} : vector<128x8xf32>, vector<8x128xf32>, vector<128x128xf32> -> vector<128x128xf32>
    %33 = arith.addf %26, %32 : vector<128x128xf32>
    %c0_41 = arith.constant 0 : index
    %c1_42 = arith.constant 1 : index
    %c0_43 = arith.constant 0 : index
    %c1_44 = arith.constant 1 : index
    %c0_45 = arith.constant 0 : index
    %34 = vector.load %arg2[%c0_41, %c1_42, %c0_43, %c1_44, %c0_45] : memref<2x9x2x9x8xf32, #tpu.memory_space<vmem>>, vector<2x8x1x8x4xf32>
    %35 = vector.shape_cast %34 : vector<2x8x1x8x4xf32> to vector<2x8x8x4xf32>
    %36 = vector.shape_cast %35 : vector<2x8x8x4xf32> to vector<128x4xf32>
    %c2_46 = arith.constant 2 : index
    %c0_47 = arith.constant 0 : index
    %c0_48 = arith.constant 0 : index
    %37 = vector.load %arg4[%c2_46, %c0_47, %c0_48] : memref<3x4x128xf32, #tpu.memory_space<vmem>>, vector<1x4x128xf32>
    %38 = vector.shape_cast %37 : vector<1x4x128xf32> to vector<4x128xf32>
    %cst_49 = arith.constant dense<0.000000e+00> : vector<128x128xf32>
    %39 = tpu.matmul %36, %38, %cst_49 {dimension_numbers = #tpu.dot_dimension_numbers<[1], [0], [0], [1], [0, 0, 1, 1], [], []>} : vector<128x4xf32>, vector<4x128xf32>, vector<128x128xf32> -> vector<128x128xf32>
    %40 = arith.addf %33, %39 : vector<128x128xf32>
    %c0_50 = arith.constant 0 : index
    %c0_51 = arith.constant 0 : index
    %41 = vector.load %arg5[%c0_50, %c0_51] : memref<1x128xf32, #tpu.memory_space<vmem>>, vector<1x128xf32>
    %42 = vector.shape_cast %41 : vector<1x128xf32> to vector<128xf32>
    %43 = vector.shape_cast %42 : vector<128xf32> to vector<1x128xf32>
    %44 = vector.broadcast %43 : vector<1x128xf32> to vector<128x128xf32>
    %45 = arith.addf %40, %44 : vector<128x128xf32>
    %cst_52 = arith.constant 0.000000e+00 : f32
    %46 = vector.broadcast %cst_52 : f32 to vector<128x128xf32>
    %47 = arith.cmpf oge, %45, %46 : vector<128x128xf32>
    %cst_53 = arith.constant 0.00999999977 : f32
    %48 = vector.broadcast %cst_53 : f32 to vector<128x128xf32>
    %49 = arith.mulf %48, %45 : vector<128x128xf32>
    %50 = arith.select %47, %45, %49 : vector<128x128xi1>, vector<128x128xf32>
    %c0_54 = arith.constant 0 : index
    %c0_55 = arith.constant 0 : index
    %51 = vector.load %arg6[%c0_54, %c0_55] : memref<128x128xf32, #tpu.memory_space<vmem>>, vector<128x128xf32>
    tpu.vector_store %arg6[%c0_54, %c0_55], %50 {strides = array<i32>} : memref<128x128xf32, #tpu.memory_space<vmem>>, vector<128x128xf32>,
    return
  }
  func.func @transform_0(%arg0: i32, %arg1: i32) -> (i32, i32, i32, i32, i32) {
    %c0_i32 = arith.constant 0 : i32
    %c0_i32_0 = arith.constant 0 : i32
    %c0_i32_1 = arith.constant 0 : i32
    %c0_i32_2 = arith.constant 0 : i32
    %c0_i32_3 = arith.constant 0 : i32
    return %arg0, %c0_i32, %c0_i32_0, %c0_i32_1, %c0_i32_2 : i32, i32, i32, i32, i32
  }
  func.func @transform_1(%arg0: i32, %arg1: i32) -> (i32, i32, i32) {
    %c0_i32 = arith.constant 0 : i32
    %c0_i32_0 = arith.constant 0 : i32
    %c0_i32_1 = arith.constant 0 : i32
    return %c0_i32, %c0_i32_0, %arg1 : i32, i32, i32
  }
  func.func @transform_2(%arg0: i32, %arg1: i32) -> (i32, i32, i32) {
    %c0_i32 = arith.constant 0 : i32
    %c0_i32_0 = arith.constant 0 : i32
    %c0_i32_1 = arith.constant 0 : i32
    return %c0_i32, %c0_i32_0, %arg1 : i32, i32, i32
  }
  func.func @transform_3(%arg0: i32, %arg1: i32) -> (i32, i32) {
    %c0_i32 = arith.constant 0 : i32
    %c0_i32_0 = arith.constant 0 : i32
    return %c0_i32, %arg1 : i32, i32
  }
  func.func @transform_4(%arg0: i32, %arg1: i32) -> (i32, i32) {
    %c0_i32 = arith.constant 0 : i32
    return %arg0, %arg1 : i32, i32
  }
}

module attributes {stable_mosaic.version = 11 : i64} {
  func.func @_conv_s2_lrelu_kernel(%arg0: i32, %arg1: i32, %arg2: memref<2x5x2x5x256xf32, #tpu.memory_space<vmem>>, %arg3: memref<3x256x128xf32, #tpu.memory_space<vmem>>, %arg4: memref<3x128x128xf32, #tpu.memory_space<vmem>>, %arg5: memref<1x128xf32, #tpu.memory_space<vmem>>, %arg6: memref<32x128xf32, #tpu.memory_space<vmem>>) attributes {dimension_semantics = [#tpu.dimension_semantics<parallel>, #tpu.dimension_semantics<parallel>], iteration_bounds = array<i64: 1, 1>, scalar_prefetch = 0 : i64, scratch_operands = 0 : i64, tpu.core_type = #tpu.core_type<tc>, window_params = [{pipeline_mode = #tpu.pipeline_mode<synchronous>, transform_indices = @transform_0, window_bounds = array<i64: 2, 5, 2, 5, 256>}, {pipeline_mode = #tpu.pipeline_mode<synchronous>, transform_indices = @transform_1, window_bounds = array<i64: 3, 256, 128>}, {pipeline_mode = #tpu.pipeline_mode<synchronous>, transform_indices = @transform_2, window_bounds = array<i64: 3, 128, 128>}, {pipeline_mode = #tpu.pipeline_mode<synchronous>, transform_indices = @transform_3, window_bounds = array<i64: 1, 128>}, {transform_indices = @transform_4, window_bounds = array<i64: 32, 128>}]} {
    %c0 = arith.constant 0 : index
    %c0_0 = arith.constant 0 : index
    %c0_1 = arith.constant 0 : index
    %c0_2 = arith.constant 0 : index
    %c0_3 = arith.constant 0 : index
    %0 = vector.load %arg2[%c0, %c0_0, %c0_1, %c0_2, %c0_3] : memref<2x5x2x5x256xf32, #tpu.memory_space<vmem>>, vector<2x4x1x4x256xf32>
    %1 = vector.shape_cast %0 : vector<2x4x1x4x256xf32> to vector<2x4x4x256xf32>
    %2 = vector.shape_cast %1 : vector<2x4x4x256xf32> to vector<32x256xf32>
    %c0_4 = arith.constant 0 : index
    %c0_5 = arith.constant 0 : index
    %c0_6 = arith.constant 0 : index
    %3 = vector.load %arg3[%c0_4, %c0_5, %c0_6] : memref<3x256x128xf32, #tpu.memory_space<vmem>>, vector<1x256x128xf32>
    %4 = vector.shape_cast %3 : vector<1x256x128xf32> to vector<256x128xf32>
    %cst = arith.constant dense<0.000000e+00> : vector<32x128xf32>
    %5 = tpu.matmul %2, %4, %cst {dimension_numbers = #tpu.dot_dimension_numbers<[1], [0], [0], [1], [0, 0, 1, 1], [], []>} : vector<32x256xf32>, vector<256x128xf32>, vector<32x128xf32> -> vector<32x128xf32>
    %c0_7 = arith.constant 0 : index
    %c0_8 = arith.constant 0 : index
    %c0_9 = arith.constant 0 : index
    %c1 = arith.constant 1 : index
    %c0_10 = arith.constant 0 : index
    %6 = vector.load %arg2[%c0_7, %c0_8, %c0_9, %c1, %c0_10] : memref<2x5x2x5x256xf32, #tpu.memory_space<vmem>>, vector<2x4x1x4x128xf32>
    %7 = vector.shape_cast %6 : vector<2x4x1x4x128xf32> to vector<2x4x4x128xf32>
    %8 = vector.shape_cast %7 : vector<2x4x4x128xf32> to vector<32x128xf32>
    %c0_11 = arith.constant 0 : index
    %c0_12 = arith.constant 0 : index
    %c0_13 = arith.constant 0 : index
    %9 = vector.load %arg4[%c0_11, %c0_12, %c0_13] : memref<3x128x128xf32, #tpu.memory_space<vmem>>, vector<1x128x128xf32>
    %10 = vector.shape_cast %9 : vector<1x128x128xf32> to vector<128x128xf32>
    %cst_14 = arith.constant dense<0.000000e+00> : vector<32x128xf32>
    %11 = tpu.matmul %8, %10, %cst_14 {dimension_numbers = #tpu.dot_dimension_numbers<[1], [0], [0], [1], [0, 0, 1, 1], [], []>} : vector<32x128xf32>, vector<128x128xf32>, vector<32x128xf32> -> vector<32x128xf32>
    %12 = arith.addf %5, %11 : vector<32x128xf32>
    %c0_15 = arith.constant 0 : index
    %c0_16 = arith.constant 0 : index
    %c1_17 = arith.constant 1 : index
    %c0_18 = arith.constant 0 : index
    %c0_19 = arith.constant 0 : index
    %13 = vector.load %arg2[%c0_15, %c0_16, %c1_17, %c0_18, %c0_19] : memref<2x5x2x5x256xf32, #tpu.memory_space<vmem>>, vector<2x4x1x4x256xf32>
    %14 = vector.shape_cast %13 : vector<2x4x1x4x256xf32> to vector<2x4x4x256xf32>
    %15 = vector.shape_cast %14 : vector<2x4x4x256xf32> to vector<32x256xf32>
    %c1_20 = arith.constant 1 : index
    %c0_21 = arith.constant 0 : index
    %c0_22 = arith.constant 0 : index
    %16 = vector.load %arg3[%c1_20, %c0_21, %c0_22] : memref<3x256x128xf32, #tpu.memory_space<vmem>>, vector<1x256x128xf32>
    %17 = vector.shape_cast %16 : vector<1x256x128xf32> to vector<256x128xf32>
    %cst_23 = arith.constant dense<0.000000e+00> : vector<32x128xf32>
    %18 = tpu.matmul %15, %17, %cst_23 {dimension_numbers = #tpu.dot_dimension_numbers<[1], [0], [0], [1], [0, 0, 1, 1], [], []>} : vector<32x256xf32>, vector<256x128xf32>, vector<32x128xf32> -> vector<32x128xf32>
    %19 = arith.addf %12, %18 : vector<32x128xf32>
    %c0_24 = arith.constant 0 : index
    %c0_25 = arith.constant 0 : index
    %c1_26 = arith.constant 1 : index
    %c1_27 = arith.constant 1 : index
    %c0_28 = arith.constant 0 : index
    %20 = vector.load %arg2[%c0_24, %c0_25, %c1_26, %c1_27, %c0_28] : memref<2x5x2x5x256xf32, #tpu.memory_space<vmem>>, vector<2x4x1x4x128xf32>
    %21 = vector.shape_cast %20 : vector<2x4x1x4x128xf32> to vector<2x4x4x128xf32>
    %22 = vector.shape_cast %21 : vector<2x4x4x128xf32> to vector<32x128xf32>
    %c1_29 = arith.constant 1 : index
    %c0_30 = arith.constant 0 : index
    %c0_31 = arith.constant 0 : index
    %23 = vector.load %arg4[%c1_29, %c0_30, %c0_31] : memref<3x128x128xf32, #tpu.memory_space<vmem>>, vector<1x128x128xf32>
    %24 = vector.shape_cast %23 : vector<1x128x128xf32> to vector<128x128xf32>
    %cst_32 = arith.constant dense<0.000000e+00> : vector<32x128xf32>
    %25 = tpu.matmul %22, %24, %cst_32 {dimension_numbers = #tpu.dot_dimension_numbers<[1], [0], [0], [1], [0, 0, 1, 1], [], []>} : vector<32x128xf32>, vector<128x128xf32>, vector<32x128xf32> -> vector<32x128xf32>
    %26 = arith.addf %19, %25 : vector<32x128xf32>
    %c0_33 = arith.constant 0 : index
    %c1_34 = arith.constant 1 : index
    %c0_35 = arith.constant 0 : index
    %c0_36 = arith.constant 0 : index
    %c0_37 = arith.constant 0 : index
    %27 = vector.load %arg2[%c0_33, %c1_34, %c0_35, %c0_36, %c0_37] : memref<2x5x2x5x256xf32, #tpu.memory_space<vmem>>, vector<2x4x1x4x256xf32>
    %28 = vector.shape_cast %27 : vector<2x4x1x4x256xf32> to vector<2x4x4x256xf32>
    %29 = vector.shape_cast %28 : vector<2x4x4x256xf32> to vector<32x256xf32>
    %c2 = arith.constant 2 : index
    %c0_38 = arith.constant 0 : index
    %c0_39 = arith.constant 0 : index
    %30 = vector.load %arg3[%c2, %c0_38, %c0_39] : memref<3x256x128xf32, #tpu.memory_space<vmem>>, vector<1x256x128xf32>
    %31 = vector.shape_cast %30 : vector<1x256x128xf32> to vector<256x128xf32>
    %cst_40 = arith.constant dense<0.000000e+00> : vector<32x128xf32>
    %32 = tpu.matmul %29, %31, %cst_40 {dimension_numbers = #tpu.dot_dimension_numbers<[1], [0], [0], [1], [0, 0, 1, 1], [], []>} : vector<32x256xf32>, vector<256x128xf32>, vector<32x128xf32> -> vector<32x128xf32>
    %33 = arith.addf %26, %32 : vector<32x128xf32>
    %c0_41 = arith.constant 0 : index
    %c1_42 = arith.constant 1 : index
    %c0_43 = arith.constant 0 : index
    %c1_44 = arith.constant 1 : index
    %c0_45 = arith.constant 0 : index
    %34 = vector.load %arg2[%c0_41, %c1_42, %c0_43, %c1_44, %c0_45] : memref<2x5x2x5x256xf32, #tpu.memory_space<vmem>>, vector<2x4x1x4x128xf32>
    %35 = vector.shape_cast %34 : vector<2x4x1x4x128xf32> to vector<2x4x4x128xf32>
    %36 = vector.shape_cast %35 : vector<2x4x4x128xf32> to vector<32x128xf32>
    %c2_46 = arith.constant 2 : index
    %c0_47 = arith.constant 0 : index
    %c0_48 = arith.constant 0 : index
    %37 = vector.load %arg4[%c2_46, %c0_47, %c0_48] : memref<3x128x128xf32, #tpu.memory_space<vmem>>, vector<1x128x128xf32>
    %38 = vector.shape_cast %37 : vector<1x128x128xf32> to vector<128x128xf32>
    %cst_49 = arith.constant dense<0.000000e+00> : vector<32x128xf32>
    %39 = tpu.matmul %36, %38, %cst_49 {dimension_numbers = #tpu.dot_dimension_numbers<[1], [0], [0], [1], [0, 0, 1, 1], [], []>} : vector<32x128xf32>, vector<128x128xf32>, vector<32x128xf32> -> vector<32x128xf32>
    %40 = arith.addf %33, %39 : vector<32x128xf32>
    %c0_50 = arith.constant 0 : index
    %c0_51 = arith.constant 0 : index
    %41 = vector.load %arg5[%c0_50, %c0_51] : memref<1x128xf32, #tpu.memory_space<vmem>>, vector<1x128xf32>
    %42 = vector.shape_cast %41 : vector<1x128xf32> to vector<128xf32>
    %43 = vector.shape_cast %42 : vector<128xf32> to vector<1x128xf32>
    %44 = vector.broadcast %43 : vector<1x128xf32> to vector<32x128xf32>
    %45 = arith.addf %40, %44 : vector<32x128xf32>
    %cst_52 = arith.constant 0.000000e+00 : f32
    %46 = vector.broadcast %cst_52 : f32 to vector<32x128xf32>
    %47 = arith.cmpf oge, %45, %46 : vector<32x128xf32>
    %cst_53 = arith.constant 0.00999999977 : f32
    %48 = vector.broadcast %cst_53 : f32 to vector<32x128xf32>
    %49 = arith.mulf %48, %45 : vector<32x128xf32>
    %50 = arith.select %47, %45, %49 : vector<32x128xi1>, vector<32x128xf32>
    %c0_54 = arith.constant 0 : index
    %c0_55 = arith.constant 0 : index
    %51 = vector.load %arg6[%c0_54, %c0_55] : memref<32x128xf32, #tpu.memory_space<vmem>>, vector<32x128xf32>
    tpu.vector_store %arg6[%c0_54, %c0_55], %50 {strides = array<i32>} : memref<32x128xf32, #tpu.memory_space<vmem>>, vector<32x128xf32>,
    return
  }
  func.func @transform_0(%arg0: i32, %arg1: i32) -> (i32, i32, i32, i32, i32) {
    %c0_i32 = arith.constant 0 : i32
    %c0_i32_0 = arith.constant 0 : i32
    %c0_i32_1 = arith.constant 0 : i32
    %c0_i32_2 = arith.constant 0 : i32
    %c0_i32_3 = arith.constant 0 : i32
    return %arg0, %c0_i32, %c0_i32_0, %c0_i32_1, %c0_i32_2 : i32, i32, i32, i32, i32
  }
  func.func @transform_1(%arg0: i32, %arg1: i32) -> (i32, i32, i32) {
    %c0_i32 = arith.constant 0 : i32
    %c0_i32_0 = arith.constant 0 : i32
    %c0_i32_1 = arith.constant 0 : i32
    return %c0_i32, %c0_i32_0, %arg1 : i32, i32, i32
  }
  func.func @transform_2(%arg0: i32, %arg1: i32) -> (i32, i32, i32) {
    %c0_i32 = arith.constant 0 : i32
    %c0_i32_0 = arith.constant 0 : i32
    %c0_i32_1 = arith.constant 0 : i32
    return %c0_i32, %c0_i32_0, %arg1 : i32, i32, i32
  }
  func.func @transform_3(%arg0: i32, %arg1: i32) -> (i32, i32) {
    %c0_i32 = arith.constant 0 : i32
    %c0_i32_0 = arith.constant 0 : i32
    return %c0_i32, %arg1 : i32, i32
  }
  func.func @transform_4(%arg0: i32, %arg1: i32) -> (i32, i32) {
    %c0_i32 = arith.constant 0 : i32
    return %arg0, %arg1 : i32, i32
  }
}

module attributes {stable_mosaic.version = 11 : i64} {
  func.func @_tail_kernel(%arg0: i32, %arg1: memref<6x6x2x128xf32, #tpu.memory_space<vmem>>, %arg2: memref<1152x128xf32, #tpu.memory_space<vmem>>, %arg3: memref<1x128xf32, #tpu.memory_space<vmem>>, %arg4: memref<512x128xf32, #tpu.memory_space<vmem>>, %arg5: memref<1x128xf32, #tpu.memory_space<vmem>>, %arg6: memref<128x128xf32, #tpu.memory_space<vmem>>, %arg7: memref<1x128xf32, #tpu.memory_space<vmem>>, %arg8: memref<2x128xf32, #tpu.memory_space<vmem>>) attributes {dimension_semantics = [#tpu.dimension_semantics<arbitrary>], iteration_bounds = array<i64: 1>, scalar_prefetch = 0 : i64, scratch_operands = 0 : i64, tpu.core_type = #tpu.core_type<tc>, window_params = [{pipeline_mode = #tpu.pipeline_mode<synchronous>, transform_indices = @transform_0, window_bounds = array<i64: 6, 6, 2, 128>}, {pipeline_mode = #tpu.pipeline_mode<synchronous>, transform_indices = @transform_1, window_bounds = array<i64: 1152, 128>}, {pipeline_mode = #tpu.pipeline_mode<synchronous>, transform_indices = @transform_2, window_bounds = array<i64: 1, 128>}, {pipeline_mode = #tpu.pipeline_mode<synchronous>, transform_indices = @transform_3, window_bounds = array<i64: 512, 128>}, {pipeline_mode = #tpu.pipeline_mode<synchronous>, transform_indices = @transform_4, window_bounds = array<i64: 1, 128>}, {pipeline_mode = #tpu.pipeline_mode<synchronous>, transform_indices = @transform_5, window_bounds = array<i64: 128, 128>}, {pipeline_mode = #tpu.pipeline_mode<synchronous>, transform_indices = @transform_6, window_bounds = array<i64: 1, 128>}, {pipeline_mode = #tpu.pipeline_mode<synchronous>, transform_indices = @transform_7, window_bounds = array<i64: 2, 128>}]} {
    %c0 = arith.constant 0 : index
    %c0_0 = arith.constant 0 : index
    %c0_1 = arith.constant 0 : index
    %c0_2 = arith.constant 0 : index
    %0 = vector.load %arg1[%c0, %c0_0, %c0_1, %c0_2] : memref<6x6x2x128xf32, #tpu.memory_space<vmem>>, vector<1x1x2x128xf32>
    %1 = vector.shape_cast %0 : vector<1x1x2x128xf32> to vector<2x128xf32>
    %c0_3 = arith.constant 0 : index
    %c1 = arith.constant 1 : index
    %c0_4 = arith.constant 0 : index
    %c0_5 = arith.constant 0 : index
    %2 = vector.load %arg1[%c0_3, %c1, %c0_4, %c0_5] : memref<6x6x2x128xf32, #tpu.memory_space<vmem>>, vector<1x1x2x128xf32>
    %3 = vector.shape_cast %2 : vector<1x1x2x128xf32> to vector<2x128xf32>
    %c0_6 = arith.constant 0 : index
    %c2 = arith.constant 2 : index
    %c0_7 = arith.constant 0 : index
    %c0_8 = arith.constant 0 : index
    %4 = vector.load %arg1[%c0_6, %c2, %c0_7, %c0_8] : memref<6x6x2x128xf32, #tpu.memory_space<vmem>>, vector<1x1x2x128xf32>
    %5 = vector.shape_cast %4 : vector<1x1x2x128xf32> to vector<2x128xf32>
    %c1_9 = arith.constant 1 : index
    %c0_10 = arith.constant 0 : index
    %c0_11 = arith.constant 0 : index
    %c0_12 = arith.constant 0 : index
    %6 = vector.load %arg1[%c1_9, %c0_10, %c0_11, %c0_12] : memref<6x6x2x128xf32, #tpu.memory_space<vmem>>, vector<1x1x2x128xf32>
    %7 = vector.shape_cast %6 : vector<1x1x2x128xf32> to vector<2x128xf32>
    %c1_13 = arith.constant 1 : index
    %c1_14 = arith.constant 1 : index
    %c0_15 = arith.constant 0 : index
    %c0_16 = arith.constant 0 : index
    %8 = vector.load %arg1[%c1_13, %c1_14, %c0_15, %c0_16] : memref<6x6x2x128xf32, #tpu.memory_space<vmem>>, vector<1x1x2x128xf32>
    %9 = vector.shape_cast %8 : vector<1x1x2x128xf32> to vector<2x128xf32>
    %c1_17 = arith.constant 1 : index
    %c2_18 = arith.constant 2 : index
    %c0_19 = arith.constant 0 : index
    %c0_20 = arith.constant 0 : index
    %10 = vector.load %arg1[%c1_17, %c2_18, %c0_19, %c0_20] : memref<6x6x2x128xf32, #tpu.memory_space<vmem>>, vector<1x1x2x128xf32>
    %11 = vector.shape_cast %10 : vector<1x1x2x128xf32> to vector<2x128xf32>
    %c2_21 = arith.constant 2 : index
    %c0_22 = arith.constant 0 : index
    %c0_23 = arith.constant 0 : index
    %c0_24 = arith.constant 0 : index
    %12 = vector.load %arg1[%c2_21, %c0_22, %c0_23, %c0_24] : memref<6x6x2x128xf32, #tpu.memory_space<vmem>>, vector<1x1x2x128xf32>
    %13 = vector.shape_cast %12 : vector<1x1x2x128xf32> to vector<2x128xf32>
    %c2_25 = arith.constant 2 : index
    %c1_26 = arith.constant 1 : index
    %c0_27 = arith.constant 0 : index
    %c0_28 = arith.constant 0 : index
    %14 = vector.load %arg1[%c2_25, %c1_26, %c0_27, %c0_28] : memref<6x6x2x128xf32, #tpu.memory_space<vmem>>, vector<1x1x2x128xf32>
    %15 = vector.shape_cast %14 : vector<1x1x2x128xf32> to vector<2x128xf32>
    %c2_29 = arith.constant 2 : index
    %c2_30 = arith.constant 2 : index
    %c0_31 = arith.constant 0 : index
    %c0_32 = arith.constant 0 : index
    %16 = vector.load %arg1[%c2_29, %c2_30, %c0_31, %c0_32] : memref<6x6x2x128xf32, #tpu.memory_space<vmem>>, vector<1x1x2x128xf32>
    %17 = vector.shape_cast %16 : vector<1x1x2x128xf32> to vector<2x128xf32>
    %18 = tpu.concatenate %1, %3, %5, %7, %9, %11, %13, %15, %17 in 1 : vector<2x128xf32>, vector<2x128xf32>, vector<2x128xf32>, vector<2x128xf32>, vector<2x128xf32>, vector<2x128xf32>, vector<2x128xf32>, vector<2x128xf32>, vector<2x128xf32> -> vector<2x1152xf32>
    %c0_33 = arith.constant 0 : index
    %c2_34 = arith.constant 2 : index
    %c0_35 = arith.constant 0 : index
    %c0_36 = arith.constant 0 : index
    %19 = vector.load %arg1[%c0_33, %c2_34, %c0_35, %c0_36] : memref<6x6x2x128xf32, #tpu.memory_space<vmem>>, vector<1x1x2x128xf32>
    %20 = vector.shape_cast %19 : vector<1x1x2x128xf32> to vector<2x128xf32>
    %c0_37 = arith.constant 0 : index
    %c3 = arith.constant 3 : index
    %c0_38 = arith.constant 0 : index
    %c0_39 = arith.constant 0 : index
    %21 = vector.load %arg1[%c0_37, %c3, %c0_38, %c0_39] : memref<6x6x2x128xf32, #tpu.memory_space<vmem>>, vector<1x1x2x128xf32>
    %22 = vector.shape_cast %21 : vector<1x1x2x128xf32> to vector<2x128xf32>
    %c0_40 = arith.constant 0 : index
    %c4 = arith.constant 4 : index
    %c0_41 = arith.constant 0 : index
    %c0_42 = arith.constant 0 : index
    %23 = vector.load %arg1[%c0_40, %c4, %c0_41, %c0_42] : memref<6x6x2x128xf32, #tpu.memory_space<vmem>>, vector<1x1x2x128xf32>
    %24 = vector.shape_cast %23 : vector<1x1x2x128xf32> to vector<2x128xf32>
    %c1_43 = arith.constant 1 : index
    %c2_44 = arith.constant 2 : index
    %c0_45 = arith.constant 0 : index
    %c0_46 = arith.constant 0 : index
    %25 = vector.load %arg1[%c1_43, %c2_44, %c0_45, %c0_46] : memref<6x6x2x128xf32, #tpu.memory_space<vmem>>, vector<1x1x2x128xf32>
    %26 = vector.shape_cast %25 : vector<1x1x2x128xf32> to vector<2x128xf32>
    %c1_47 = arith.constant 1 : index
    %c3_48 = arith.constant 3 : index
    %c0_49 = arith.constant 0 : index
    %c0_50 = arith.constant 0 : index
    %27 = vector.load %arg1[%c1_47, %c3_48, %c0_49, %c0_50] : memref<6x6x2x128xf32, #tpu.memory_space<vmem>>, vector<1x1x2x128xf32>
    %28 = vector.shape_cast %27 : vector<1x1x2x128xf32> to vector<2x128xf32>
    %c1_51 = arith.constant 1 : index
    %c4_52 = arith.constant 4 : index
    %c0_53 = arith.constant 0 : index
    %c0_54 = arith.constant 0 : index
    %29 = vector.load %arg1[%c1_51, %c4_52, %c0_53, %c0_54] : memref<6x6x2x128xf32, #tpu.memory_space<vmem>>, vector<1x1x2x128xf32>
    %30 = vector.shape_cast %29 : vector<1x1x2x128xf32> to vector<2x128xf32>
    %c2_55 = arith.constant 2 : index
    %c2_56 = arith.constant 2 : index
    %c0_57 = arith.constant 0 : index
    %c0_58 = arith.constant 0 : index
    %31 = vector.load %arg1[%c2_55, %c2_56, %c0_57, %c0_58] : memref<6x6x2x128xf32, #tpu.memory_space<vmem>>, vector<1x1x2x128xf32>
    %32 = vector.shape_cast %31 : vector<1x1x2x128xf32> to vector<2x128xf32>
    %c2_59 = arith.constant 2 : index
    %c3_60 = arith.constant 3 : index
    %c0_61 = arith.constant 0 : index
    %c0_62 = arith.constant 0 : index
    %33 = vector.load %arg1[%c2_59, %c3_60, %c0_61, %c0_62] : memref<6x6x2x128xf32, #tpu.memory_space<vmem>>, vector<1x1x2x128xf32>
    %34 = vector.shape_cast %33 : vector<1x1x2x128xf32> to vector<2x128xf32>
    %c2_63 = arith.constant 2 : index
    %c4_64 = arith.constant 4 : index
    %c0_65 = arith.constant 0 : index
    %c0_66 = arith.constant 0 : index
    %35 = vector.load %arg1[%c2_63, %c4_64, %c0_65, %c0_66] : memref<6x6x2x128xf32, #tpu.memory_space<vmem>>, vector<1x1x2x128xf32>
    %36 = vector.shape_cast %35 : vector<1x1x2x128xf32> to vector<2x128xf32>
    %37 = tpu.concatenate %20, %22, %24, %26, %28, %30, %32, %34, %36 in 1 : vector<2x128xf32>, vector<2x128xf32>, vector<2x128xf32>, vector<2x128xf32>, vector<2x128xf32>, vector<2x128xf32>, vector<2x128xf32>, vector<2x128xf32>, vector<2x128xf32> -> vector<2x1152xf32>
    %c2_67 = arith.constant 2 : index
    %c0_68 = arith.constant 0 : index
    %c0_69 = arith.constant 0 : index
    %c0_70 = arith.constant 0 : index
    %38 = vector.load %arg1[%c2_67, %c0_68, %c0_69, %c0_70] : memref<6x6x2x128xf32, #tpu.memory_space<vmem>>, vector<1x1x2x128xf32>
    %39 = vector.shape_cast %38 : vector<1x1x2x128xf32> to vector<2x128xf32>
    %c2_71 = arith.constant 2 : index
    %c1_72 = arith.constant 1 : index
    %c0_73 = arith.constant 0 : index
    %c0_74 = arith.constant 0 : index
    %40 = vector.load %arg1[%c2_71, %c1_72, %c0_73, %c0_74] : memref<6x6x2x128xf32, #tpu.memory_space<vmem>>, vector<1x1x2x128xf32>
    %41 = vector.shape_cast %40 : vector<1x1x2x128xf32> to vector<2x128xf32>
    %c2_75 = arith.constant 2 : index
    %c2_76 = arith.constant 2 : index
    %c0_77 = arith.constant 0 : index
    %c0_78 = arith.constant 0 : index
    %42 = vector.load %arg1[%c2_75, %c2_76, %c0_77, %c0_78] : memref<6x6x2x128xf32, #tpu.memory_space<vmem>>, vector<1x1x2x128xf32>
    %43 = vector.shape_cast %42 : vector<1x1x2x128xf32> to vector<2x128xf32>
    %c3_79 = arith.constant 3 : index
    %c0_80 = arith.constant 0 : index
    %c0_81 = arith.constant 0 : index
    %c0_82 = arith.constant 0 : index
    %44 = vector.load %arg1[%c3_79, %c0_80, %c0_81, %c0_82] : memref<6x6x2x128xf32, #tpu.memory_space<vmem>>, vector<1x1x2x128xf32>
    %45 = vector.shape_cast %44 : vector<1x1x2x128xf32> to vector<2x128xf32>
    %c3_83 = arith.constant 3 : index
    %c1_84 = arith.constant 1 : index
    %c0_85 = arith.constant 0 : index
    %c0_86 = arith.constant 0 : index
    %46 = vector.load %arg1[%c3_83, %c1_84, %c0_85, %c0_86] : memref<6x6x2x128xf32, #tpu.memory_space<vmem>>, vector<1x1x2x128xf32>
    %47 = vector.shape_cast %46 : vector<1x1x2x128xf32> to vector<2x128xf32>
    %c3_87 = arith.constant 3 : index
    %c2_88 = arith.constant 2 : index
    %c0_89 = arith.constant 0 : index
    %c0_90 = arith.constant 0 : index
    %48 = vector.load %arg1[%c3_87, %c2_88, %c0_89, %c0_90] : memref<6x6x2x128xf32, #tpu.memory_space<vmem>>, vector<1x1x2x128xf32>
    %49 = vector.shape_cast %48 : vector<1x1x2x128xf32> to vector<2x128xf32>
    %c4_91 = arith.constant 4 : index
    %c0_92 = arith.constant 0 : index
    %c0_93 = arith.constant 0 : index
    %c0_94 = arith.constant 0 : index
    %50 = vector.load %arg1[%c4_91, %c0_92, %c0_93, %c0_94] : memref<6x6x2x128xf32, #tpu.memory_space<vmem>>, vector<1x1x2x128xf32>
    %51 = vector.shape_cast %50 : vector<1x1x2x128xf32> to vector<2x128xf32>
    %c4_95 = arith.constant 4 : index
    %c1_96 = arith.constant 1 : index
    %c0_97 = arith.constant 0 : index
    %c0_98 = arith.constant 0 : index
    %52 = vector.load %arg1[%c4_95, %c1_96, %c0_97, %c0_98] : memref<6x6x2x128xf32, #tpu.memory_space<vmem>>, vector<1x1x2x128xf32>
    %53 = vector.shape_cast %52 : vector<1x1x2x128xf32> to vector<2x128xf32>
    %c4_99 = arith.constant 4 : index
    %c2_100 = arith.constant 2 : index
    %c0_101 = arith.constant 0 : index
    %c0_102 = arith.constant 0 : index
    %54 = vector.load %arg1[%c4_99, %c2_100, %c0_101, %c0_102] : memref<6x6x2x128xf32, #tpu.memory_space<vmem>>, vector<1x1x2x128xf32>
    %55 = vector.shape_cast %54 : vector<1x1x2x128xf32> to vector<2x128xf32>
    %56 = tpu.concatenate %39, %41, %43, %45, %47, %49, %51, %53, %55 in 1 : vector<2x128xf32>, vector<2x128xf32>, vector<2x128xf32>, vector<2x128xf32>, vector<2x128xf32>, vector<2x128xf32>, vector<2x128xf32>, vector<2x128xf32>, vector<2x128xf32> -> vector<2x1152xf32>
    %c2_103 = arith.constant 2 : index
    %c2_104 = arith.constant 2 : index
    %c0_105 = arith.constant 0 : index
    %c0_106 = arith.constant 0 : index
    %57 = vector.load %arg1[%c2_103, %c2_104, %c0_105, %c0_106] : memref<6x6x2x128xf32, #tpu.memory_space<vmem>>, vector<1x1x2x128xf32>
    %58 = vector.shape_cast %57 : vector<1x1x2x128xf32> to vector<2x128xf32>
    %c2_107 = arith.constant 2 : index
    %c3_108 = arith.constant 3 : index
    %c0_109 = arith.constant 0 : index
    %c0_110 = arith.constant 0 : index
    %59 = vector.load %arg1[%c2_107, %c3_108, %c0_109, %c0_110] : memref<6x6x2x128xf32, #tpu.memory_space<vmem>>, vector<1x1x2x128xf32>
    %60 = vector.shape_cast %59 : vector<1x1x2x128xf32> to vector<2x128xf32>
    %c2_111 = arith.constant 2 : index
    %c4_112 = arith.constant 4 : index
    %c0_113 = arith.constant 0 : index
    %c0_114 = arith.constant 0 : index
    %61 = vector.load %arg1[%c2_111, %c4_112, %c0_113, %c0_114] : memref<6x6x2x128xf32, #tpu.memory_space<vmem>>, vector<1x1x2x128xf32>
    %62 = vector.shape_cast %61 : vector<1x1x2x128xf32> to vector<2x128xf32>
    %c3_115 = arith.constant 3 : index
    %c2_116 = arith.constant 2 : index
    %c0_117 = arith.constant 0 : index
    %c0_118 = arith.constant 0 : index
    %63 = vector.load %arg1[%c3_115, %c2_116, %c0_117, %c0_118] : memref<6x6x2x128xf32, #tpu.memory_space<vmem>>, vector<1x1x2x128xf32>
    %64 = vector.shape_cast %63 : vector<1x1x2x128xf32> to vector<2x128xf32>
    %c3_119 = arith.constant 3 : index
    %c3_120 = arith.constant 3 : index
    %c0_121 = arith.constant 0 : index
    %c0_122 = arith.constant 0 : index
    %65 = vector.load %arg1[%c3_119, %c3_120, %c0_121, %c0_122] : memref<6x6x2x128xf32, #tpu.memory_space<vmem>>, vector<1x1x2x128xf32>
    %66 = vector.shape_cast %65 : vector<1x1x2x128xf32> to vector<2x128xf32>
    %c3_123 = arith.constant 3 : index
    %c4_124 = arith.constant 4 : index
    %c0_125 = arith.constant 0 : index
    %c0_126 = arith.constant 0 : index
    %67 = vector.load %arg1[%c3_123, %c4_124, %c0_125, %c0_126] : memref<6x6x2x128xf32, #tpu.memory_space<vmem>>, vector<1x1x2x128xf32>
    %68 = vector.shape_cast %67 : vector<1x1x2x128xf32> to vector<2x128xf32>
    %c4_127 = arith.constant 4 : index
    %c2_128 = arith.constant 2 : index
    %c0_129 = arith.constant 0 : index
    %c0_130 = arith.constant 0 : index
    %69 = vector.load %arg1[%c4_127, %c2_128, %c0_129, %c0_130] : memref<6x6x2x128xf32, #tpu.memory_space<vmem>>, vector<1x1x2x128xf32>
    %70 = vector.shape_cast %69 : vector<1x1x2x128xf32> to vector<2x128xf32>
    %c4_131 = arith.constant 4 : index
    %c3_132 = arith.constant 3 : index
    %c0_133 = arith.constant 0 : index
    %c0_134 = arith.constant 0 : index
    %71 = vector.load %arg1[%c4_131, %c3_132, %c0_133, %c0_134] : memref<6x6x2x128xf32, #tpu.memory_space<vmem>>, vector<1x1x2x128xf32>
    %72 = vector.shape_cast %71 : vector<1x1x2x128xf32> to vector<2x128xf32>
    %c4_135 = arith.constant 4 : index
    %c4_136 = arith.constant 4 : index
    %c0_137 = arith.constant 0 : index
    %c0_138 = arith.constant 0 : index
    %73 = vector.load %arg1[%c4_135, %c4_136, %c0_137, %c0_138] : memref<6x6x2x128xf32, #tpu.memory_space<vmem>>, vector<1x1x2x128xf32>
    %74 = vector.shape_cast %73 : vector<1x1x2x128xf32> to vector<2x128xf32>
    %75 = tpu.concatenate %58, %60, %62, %64, %66, %68, %70, %72, %74 in 1 : vector<2x128xf32>, vector<2x128xf32>, vector<2x128xf32>, vector<2x128xf32>, vector<2x128xf32>, vector<2x128xf32>, vector<2x128xf32>, vector<2x128xf32>, vector<2x128xf32> -> vector<2x1152xf32>
    %76 = tpu.concatenate %18, %37, %56, %75 in 0 : vector<2x1152xf32>, vector<2x1152xf32>, vector<2x1152xf32>, vector<2x1152xf32> -> vector<8x1152xf32>
    %c0_139 = arith.constant 0 : index
    %c0_140 = arith.constant 0 : index
    %77 = vector.load %arg2[%c0_139, %c0_140] : memref<1152x128xf32, #tpu.memory_space<vmem>>, vector<1152x128xf32>
    %cst = arith.constant dense<0.000000e+00> : vector<8x128xf32>
    %78 = tpu.matmul %76, %77, %cst {dimension_numbers = #tpu.dot_dimension_numbers<[1], [0], [0], [1], [0, 0, 1, 1], [], []>} : vector<8x1152xf32>, vector<1152x128xf32>, vector<8x128xf32> -> vector<8x128xf32>
    %c0_141 = arith.constant 0 : index
    %c0_142 = arith.constant 0 : index
    %79 = vector.load %arg3[%c0_141, %c0_142] : memref<1x128xf32, #tpu.memory_space<vmem>>, vector<1x128xf32>
    %80 = vector.shape_cast %79 : vector<1x128xf32> to vector<128xf32>
    %81 = vector.shape_cast %80 : vector<128xf32> to vector<1x128xf32>
    %82 = vector.broadcast %81 : vector<1x128xf32> to vector<8x128xf32>
    %83 = arith.addf %78, %82 : vector<8x128xf32>
    %cst_143 = arith.constant 0.000000e+00 : f32
    %84 = vector.broadcast %cst_143 : f32 to vector<8x128xf32>
    %85 = arith.cmpf oge, %83, %84 : vector<8x128xf32>
    %cst_144 = arith.constant 0.00999999977 : f32
    %86 = vector.broadcast %cst_144 : f32 to vector<8x128xf32>
    %87 = arith.mulf %86, %83 : vector<8x128xf32>
    %88 = arith.select %85, %83, %87 : vector<8x128xi1>, vector<8x128xf32>
    %89 = vector.extract_strided_slice %88 {offsets = [0, 0], sizes = [2, 128], strides = [1, 1]} : vector<8x128xf32> to vector<2x128xf32>
    %90 = vector.extract_strided_slice %88 {offsets = [2, 0], sizes = [2, 128], strides = [1, 1]} : vector<8x128xf32> to vector<2x128xf32>
    %91 = vector.extract_strided_slice %88 {offsets = [4, 0], sizes = [2, 128], strides = [1, 1]} : vector<8x128xf32> to vector<2x128xf32>
    %92 = vector.extract_strided_slice %88 {offsets = [6, 0], sizes = [2, 128], strides = [1, 1]} : vector<8x128xf32> to vector<2x128xf32>
    %93 = tpu.concatenate %89, %90, %91, %92 in 1 : vector<2x128xf32>, vector<2x128xf32>, vector<2x128xf32>, vector<2x128xf32> -> vector<2x512xf32>
    %c0_145 = arith.constant 0 : index
    %c0_146 = arith.constant 0 : index
    %94 = vector.load %arg4[%c0_145, %c0_146] : memref<512x128xf32, #tpu.memory_space<vmem>>, vector<512x128xf32>
    %cst_147 = arith.constant dense<0.000000e+00> : vector<2x128xf32>
    %95 = tpu.matmul %93, %94, %cst_147 {dimension_numbers = #tpu.dot_dimension_numbers<[1], [0], [0], [1], [0, 0, 1, 1], [], []>} : vector<2x512xf32>, vector<512x128xf32>, vector<2x128xf32> -> vector<2x128xf32>
    %c0_148 = arith.constant 0 : index
    %c0_149 = arith.constant 0 : index
    %96 = vector.load %arg5[%c0_148, %c0_149] : memref<1x128xf32, #tpu.memory_space<vmem>>, vector<1x128xf32>
    %97 = vector.shape_cast %96 : vector<1x128xf32> to vector<128xf32>
    %98 = vector.shape_cast %97 : vector<128xf32> to vector<1x128xf32>
    %99 = vector.broadcast %98 : vector<1x128xf32> to vector<2x128xf32>
    %100 = arith.addf %95, %99 : vector<2x128xf32>
    %cst_150 = arith.constant 0.000000e+00 : f32
    %101 = vector.broadcast %cst_150 : f32 to vector<2x128xf32>
    %102 = arith.cmpf oge, %100, %101 : vector<2x128xf32>
    %cst_151 = arith.constant 0.00999999977 : f32
    %103 = vector.broadcast %cst_151 : f32 to vector<2x128xf32>
    %104 = arith.mulf %103, %100 : vector<2x128xf32>
    %105 = arith.select %102, %100, %104 : vector<2x128xi1>, vector<2x128xf32>
    %c0_152 = arith.constant 0 : index
    %c0_153 = arith.constant 0 : index
    %106 = vector.load %arg6[%c0_152, %c0_153] : memref<128x128xf32, #tpu.memory_space<vmem>>, vector<128x128xf32>
    %cst_154 = arith.constant dense<0.000000e+00> : vector<2x128xf32>
    %107 = tpu.matmul %105, %106, %cst_154 {dimension_numbers = #tpu.dot_dimension_numbers<[1], [0], [0], [1], [0, 0, 1, 1], [], []>} : vector<2x128xf32>, vector<128x128xf32>, vector<2x128xf32> -> vector<2x128xf32>
    %c0_155 = arith.constant 0 : index
    %c0_156 = arith.constant 0 : index
    %108 = vector.load %arg7[%c0_155, %c0_156] : memref<1x128xf32, #tpu.memory_space<vmem>>, vector<1x128xf32>
    %109 = vector.shape_cast %108 : vector<1x128xf32> to vector<128xf32>
    %110 = vector.shape_cast %109 : vector<128xf32> to vector<1x128xf32>
    %111 = vector.broadcast %110 : vector<1x128xf32> to vector<2x128xf32>
    %112 = arith.addf %107, %111 : vector<2x128xf32>
    %c0_157 = arith.constant 0 : index
    %c0_158 = arith.constant 0 : index
    %113 = vector.load %arg8[%c0_157, %c0_158] : memref<2x128xf32, #tpu.memory_space<vmem>>, vector<2x128xf32>
    tpu.vector_store %arg8[%c0_157, %c0_158], %112 {strides = array<i32>} : memref<2x128xf32, #tpu.memory_space<vmem>>, vector<2x128xf32>,
    return
  }
  func.func @transform_0(%arg0: i32) -> (i32, i32, i32, i32) {
    %c0_i32 = arith.constant 0 : i32
    %c0_i32_0 = arith.constant 0 : i32
    %c0_i32_1 = arith.constant 0 : i32
    %c0_i32_2 = arith.constant 0 : i32
    %c0_i32_3 = arith.constant 0 : i32
    return %c0_i32, %c0_i32_0, %c0_i32_1, %c0_i32_2 : i32, i32, i32, i32
  }
  func.func @transform_1(%arg0: i32) -> (i32, i32) {
    %c0_i32 = arith.constant 0 : i32
    %c0_i32_0 = arith.constant 0 : i32
    %c0_i32_1 = arith.constant 0 : i32
    return %c0_i32, %c0_i32_0 : i32, i32
  }
  func.func @transform_2(%arg0: i32) -> (i32, i32) {
    %c0_i32 = arith.constant 0 : i32
    %c0_i32_0 = arith.constant 0 : i32
    %c0_i32_1 = arith.constant 0 : i32
    return %c0_i32, %c0_i32_0 : i32, i32
  }
  func.func @transform_3(%arg0: i32) -> (i32, i32) {
    %c0_i32 = arith.constant 0 : i32
    %c0_i32_0 = arith.constant 0 : i32
    %c0_i32_1 = arith.constant 0 : i32
    return %c0_i32, %c0_i32_0 : i32, i32
  }
  func.func @transform_4(%arg0: i32) -> (i32, i32) {
    %c0_i32 = arith.constant 0 : i32
    %c0_i32_0 = arith.constant 0 : i32
    %c0_i32_1 = arith.constant 0 : i32
    return %c0_i32, %c0_i32_0 : i32, i32
  }
  func.func @transform_5(%arg0: i32) -> (i32, i32) {
    %c0_i32 = arith.constant 0 : i32
    %c0_i32_0 = arith.constant 0 : i32
    %c0_i32_1 = arith.constant 0 : i32
    return %c0_i32, %c0_i32_0 : i32, i32
  }
  func.func @transform_6(%arg0: i32) -> (i32, i32) {
    %c0_i32 = arith.constant 0 : i32
    %c0_i32_0 = arith.constant 0 : i32
    %c0_i32_1 = arith.constant 0 : i32
    return %c0_i32, %c0_i32_0 : i32, i32
  }
  func.func @transform_7(%arg0: i32) -> (i32, i32) {
    %c0_i32 = arith.constant 0 : i32
    %c0_i32_0 = arith.constant 0 : i32
    %c0_i32_1 = arith.constant 0 : i32
    return %c0_i32, %c0_i32_0 : i32, i32
  }
}

</mosaic_0001>

<llo_original>
// kernel: _lambda_.4
$region0: #{_lambda_.4}
  #allocation0 [shape = 'u32[]', space=smem, size = 0x4, offset = 0x4, fixed_abs, tag = 'smem constant byte address 0x4 - core index']
  #allocation1 [shape = 'u32[144,128]{1,0:T(1,128)}', space=vmem, size = 0x12000, scoped, tag = 'internal scratch']
  %s0 = inlined_call_operand.vmem [shape: f32[2,5,2,5,256], index: 0, kind: input, shape index: {}]
  %s1 = inlined_call_operand.vmem [shape: f32[3,256,128], index: 1, kind: input, shape index: {}]
  %s2 = inlined_call_operand.vmem [shape: f32[3,128,128], index: 2, kind: input, shape index: {}]
  %s3 = inlined_call_operand.vmem [shape: f32[1,128], index: 3, kind: input, shape index: {}]
  %s4 = inlined_call_operand.vmem [shape: f32[32,128], index: 4, kind: output, shape index: {}]
  %s5 = sld [smem:[#allocation0]]
  $region26: #{_lambda_.4} parent=0
    _
  %s7 = ssub.s32 1, %s5
  %s8 = scalar_select 0, %s7, %s5
  // Predicated region
  $region2: #{_lambda_.4} parent=0 // pred_check
    _
  $region3: #{_lambda_.4} parent=0 // pred_check_branch
    %10 = sbr.rel (0) target = $region5
  $region4: #{_lambda_.4} parent=0 // pred_region
    _
  $region5: #{_lambda_.4} parent=0 // pred_fallthru
    _
  // Predicated region
  $region6: #{_lambda_.4} parent=0 // pred_check
    _
  $region7: #{_lambda_.4} parent=0 // pred_check_branch
    %12 = sbr.rel (0) target = $region9
  $region8: #{_lambda_.4} parent=0 // pred_region
    _
  $region9: #{_lambda_.4} parent=0 // pred_fallthru
    _
  // Predicated region
  $region10: #{_lambda_.4} parent=0 // pred_check
    _
  $region11: #{_lambda_.4} parent=0 // pred_check_branch
    %14 = sbr.rel (0) target = $region13
  $region12: #{_lambda_.4} parent=0 // pred_region
    _
  $region13: #{_lambda_.4} parent=0 // pred_fallthru
    _
  // Predicated region
  $region14: #{_lambda_.4} parent=0 // pred_check
    _
  $region15: #{_lambda_.4} parent=0 // pred_check_branch
    %16 = sbr.rel (0) target = $region17
  $region16: #{_lambda_.4} parent=0 // pred_region
    _
  $region17: #{_lambda_.4} parent=0 // pred_fallthru
    _
  %v17 = vld [vmem:[%s0] sm:$0xf]
  %v18 = vld [vmem:[%s0 + $0x8] sm:$0xf]
  %v19 = vld [vmem:[%s0 + $0x20] sm:$0xf]
  %v20 = vld [vmem:[%s0 + $0x28] sm:$0xf]
  %v21 = vld [vmem:[%s0 + $0x40] sm:$0xf]
  %v22 = vld [vmem:[%s0 + $0x48] sm:$0xf]
  %v23 = vld [vmem:[%s0 + $0x60] sm:$0xf]
  %v24 = vld [vmem:[%s0 + $0x68] sm:$0xf]
  %v25 = vld [vmem:[%s0 + $0xa0] sm:$0xf]
  %v26 = vld [vmem:[%s0 + $0xa8] sm:$0xf]
  %v27 = vld [vmem:[%s0 + $0xc0] sm:$0xf]
  %v28 = vld [vmem:[%s0 + $0xc8] sm:$0xf]
  %v29 = vld [vmem:[%s0 + $0xe0] sm:$0xf]
  %v30 = vld [vmem:[%s0 + $0xe8] sm:$0xf]
  %v31 = vld [vmem:[%s0 + $0x100] sm:$0xf]
  %v32 = vld [vmem:[%s0 + $0x108] sm:$0xf]
  %v49 = vcombine.low %v17, %v18
  %v50 = vcombine.low %v19, %v20
  %v51 = vcombine.low %v21, %v22
  %v52 = vcombine.low %v23, %v24
  %v53 = vcombine.low %v25, %v26
  %v54 = vcombine.low %v27, %v28
  %v55 = vcombine.low %v29, %v30
  %v56 = vcombine.low %v31, %v32
  %v57 = vld [vmem:[%s1] sm:$0xff]
  %v58 = vld [vmem:[%s1 + $0x8] sm:$0xff]
  %v59 = vld [vmem:[%s1 + $0x10] sm:$0xff]
  %v60 = vld [vmem:[%s1 + $0x18] sm:$0xff]
  %v61 = vld [vmem:[%s1 + $0x20] sm:$0xff]
  %v62 = vld [vmem:[%s1 + $0x28] sm:$0xff]
  %v63 = vld [vmem:[%s1 + $0x30] sm:$0xff]
  %v64 = vld [vmem:[%s1 + $0x38] sm:$0xff]
  %v65 = vld [vmem:[%s1 + $0x40] sm:$0xff]
  %v66 = vld [vmem:[%s1 + $0x48] sm:$0xff]
  %v67 = vld [vmem:[%s1 + $0x50] sm:$0xff]
  %v68 = vld [vmem:[%s1 + $0x58] sm:$0xff]
  %v69 = vld [vmem:[%s1 + $0x60] sm:$0xff]
  %v70 = vld [vmem:[%s1 + $0x68] sm:$0xff]
  %v71 = vld [vmem:[%s1 + $0x70] sm:$0xff]
  %v72 = vld [vmem:[%s1 + $0x78] sm:$0xff]
  %v73 = vld [vmem:[%s1 + $0x80] sm:$0xff]
  %v74 = vld [vmem:[%s1 + $0x88] sm:$0xff]
  %v75 = vld [vmem:[%s1 + $0x90] sm:$0xff]
  %v76 = vld [vmem:[%s1 + $0x98] sm:$0xff]
  %v77 = vld [vmem:[%s1 + $0xa0] sm:$0xff]
  %v78 = vld [vmem:[%s1 + $0xa8] sm:$0xff]
  %v79 = vld [vmem:[%s1 + $0xb0] sm:$0xff]
  %v80 = vld [vmem:[%s1 + $0xb8] sm:$0xff]
  %v81 = vld [vmem:[%s1 + $0xc0] sm:$0xff]
  %v82 = vld [vmem:[%s1 + $0xc8] sm:$0xff]
  %v83 = vld [vmem:[%s1 + $0xd0] sm:$0xff]
  %v84 = vld [vmem:[%s1 + $0xd8] sm:$0xff]
  %v85 = vld [vmem:[%s1 + $0xe0] sm:$0xff]
  %v86 = vld [vmem:[%s1 + $0xe8] sm:$0xff]
  %v87 = vld [vmem:[%s1 + $0xf0] sm:$0xff]
  %v88 = vld [vmem:[%s1 + $0xf8] sm:$0xff]
  %v89 = vld [vmem:[%s0] sm:$0x1e]
  %v90 = vld [vmem:[%s0 + $0x20] sm:$0x1e]
  %v91 = vld [vmem:[%s0 + $0x40] sm:$0x1e]
  %v92 = vld [vmem:[%s0 + $0x60] sm:$0x1e]
  %v93 = vld [vmem:[%s0 + $0xa0] sm:$0x1e]
  %v94 = vld [vmem:[%s0 + $0xc0] sm:$0x1e]
  %v95 = vld [vmem:[%s0 + $0xe0] sm:$0x1e]
  %v96 = vld [vmem:[%s0 + $0x100] sm:$0x1e]
  %v105 = vcombine.high %v89, %v89
  %v106 = vcombine.high %v90, %v90
  %v107 = vcombine.high %v91, %v91
  %v108 = vcombine.high %v92, %v92
  %v109 = vcombine.high %v93, %v93
  %v110 = vcombine.high %v94, %v94
  %v111 = vcombine.high %v95, %v95
  %v112 = vcombine.high %v96, %v96
  %vm113 = vcmask 1042432
  %vm114 = vcmask 1046532
  %vm115 = vmor %vm113, %vm114
  %v116 = vrot.slane %v89, 5
  %v117 = vrot.slane %v116, 4
  %v118 = vrot.slane %v105, 5
  %v119 = vsel %vm115, %v117, %v118
  %v120 = vrot.slane %v90, 5
  %v121 = vrot.slane %v120, 4
  %v122 = vrot.slane %v106, 5
  %v123 = vsel %vm115, %v121, %v122
  %v124 = vrot.slane %v91, 5
  %v125 = vrot.slane %v124, 4
  %v126 = vrot.slane %v107, 5
  %v127 = vsel %vm115, %v125, %v126
  %v128 = vrot.slane %v92, 5
  %v129 = vrot.slane %v128, 4
  %v130 = vrot.slane %v108, 5
  %v131 = vsel %vm115, %v129, %v130
  %v132 = vrot.slane %v93, 5
  %v133 = vrot.slane %v132, 4
  %v134 = vrot.slane %v109, 5
  %v135 = vsel %vm115, %v133, %v134
  %v136 = vrot.slane %v94, 5
  %v137 = vrot.slane %v136, 4
  %v138 = vrot.slane %v110, 5
  %v139 = vsel %vm115, %v137, %v138
  %v140 = vrot.slane %v95, 5
  %v141 = vrot.slane %v140, 4
  %v142 = vrot.slane %v111, 5
  %v143 = vsel %vm115, %v141, %v142
  %v144 = vrot.slane %v96, 5
  %v145 = vrot.slane %v144, 4
  %v146 = vrot.slane %v112, 5
  %v147 = vsel %vm115, %v145, %v146
  %v148 = vld [vmem:[%s2] sm:$0xff]
  %v149 = vld [vmem:[%s2 + $0x8] sm:$0xff]
  %v150 = vld [vmem:[%s2 + $0x10] sm:$0xff]
  %v151 = vld [vmem:[%s2 + $0x18] sm:$0xff]
  %v152 = vld [vmem:[%s2 + $0x20] sm:$0xff]
  %v153 = vld [vmem:[%s2 + $0x28] sm:$0xff]
  %v154 = vld [vmem:[%s2 + $0x30] sm:$0xff]
  %v155 = vld [vmem:[%s2 + $0x38] sm:$0xff]
  %v156 = vld [vmem:[%s2 + $0x40] sm:$0xff]
  %v157 = vld [vmem:[%s2 + $0x48] sm:$0xff]
  %v158 = vld [vmem:[%s2 + $0x50] sm:$0xff]
  %v159 = vld [vmem:[%s2 + $0x58] sm:$0xff]
  %v160 = vld [vmem:[%s2 + $0x60] sm:$0xff]
  %v161 = vld [vmem:[%s2 + $0x68] sm:$0xff]
  %v162 = vld [vmem:[%s2 + $0x70] sm:$0xff]
  %v163 = vld [vmem:[%s2 + $0x78] sm:$0xff]
  %v164 = vcombine.low %v119, %v123
  %v165 = vcombine.low %v127, %v131
  %v166 = vcombine.low %v135, %v139
  %v167 = vcombine.low %v143, %v147
  %172 = vmatprep.subr.mxu0 0.0
  %173 = vmatpush1.msra.mxu0 %v148
  %174 = vmatprep.subr.mxu0 0.0
  %175 = vmatpush1.msra.mxu0 %v149
  %176 = vmatprep.subr.mxu0 0.0
  %177 = vmatpush1.msra.mxu0 %v150
  %178 = vmatprep.subr.mxu0 0.0
  %179 = vmatpush1.msra.mxu0 %v151
  %180 = vmatprep.subr.mxu0 0.0
  %181 = vmatpush1.msra.mxu0 %v152
  %182 = vmatprep.subr.mxu0 0.0
  %183 = vmatpush1.msra.mxu0 %v153
  %184 = vmatprep.subr.mxu0 0.0
  %185 = vmatpush1.msra.mxu0 %v154
  %186 = vmatprep.subr.mxu0 0.0
  %187 = vmatpush1.msra.mxu0 %v155
  %188 = vmatprep.subr.mxu0 0.0
  %189 = vmatpush1.msra.mxu0 %v156
  %190 = vmatprep.subr.mxu0 0.0
  %191 = vmatpush1.msra.mxu0 %v157
  %192 = vmatprep.subr.mxu0 0.0
  %193 = vmatpush1.msra.mxu0 %v158
  %194 = vmatprep.subr.mxu0 0.0
  %195 = vmatpush1.msra.mxu0 %v159
  %196 = vmatprep.subr.mxu0 0.0
  %197 = vmatpush1.msra.mxu0 %v160
  %198 = vmatprep.subr.mxu0 0.0
  %199 = vmatpush1.msra.mxu0 %v161
  %200 = vmatprep.subr.mxu0 0.0
  %201 = vmatpush1.msra.mxu0 %v162
  %202 = vmatprep.subr.mxu0 0.0
  %203 = vmatpush1.msra.mxu0 %v163
  %204 = vmatprep.subr.mxu0 0.0
  %205 = vmatpush1.msra.mxu0 0.0
  %206 = vmatprep.subr.mxu0 0.0
  %207 = vmatpush1.msra.mxu0 0.0
  %208 = vmatprep.subr.mxu0 0.0
  %209 = vmatpush1.msra.mxu0 0.0
  %210 = vmatprep.subr.mxu0 0.0
  %211 = vmatpush1.msra.mxu0 0.0
  %212 = vmatprep.subr.mxu0 0.0
  %213 = vmatpush1.msra.mxu0 0.0
  %214 = vmatprep.subr.mxu0 0.0
  %215 = vmatpush1.msra.mxu0 0.0
  %216 = vmatprep.subr.mxu0 0.0
  %217 = vmatpush1.msra.mxu0 0.0
  %218 = vmatprep.subr.mxu0 0.0
  %219 = vmatpush1.msra.mxu0 0.0
  %220 = vmatprep.subr.mxu0 0.0
  %221 = vmatpush1.msra.mxu0 0.0
  %222 = vmatprep.subr.mxu0 0.0
  %223 = vmatpush1.msra.mxu0 0.0
  %224 = vmatprep.subr.mxu0 0.0
  %225 = vmatpush1.msra.mxu0 0.0
  %226 = vmatprep.subr.mxu0 0.0
  %227 = vmatpush1.msra.mxu0 0.0
  %228 = vmatprep.subr.mxu0 0.0
  %229 = vmatpush1.msra.mxu0 0.0
  %230 = vmatprep.subr.mxu0 0.0
  %231 = vmatpush1.msra.mxu0 0.0
  %232 = vmatprep.subr.mxu0 0.0
  %233 = vmatpush1.msra.mxu0 0.0
  %234 = vmatprep.subr.mxu0 0.0
  %235 = vmatpush1.msra.mxu0 0.0
  %236 = vmatprep.mubr.f32.mxu0 0.0
  %237 = vmatmul.mubr.f32.gmra.mrb[0].mxu0 %v164
  %v238 = vpop.f32.mrb[0].mxu0
  %v239 = vadd.f32 0.0, %v238
  %v240 = vpop.f32.mrb[0].mxu0
  %241 = vmatprep.mubr.f32.mxu0 0.0
  %242 = vmatmul.mubr.f32.gmra.mrb[0].mxu0 %v165
  %v243 = vpop.f32.mrb[0].mxu0
  %v244 = vadd.f32 0.0, %v243
  %v245 = vpop.f32.mrb[0].mxu0
  %246 = vmatprep.mubr.f32.mxu0 0.0
  %247 = vmatmul.mubr.f32.gmra.mrb[0].mxu0 %v166
  %v248 = vpop.f32.mrb[0].mxu0
  %v249 = vadd.f32 0.0, %v248
  %v250 = vpop.f32.mrb[0].mxu0
  %251 = vmatprep.mubr.f32.mxu0 0.0
  %252 = vmatmul.mubr.f32.gmra.mrb[0].mxu0 %v167
  %v253 = vpop.f32.mrb[0].mxu0
  %v254 = vadd.f32 0.0, %v253
  %v255 = vpop.f32.mrb[0].mxu0
  %256 = vdwg.mxu0
  %v257 = vcombine.low %v49, %v50
  %v258 = vcombine.high %v49, %v50
  %v259 = vcombine.low %v51, %v52
  %v260 = vcombine.high %v51, %v52
  %v261 = vcombine.low %v53, %v54
  %v262 = vcombine.high %v53, %v54
  %v263 = vcombine.low %v55, %v56
  %v264 = vcombine.high %v55, %v56
  %273 = vmatprep.subr.mxu0 0.0
  %274 = vmatpush1.msra.mxu0 %v57
  %275 = vmatprep.subr.mxu0 0.0
  %276 = vmatpush1.msra.mxu0 %v58
  %277 = vmatprep.subr.mxu0 0.0
  %278 = vmatpush1.msra.mxu0 %v59
  %279 = vmatprep.subr.mxu0 0.0
  %280 = vmatpush1.msra.mxu0 %v60
  %281 = vmatprep.subr.mxu0 0.0
  %282 = vmatpush1.msra.mxu0 %v61
  %283 = vmatprep.subr.mxu0 0.0
  %284 = vmatpush1.msra.mxu0 %v62
  %285 = vmatprep.subr.mxu0 0.0
  %286 = vmatpush1.msra.mxu0 %v63
  %287 = vmatprep.subr.mxu0 0.0
  %288 = vmatpush1.msra.mxu0 %v64
  %289 = vmatprep.subr.mxu0 0.0
  %290 = vmatpush1.msra.mxu0 %v65
  %291 = vmatprep.subr.mxu0 0.0
  %292 = vmatpush1.msra.mxu0 %v66
  %293 = vmatprep.subr.mxu0 0.0
  %294 = vmatpush1.msra.mxu0 %v67
  %295 = vmatprep.subr.mxu0 0.0
  %296 = vmatpush1.msra.mxu0 %v68
  %297 = vmatprep.subr.mxu0 0.0
  %298 = vmatpush1.msra.mxu0 %v69
  %299 = vmatprep.subr.mxu0 0.0
  %300 = vmatpush1.msra.mxu0 %v70
  %301 = vmatprep.subr.mxu0 0.0
  %302 = vmatpush1.msra.mxu0 %v71
  %303 = vmatprep.subr.mxu0 0.0
  %304 = vmatpush1.msra.mxu0 %v72
  %305 = vmatprep.subr.mxu0 0.0
  %306 = vmatpush1.msra.mxu0 %v73
  %307 = vmatprep.subr.mxu0 0.0
  %308 = vmatpush1.msra.mxu0 %v74
  %309 = vmatprep.subr.mxu0 0.0
  %310 = vmatpush1.msra.mxu0 %v75
  %311 = vmatprep.subr.mxu0 0.0
  %312 = vmatpush1.msra.mxu0 %v76
  %313 = vmatprep.subr.mxu0 0.0
  %314 = vmatpush1.msra.mxu0 %v77
  %315 = vmatprep.subr.mxu0 0.0
  %316 = vmatpush1.msra.mxu0 %v78
  %317 = vmatprep.subr.mxu0 0.0
  %318 = vmatpush1.msra.mxu0 %v79
  %319 = vmatprep.subr.mxu0 0.0
  %320 = vmatpush1.msra.mxu0 %v80
  %321 = vmatprep.subr.mxu0 0.0
  %322 = vmatpush1.msra.mxu0 %v81
  %323 = vmatprep.subr.mxu0 0.0
  %324 = vmatpush1.msra.mxu0 %v82
  %325 = vmatprep.subr.mxu0 0.0
  %326 = vmatpush1.msra.mxu0 %v83
  %327 = vmatprep.subr.mxu0 0.0
  %328 = vmatpush1.msra.mxu0 %v84
  %329 = vmatprep.subr.mxu0 0.0
  %330 = vmatpush1.msra.mxu0 %v85
  %331 = vmatprep.subr.mxu0 0.0
  %332 = vmatpush1.msra.mxu0 %v86
  %333 = vmatprep.subr.mxu0 0.0
  %334 = vmatpush1.msra.mxu0 %v87
  %335 = vmatprep.subr.mxu0 0.0
  %336 = vmatpush1.msra.mxu0 %v88
  %337 = vmatprep.mubr.f32.mxu0 %v258
  %338 = vmatmul.mubr.f32.gmra.mrb[0].mxu0 %v257
  %v339 = vpop.f32.mrb[0].mxu0
  %v340 = vadd.f32 %v239, %v339
  %v341 = vpop.f32.mrb[0].mxu0
  %342 = vmatprep.mubr.f32.mxu0 %v260
  %343 = vmatmul.mubr.f32.gmra.mrb[0].mxu0 %v259
  %v344 = vpop.f32.mrb[0].mxu0
  %v345 = vadd.f32 %v244, %v344
  %v346 = vpop.f32.mrb[0].mxu0
  %347 = vmatprep.mubr.f32.mxu0 %v262
  %348 = vmatmul.mubr.f32.gmra.mrb[0].mxu0 %v261
  %v349 = vpop.f32.mrb[0].mxu0
  %v350 = vadd.f32 %v249, %v349
  %v351 = vpop.f32.mrb[0].mxu0
  %352 = vmatprep.mubr.f32.mxu0 %v264
  %353 = vmatmul.mubr.f32.gmra.mrb[0].mxu0 %v263
  %v354 = vpop.f32.mrb[0].mxu0
  %v355 = vadd.f32 %v254, %v354
  %v356 = vpop.f32.mrb[0].mxu0
  %357 = vdwg.mxu0
  %s358 = scalar_lea.vmem %s0, 16
  %v359 = vld [vmem:[%s358] sm:$0xf]
  %v360 = vld [vmem:[%s358 + $0x8] sm:$0xf]
  %v361 = vld [vmem:[%s358 + $0x20] sm:$0xf]
  %v362 = vld [vmem:[%s358 + $0x28] sm:$0xf]
  %v363 = vld [vmem:[%s358 + $0x40] sm:$0xf]
  %v364 = vld [vmem:[%s358 + $0x48] sm:$0xf]
  %v365 = vld [vmem:[%s358 + $0x60] sm:$0xf]
  %v366 = vld [vmem:[%s358 + $0x68] sm:$0xf]
  %v367 = vld [vmem:[%s358 + $0xa0] sm:$0xf]
  %v368 = vld [vmem:[%s358 + $0xa8] sm:$0xf]
  %v369 = vld [vmem:[%s358 + $0xc0] sm:$0xf]
  %v370 = vld [vmem:[%s358 + $0xc8] sm:$0xf]
  %v371 = vld [vmem:[%s358 + $0xe0] sm:$0xf]
  %v372 = vld [vmem:[%s358 + $0xe8] sm:$0xf]
  %v373 = vld [vmem:[%s358 + $0x100] sm:$0xf]
  %v374 = vld [vmem:[%s358 + $0x108] sm:$0xf]
  %v391 = vcombine.low %v359, %v360
  %v392 = vcombine.low %v361, %v362
  %v393 = vcombine.low %v363, %v364
  %v394 = vcombine.low %v365, %v366
  %v395 = vcombine.low %v367, %v368
  %v396 = vcombine.low %v369, %v370
  %v397 = vcombine.low %v371, %v372
  %v398 = vcombine.low %v373, %v374
  %s399 = scalar_lea.vmem %s1, 256
  %v400 = vld [vmem:[%s399] sm:$0xff]
  %v401 = vld [vmem:[%s399 + $0x8] sm:$0xff]
  %v402 = vld [vmem:[%s399 + $0x10] sm:$0xff]
  %v403 = vld [vmem:[%s399 + $0x18] sm:$0xff]
  %v404 = vld [vmem:[%s399 + $0x20] sm:$0xff]
  %v405 = vld [vmem:[%s399 + $0x28] sm:$0xff]
  %v406 = vld [vmem:[%s399 + $0x30] sm:$0xff]
  %v407 = vld [vmem:[%s399 + $0x38] sm:$0xff]
  %v408 = vld [vmem:[%s399 + $0x40] sm:$0xff]
  %v409 = vld [vmem:[%s399 + $0x48] sm:$0xff]
  %v410 = vld [vmem:[%s399 + $0x50] sm:$0xff]
  %v411 = vld [vmem:[%s399 + $0x58] sm:$0xff]
  %v412 = vld [vmem:[%s399 + $0x60] sm:$0xff]
  %v413 = vld [vmem:[%s399 + $0x68] sm:$0xff]
  %v414 = vld [vmem:[%s399 + $0x70] sm:$0xff]
  %v415 = vld [vmem:[%s399 + $0x78] sm:$0xff]
  %v416 = vld [vmem:[%s399 + $0x80] sm:$0xff]
  %v417 = vld [vmem:[%s399 + $0x88] sm:$0xff]
  %v418 = vld [vmem:[%s399 + $0x90] sm:$0xff]
  %v419 = vld [vmem:[%s399 + $0x98] sm:$0xff]
  %v420 = vld [vmem:[%s399 + $0xa0] sm:$0xff]
  %v421 = vld [vmem:[%s399 + $0xa8] sm:$0xff]
  %v422 = vld [vmem:[%s399 + $0xb0] sm:$0xff]
  %v423 = vld [vmem:[%s399 + $0xb8] sm:$0xff]
  %v424 = vld [vmem:[%s399 + $0xc0] sm:$0xff]
  %v425 = vld [vmem:[%s399 + $0xc8] sm:$0xff]
  %v426 = vld [vmem:[%s399 + $0xd0] sm:$0xff]
  %v427 = vld [vmem:[%s399 + $0xd8] sm:$0xff]
  %v428 = vld [vmem:[%s399 + $0xe0] sm:$0xff]
  %v429 = vld [vmem:[%s399 + $0xe8] sm:$0xff]
  %v430 = vld [vmem:[%s399 + $0xf0] sm:$0xff]
  %v431 = vld [vmem:[%s399 + $0xf8] sm:$0xff]
  %v432 = vcombine.low %v391, %v392
  %v433 = vcombine.high %v391, %v392
  %v434 = vcombine.low %v393, %v394
  %v435 = vcombine.high %v393, %v394
  %v436 = vcombine.low %v395, %v396
  %v437 = vcombine.high %v395, %v396
  %v438 = vcombine.low %v397, %v398
  %v439 = vcombine.high %v397, %v398
  %448 = vmatprep.subr.mxu0 0.0
  %449 = vmatpush1.msra.mxu0 %v400
  %450 = vmatprep.subr.mxu0 0.0
  %451 = vmatpush1.msra.mxu0 %v401
  %452 = vmatprep.subr.mxu0 0.0
  %453 = vmatpush1.msra.mxu0 %v402
  %454 = vmatprep.subr.mxu0 0.0
  %455 = vmatpush1.msra.mxu0 %v403
  %456 = vmatprep.subr.mxu0 0.0
  %457 = vmatpush1.msra.mxu0 %v404
  %458 = vmatprep.subr.mxu0 0.0
  %459 = vmatpush1.msra.mxu0 %v405
  %460 = vmatprep.subr.mxu0 0.0
  %461 = vmatpush1.msra.mxu0 %v406
  %462 = vmatprep.subr.mxu0 0.0
  %463 = vmatpush1.msra.mxu0 %v407
  %464 = vmatprep.subr.mxu0 0.0
  %465 = vmatpush1.msra.mxu0 %v408
  %466 = vmatprep.subr.mxu0 0.0
  %467 = vmatpush1.msra.mxu0 %v409
  %468 = vmatprep.subr.mxu0 0.0
  %469 = vmatpush1.msra.mxu0 %v410
  %470 = vmatprep.subr.mxu0 0.0
  %471 = vmatpush1.msra.mxu0 %v411
  %472 = vmatprep.subr.mxu0 0.0
  %473 = vmatpush1.msra.mxu0 %v412
  %474 = vmatprep.subr.mxu0 0.0
  %475 = vmatpush1.msra.mxu0 %v413
  %476 = vmatprep.subr.mxu0 0.0
  %477 = vmatpush1.msra.mxu0 %v414
  %478 = vmatprep.subr.mxu0 0.0
  %479 = vmatpush1.msra.mxu0 %v415
  %480 = vmatprep.subr.mxu0 0.0
  %481 = vmatpush1.msra.mxu0 %v416
  %482 = vmatprep.subr.mxu0 0.0
  %483 = vmatpush1.msra.mxu0 %v417
  %484 = vmatprep.subr.mxu0 0.0
  %485 = vmatpush1.msra.mxu0 %v418
  %486 = vmatprep.subr.mxu0 0.0
  %487 = vmatpush1.msra.mxu0 %v419
  %488 = vmatprep.subr.mxu0 0.0
  %489 = vmatpush1.msra.mxu0 %v420
  %490 = vmatprep.subr.mxu0 0.0
  %491 = vmatpush1.msra.mxu0 %v421
  %492 = vmatprep.subr.mxu0 0.0
  %493 = vmatpush1.msra.mxu0 %v422
  %494 = vmatprep.subr.mxu0 0.0
  %495 = vmatpush1.msra.mxu0 %v423
  %496 = vmatprep.subr.mxu0 0.0
  %497 = vmatpush1.msra.mxu0 %v424
  %498 = vmatprep.subr.mxu0 0.0
  %499 = vmatpush1.msra.mxu0 %v425
  %500 = vmatprep.subr.mxu0 0.0
  %501 = vmatpush1.msra.mxu0 %v426
  %502 = vmatprep.subr.mxu0 0.0
  %503 = vmatpush1.msra.mxu0 %v427
  %504 = vmatprep.subr.mxu0 0.0
  %505 = vmatpush1.msra.mxu0 %v428
  %506 = vmatprep.subr.mxu0 0.0
  %507 = vmatpush1.msra.mxu0 %v429
  %508 = vmatprep.subr.mxu0 0.0
  %509 = vmatpush1.msra.mxu0 %v430
  %510 = vmatprep.subr.mxu0 0.0
  %511 = vmatpush1.msra.mxu0 %v431
  %512 = vmatprep.mubr.f32.mxu0 %v433
  %513 = vmatmul.mubr.f32.gmra.mrb[0].mxu0 %v432
  %v514 = vpop.f32.mrb[0].mxu0
  %v515 = vadd.f32 0.0, %v514
  %v516 = vpop.f32.mrb[0].mxu0
  %517 = vmatprep.mubr.f32.mxu0 %v435
  %518 = vmatmul.mubr.f32.gmra.mrb[0].mxu0 %v434
  %v519 = vpop.f32.mrb[0].mxu0
  %v520 = vadd.f32 0.0, %v519
  %v521 = vpop.f32.mrb[0].mxu0
  %522 = vmatprep.mubr.f32.mxu0 %v437
  %523 = vmatmul.mubr.f32.gmra.mrb[0].mxu0 %v436
  %v524 = vpop.f32.mrb[0].mxu0
  %v525 = vadd.f32 0.0, %v524
  %v526 = vpop.f32.mrb[0].mxu0
  %527 = vmatprep.mubr.f32.mxu0 %v439
  %528 = vmatmul.mubr.f32.gmra.mrb[0].mxu0 %v438
  %v529 = vpop.f32.mrb[0].mxu0
  %v530 = vadd.f32 0.0, %v529
  %v531 = vpop.f32.mrb[0].mxu0
  %532 = vdwg.mxu0
  %v533 = vadd.f32 %v340, %v515
  %v534 = vadd.f32 %v345, %v520
  %v535 = vadd.f32 %v350, %v525
  %v536 = vadd.f32 %v355, %v530
  %v537 = vld [vmem:[%s358] sm:$0x1e]
  %v538 = vld [vmem:[%s358 + $0x20] sm:$0x1e]
  %v539 = vld [vmem:[%s358 + $0x40] sm:$0x1e]
  %v540 = vld [vmem:[%s358 + $0x60] sm:$0x1e]
  %v541 = vld [vmem:[%s358 + $0xa0] sm:$0x1e]
  %v542 = vld [vmem:[%s358 + $0xc0] sm:$0x1e]
  %v543 = vld [vmem:[%s358 + $0xe0] sm:$0x1e]
  %v544 = vld [vmem:[%s358 + $0x100] sm:$0x1e]
  %v553 = vcombine.high %v537, %v537
  %v554 = vcombine.high %v538, %v538
  %v555 = vcombine.high %v539, %v539
  %v556 = vcombine.high %v540, %v540
  %v557 = vcombine.high %v541, %v541
  %v558 = vcombine.high %v542, %v542
  %v559 = vcombine.high %v543, %v543
  %v560 = vcombine.high %v544, %v544
  %v561 = vrot.slane %v537, 5
  %v562 = vrot.slane %v561, 4
  %v563 = vrot.slane %v553, 5
  %v564 = vsel %vm115, %v562, %v563
  %v565 = vrot.slane %v538, 5
  %v566 = vrot.slane %v565, 4
  %v567 = vrot.slane %v554, 5
  %v568 = vsel %vm115, %v566, %v567
  %v569 = vrot.slane %v539, 5
  %v570 = vrot.slane %v569, 4
  %v571 = vrot.slane %v555, 5
  %v572 = vsel %vm115, %v570, %v571
  %v573 = vrot.slane %v540, 5
  %v574 = vrot.slane %v573, 4
  %v575 = vrot.slane %v556, 5
  %v576 = vsel %vm115, %v574, %v575
  %v577 = vrot.slane %v541, 5
  %v578 = vrot.slane %v577, 4
  %v579 = vrot.slane %v557, 5
  %v580 = vsel %vm115, %v578, %v579
  %v581 = vrot.slane %v542, 5
  %v582 = vrot.slane %v581, 4
  %v583 = vrot.slane %v558, 5
  %v584 = vsel %vm115, %v582, %v583
  %v585 = vrot.slane %v543, 5
  %v586 = vrot.slane %v585, 4
  %v587 = vrot.slane %v559, 5
  %v588 = vsel %vm115, %v586, %v587
  %v589 = vrot.slane %v544, 5
  %v590 = vrot.slane %v589, 4
  %v591 = vrot.slane %v560, 5
  %v592 = vsel %vm115, %v590, %v591
  %s593 = scalar_lea.vmem %s2, 128
  %v594 = vld [vmem:[%s593] sm:$0xff]
  %v595 = vld [vmem:[%s593 + $0x8] sm:$0xff]
  %v596 = vld [vmem:[%s593 + $0x10] sm:$0xff]
  %v597 = vld [vmem:[%s593 + $0x18] sm:$0xff]
  %v598 = vld [vmem:[%s593 + $0x20] sm:$0xff]
  %v599 = vld [vmem:[%s593 + $0x28] sm:$0xff]
  %v600 = vld [vmem:[%s593 + $0x30] sm:$0xff]
  %v601 = vld [vmem:[%s593 + $0x38] sm:$0xff]
  %v602 = vld [vmem:[%s593 + $0x40] sm:$0xff]
  %v603 = vld [vmem:[%s593 + $0x48] sm:$0xff]
  %v604 = vld [vmem:[%s593 + $0x50] sm:$0xff]
  %v605 = vld [vmem:[%s593 + $0x58] sm:$0xff]
  %v606 = vld [vmem:[%s593 + $0x60] sm:$0xff]
  %v607 = vld [vmem:[%s593 + $0x68] sm:$0xff]
  %v608 = vld [vmem:[%s593 + $0x70] sm:$0xff]
  %v609 = vld [vmem:[%s593 + $0x78] sm:$0xff]
  %v610 = vcombine.low %v564, %v568
  %v611 = vcombine.low %v572, %v576
  %v612 = vcombine.low %v580, %v584
  %v613 = vcombine.low %v588, %v592
  %618 = vmatprep.subr.mxu0 0.0
  %619 = vmatpush1.msra.mxu0 %v594
  %620 = vmatprep.subr.mxu0 0.0
  %621 = vmatpush1.msra.mxu0 %v595
  %622 = vmatprep.subr.mxu0 0.0
  %623 = vmatpush1.msra.mxu0 %v596
  %624 = vmatprep.subr.mxu0 0.0
  %625 = vmatpush1.msra.mxu0 %v597
  %626 = vmatprep.subr.mxu0 0.0
  %627 = vmatpush1.msra.mxu0 %v598
  %628 = vmatprep.subr.mxu0 0.0
  %629 = vmatpush1.msra.mxu0 %v599
  %630 = vmatprep.subr.mxu0 0.0
  %631 = vmatpush1.msra.mxu0 %v600
  %632 = vmatprep.subr.mxu0 0.0
  %633 = vmatpush1.msra.mxu0 %v601
  %634 = vmatprep.subr.mxu0 0.0
  %635 = vmatpush1.msra.mxu0 %v602
  %636 = vmatprep.subr.mxu0 0.0
  %637 = vmatpush1.msra.mxu0 %v603
  %638 = vmatprep.subr.mxu0 0.0
  %639 = vmatpush1.msra.mxu0 %v604
  %640 = vmatprep.subr.mxu0 0.0
  %641 = vmatpush1.msra.mxu0 %v605
  %642 = vmatprep.subr.mxu0 0.0
  %643 = vmatpush1.msra.mxu0 %v606
  %644 = vmatprep.subr.mxu0 0.0
  %645 = vmatpush1.msra.mxu0 %v607
  %646 = vmatprep.subr.mxu0 0.0
  %647 = vmatpush1.msra.mxu0 %v608
  %648 = vmatprep.subr.mxu0 0.0
  %649 = vmatpush1.msra.mxu0 %v609
  %650 = vmatprep.subr.mxu0 0.0
  %651 = vmatpush1.msra.mxu0 0.0
  %652 = vmatprep.subr.mxu0 0.0
  %653 = vmatpush1.msra.mxu0 0.0
  %654 = vmatprep.subr.mxu0 0.0
  %655 = vmatpush1.msra.mxu0 0.0
  %656 = vmatprep.subr.mxu0 0.0
  %657 = vmatpush1.msra.mxu0 0.0
  %658 = vmatprep.subr.mxu0 0.0
  %659 = vmatpush1.msra.mxu0 0.0
  %660 = vmatprep.subr.mxu0 0.0
  %661 = vmatpush1.msra.mxu0 0.0
  %662 = vmatprep.subr.mxu0 0.0
  %663 = vmatpush1.msra.mxu0 0.0
  %664 = vmatprep.subr.mxu0 0.0
  %665 = vmatpush1.msra.mxu0 0.0
  %666 = vmatprep.subr.mxu0 0.0
  %667 = vmatpush1.msra.mxu0 0.0
  %668 = vmatprep.subr.mxu0 0.0
  %669 = vmatpush1.msra.mxu0 0.0
  %670 = vmatprep.subr.mxu0 0.0
  %671 = vmatpush1.msra.mxu0 0.0
  %672 = vmatprep.subr.mxu0 0.0
  %673 = vmatpush1.msra.mxu0 0.0
  %674 = vmatprep.subr.mxu0 0.0
  %675 = vmatpush1.msra.mxu0 0.0
  %676 = vmatprep.subr.mxu0 0.0
  %677 = vmatpush1.msra.mxu0 0.0
  %678 = vmatprep.subr.mxu0 0.0
  %679 = vmatpush1.msra.mxu0 0.0
  %680 = vmatprep.subr.mxu0 0.0
  %681 = vmatpush1.msra.mxu0 0.0
  %682 = vmatprep.mubr.f32.mxu0 0.0
  %683 = vmatmul.mubr.f32.gmra.mrb[0].mxu0 %v610
  %v684 = vpop.f32.mrb[0].mxu0
  %v685 = vadd.f32 0.0, %v684
  %v686 = vpop.f32.mrb[0].mxu0
  %687 = vmatprep.mubr.f32.mxu0 0.0
  %688 = vmatmul.mubr.f32.gmra.mrb[0].mxu0 %v611
  %v689 = vpop.f32.mrb[0].mxu0
  %v690 = vadd.f32 0.0, %v689
  %v691 = vpop.f32.mrb[0].mxu0
  %692 = vmatprep.mubr.f32.mxu0 0.0
  %693 = vmatmul.mubr.f32.gmra.mrb[0].mxu0 %v612
  %v694 = vpop.f32.mrb[0].mxu0
  %v695 = vadd.f32 0.0, %v694
  %v696 = vpop.f32.mrb[0].mxu0
  %697 = vmatprep.mubr.f32.mxu0 0.0
  %698 = vmatmul.mubr.f32.gmra.mrb[0].mxu0 %v613
  %v699 = vpop.f32.mrb[0].mxu0
  %v700 = vadd.f32 0.0, %v699
  %v701 = vpop.f32.mrb[0].mxu0
  %702 = vdwg.mxu0
  %v703 = vadd.f32 %v533, %v685
  %v704 = vadd.f32 %v534, %v690
  %v705 = vadd.f32 %v535, %v695
  %v706 = vadd.f32 %v536, %v700
  %s707 = scalar_lea.vmem %s0, 32
  %v708 = vld [vmem:[%s707] sm:$0xf]
  %v709 = vld [vmem:[%s707 + $0x8] sm:$0xf]
  %v710 = vld [vmem:[%s707 + $0x20] sm:$0xf]
  %v711 = vld [vmem:[%s707 + $0x28] sm:$0xf]
  %v712 = vld [vmem:[%s707 + $0x40] sm:$0xf]
  %v713 = vld [vmem:[%s707 + $0x48] sm:$0xf]
  %v714 = vld [vmem:[%s707 + $0x60] sm:$0xf]
  %v715 = vld [vmem:[%s707 + $0x68] sm:$0xf]
  %v716 = vld [vmem:[%s707 + $0xa0] sm:$0xf]
  %v717 = vld [vmem:[%s707 + $0xa8] sm:$0xf]
  %v718 = vld [vmem:[%s707 + $0xc0] sm:$0xf]
  %v719 = vld [vmem:[%s707 + $0xc8] sm:$0xf]
  %v720 = vld [vmem:[%s707 + $0xe0] sm:$0xf]
  %v721 = vld [vmem:[%s707 + $0xe8] sm:$0xf]
  %v722 = vld [vmem:[%s707 + $0x100] sm:$0xf]
  %v723 = vld [vmem:[%s707 + $0x108] sm:$0xf]
  %v740 = vcombine.low %v708, %v709
  %v741 = vcombine.low %v710, %v711
  %v742 = vcombine.low %v712, %v713
  %v743 = vcombine.low %v714, %v715
  %v744 = vcombine.low %v716, %v717
  %v745 = vcombine.low %v718, %v719
  %v746 = vcombine.low %v720, %v721
  %v747 = vcombine.low %v722, %v723
  %s748 = scalar_lea.vmem %s1, 512
  %v749 = vld [vmem:[%s748] sm:$0xff]
  %v750 = vld [vmem:[%s748 + $0x8] sm:$0xff]
  %v751 = vld [vmem:[%s748 + $0x10] sm:$0xff]
  %v752 = vld [vmem:[%s748 + $0x18] sm:$0xff]
  %v753 = vld [vmem:[%s748 + $0x20] sm:$0xff]
  %v754 = vld [vmem:[%s748 + $0x28] sm:$0xff]
  %v755 = vld [vmem:[%s748 + $0x30] sm:$0xff]
  %v756 = vld [vmem:[%s748 + $0x38] sm:$0xff]
  %v757 = vld [vmem:[%s748 + $0x40] sm:$0xff]
  %v758 = vld [vmem:[%s748 + $0x48] sm:$0xff]
  %v759 = vld [vmem:[%s748 + $0x50] sm:$0xff]
  %v760 = vld [vmem:[%s748 + $0x58] sm:$0xff]
  %v761 = vld [vmem:[%s748 + $0x60] sm:$0xff]
  %v762 = vld [vmem:[%s748 + $0x68] sm:$0xff]
  %v763 = vld [vmem:[%s748 + $0x70] sm:$0xff]
  %v764 = vld [vmem:[%s748 + $0x78] sm:$0xff]
  %v765 = vld [vmem:[%s748 + $0x80] sm:$0xff]
  %v766 = vld [vmem:[%s748 + $0x88] sm:$0xff]
  %v767 = vld [vmem:[%s748 + $0x90] sm:$0xff]
  %v768 = vld [vmem:[%s748 + $0x98] sm:$0xff]
  %v769 = vld [vmem:[%s748 + $0xa0] sm:$0xff]
  %v770 = vld [vmem:[%s748 + $0xa8] sm:$0xff]
  %v771 = vld [vmem:[%s748 + $0xb0] sm:$0xff]
  %v772 = vld [vmem:[%s748 + $0xb8] sm:$0xff]
  %v773 = vld [vmem:[%s748 + $0xc0] sm:$0xff]
  %v774 = vld [vmem:[%s748 + $0xc8] sm:$0xff]
  %v775 = vld [vmem:[%s748 + $0xd0] sm:$0xff]
  %v776 = vld [vmem:[%s748 + $0xd8] sm:$0xff]
  %v777 = vld [vmem:[%s748 + $0xe0] sm:$0xff]
  %v778 = vld [vmem:[%s748 + $0xe8] sm:$0xff]
  %v779 = vld [vmem:[%s748 + $0xf0] sm:$0xff]
  %v780 = vld [vmem:[%s748 + $0xf8] sm:$0xff]
  %v781 = vcombine.low %v740, %v741
  %v782 = vcombine.high %v740, %v741
  %v783 = vcombine.low %v742, %v743
  %v784 = vcombine.high %v742, %v743
  %v785 = vcombine.low %v744, %v745
  %v786 = vcombine.high %v744, %v745
  %v787 = vcombine.low %v746, %v747
  %v788 = vcombine.high %v746, %v747
  %797 = vmatprep.subr.mxu0 0.0
  %798 = vmatpush1.msra.mxu0 %v749
  %799 = vmatprep.subr.mxu0 0.0
  %800 = vmatpush1.msra.mxu0 %v750
  %801 = vmatprep.subr.mxu0 0.0
  %802 = vmatpush1.msra.mxu0 %v751
  %803 = vmatprep.subr.mxu0 0.0
  %804 = vmatpush1.msra.mxu0 %v752
  %805 = vmatprep.subr.mxu0 0.0
  %806 = vmatpush1.msra.mxu0 %v753
  %807 = vmatprep.subr.mxu0 0.0
  %808 = vmatpush1.msra.mxu0 %v754
  %809 = vmatprep.subr.mxu0 0.0
  %810 = vmatpush1.msra.mxu0 %v755
  %811 = vmatprep.subr.mxu0 0.0
  %812 = vmatpush1.msra.mxu0 %v756
  %813 = vmatprep.subr.mxu0 0.0
  %814 = vmatpush1.msra.mxu0 %v757
  %815 = vmatprep.subr.mxu0 0.0
  %816 = vmatpush1.msra.mxu0 %v758
  %817 = vmatprep.subr.mxu0 0.0
  %818 = vmatpush1.msra.mxu0 %v759
  %819 = vmatprep.subr.mxu0 0.0
  %820 = vmatpush1.msra.mxu0 %v760
  %821 = vmatprep.subr.mxu0 0.0
  %822 = vmatpush1.msra.mxu0 %v761
  %823 = vmatprep.subr.mxu0 0.0
  %824 = vmatpush1.msra.mxu0 %v762
  %825 = vmatprep.subr.mxu0 0.0
  %826 = vmatpush1.msra.mxu0 %v763
  %827 = vmatprep.subr.mxu0 0.0
  %828 = vmatpush1.msra.mxu0 %v764
  %829 = vmatprep.subr.mxu0 0.0
  %830 = vmatpush1.msra.mxu0 %v765
  %831 = vmatprep.subr.mxu0 0.0
  %832 = vmatpush1.msra.mxu0 %v766
  %833 = vmatprep.subr.mxu0 0.0
  %834 = vmatpush1.msra.mxu0 %v767
  %835 = vmatprep.subr.mxu0 0.0
  %836 = vmatpush1.msra.mxu0 %v768
  %837 = vmatprep.subr.mxu0 0.0
  %838 = vmatpush1.msra.mxu0 %v769
  %839 = vmatprep.subr.mxu0 0.0
  %840 = vmatpush1.msra.mxu0 %v770
  %841 = vmatprep.subr.mxu0 0.0
  %842 = vmatpush1.msra.mxu0 %v771
  %843 = vmatprep.subr.mxu0 0.0
  %844 = vmatpush1.msra.mxu0 %v772
  %845 = vmatprep.subr.mxu0 0.0
  %846 = vmatpush1.msra.mxu0 %v773
  %847 = vmatprep.subr.mxu0 0.0
  %848 = vmatpush1.msra.mxu0 %v774
  %849 = vmatprep.subr.mxu0 0.0
  %850 = vmatpush1.msra.mxu0 %v775
  %851 = vmatprep.subr.mxu0 0.0
  %852 = vmatpush1.msra.mxu0 %v776
  %853 = vmatprep.subr.mxu0 0.0
  %854 = vmatpush1.msra.mxu0 %v777
  %855 = vmatprep.subr.mxu0 0.0
  %856 = vmatpush1.msra.mxu0 %v778
  %857 = vmatprep.subr.mxu0 0.0
  %858 = vmatpush1.msra.mxu0 %v779
  %859 = vmatprep.subr.mxu0 0.0
  %860 = vmatpush1.msra.mxu0 %v780
  %861 = vmatprep.mubr.f32.mxu0 %v782
  %862 = vmatmul.mubr.f32.gmra.mrb[0].mxu0 %v781
  %v863 = vpop.f32.mrb[0].mxu0
  %v864 = vadd.f32 0.0, %v863
  %v865 = vpop.f32.mrb[0].mxu0
  %866 = vmatprep.mubr.f32.mxu0 %v784
  %867 = vmatmul.mubr.f32.gmra.mrb[0].mxu0 %v783
  %v868 = vpop.f32.mrb[0].mxu0
  %v869 = vadd.f32 0.0, %v868
  %v870 = vpop.f32.mrb[0].mxu0
  %871 = vmatprep.mubr.f32.mxu0 %v786
  %872 = vmatmul.mubr.f32.gmra.mrb[0].mxu0 %v785
  %v873 = vpop.f32.mrb[0].mxu0
  %v874 = vadd.f32 0.0, %v873
  %v875 = vpop.f32.mrb[0].mxu0
  %876 = vmatprep.mubr.f32.mxu0 %v788
  %877 = vmatmul.mubr.f32.gmra.mrb[0].mxu0 %v787
  %v878 = vpop.f32.mrb[0].mxu0
  %v879 = vadd.f32 0.0, %v878
  %v880 = vpop.f32.mrb[0].mxu0
  %881 = vdwg.mxu0
  %v882 = vadd.f32 %v703, %v864
  %v883 = vadd.f32 %v704, %v869
  %v884 = vadd.f32 %v705, %v874
  %v885 = vadd.f32 %v706, %v879
  %v886 = vld [vmem:[%s707] sm:$0x1e]
  %v887 = vld [vmem:[%s707 + $0x20] sm:$0x1e]
  %v888 = vld [vmem:[%s707 + $0x40] sm:$0x1e]
  %v889 = vld [vmem:[%s707 + $0x60] sm:$0x1e]
  %v890 = vld [vmem:[%s707 + $0xa0] sm:$0x1e]
  %v891 = vld [vmem:[%s707 + $0xc0] sm:$0x1e]
  %v892 = vld [vmem:[%s707 + $0xe0] sm:$0x1e]
  %v893 = vld [vmem:[%s707 + $0x100] sm:$0x1e]
  %v902 = vcombine.high %v886, %v886
  %v903 = vcombine.high %v887, %v887
  %v904 = vcombine.high %v888, %v888
  %v905 = vcombine.high %v889, %v889
  %v906 = vcombine.high %v890, %v890
  %v907 = vcombine.high %v891, %v891
  %v908 = vcombine.high %v892, %v892
  %v909 = vcombine.high %v893, %v893
  %v910 = vrot.slane %v886, 5
  %v911 = vrot.slane %v910, 4
  %v912 = vrot.slane %v902, 5
  %v913 = vsel %vm115, %v911, %v912
  %v914 = vrot.slane %v887, 5
  %v915 = vrot.slane %v914, 4
  %v916 = vrot.slane %v903, 5
  %v917 = vsel %vm115, %v915, %v916
  %v918 = vrot.slane %v888, 5
  %v919 = vrot.slane %v918, 4
  %v920 = vrot.slane %v904, 5
  %v921 = vsel %vm115, %v919, %v920
  %v922 = vrot.slane %v889, 5
  %v923 = vrot.slane %v922, 4
  %v924 = vrot.slane %v905, 5
  %v925 = vsel %vm115, %v923, %v924
  %v926 = vrot.slane %v890, 5
  %v927 = vrot.slane %v926, 4
  %v928 = vrot.slane %v906, 5
  %v929 = vsel %vm115, %v927, %v928
  %v930 = vrot.slane %v891, 5
  %v931 = vrot.slane %v930, 4
  %v932 = vrot.slane %v907, 5
  %v933 = vsel %vm115, %v931, %v932
  %v934 = vrot.slane %v892, 5
  %v935 = vrot.slane %v934, 4
  %v936 = vrot.slane %v908, 5
  %v937 = vsel %vm115, %v935, %v936
  %v938 = vrot.slane %v893, 5
  %v939 = vrot.slane %v938, 4
  %v940 = vrot.slane %v909, 5
  %v941 = vsel %vm115, %v939, %v940
  %s942 = scalar_lea.vmem %s2, 256
  %v943 = vld [vmem:[%s942] sm:$0xff]
  %v944 = vld [vmem:[%s942 + $0x8] sm:$0xff]
  %v945 = vld [vmem:[%s942 + $0x10] sm:$0xff]
  %v946 = vld [vmem:[%s942 + $0x18] sm:$0xff]
  %v947 = vld [vmem:[%s942 + $0x20] sm:$0xff]
  %v948 = vld [vmem:[%s942 + $0x28] sm:$0xff]
  %v949 = vld [vmem:[%s942 + $0x30] sm:$0xff]
  %v950 = vld [vmem:[%s942 + $0x38] sm:$0xff]
  %v951 = vld [vmem:[%s942 + $0x40] sm:$0xff]
  %v952 = vld [vmem:[%s942 + $0x48] sm:$0xff]
  %v953 = vld [vmem:[%s942 + $0x50] sm:$0xff]
  %v954 = vld [vmem:[%s942 + $0x58] sm:$0xff]
  %v955 = vld [vmem:[%s942 + $0x60] sm:$0xff]
  %v956 = vld [vmem:[%s942 + $0x68] sm:$0xff]
  %v957 = vld [vmem:[%s942 + $0x70] sm:$0xff]
  %v958 = vld [vmem:[%s942 + $0x78] sm:$0xff]
  %v959 = vcombine.low %v913, %v917
  %v960 = vcombine.low %v921, %v925
  %v961 = vcombine.low %v929, %v933
  %v962 = vcombine.low %v937, %v941
  %967 = vmatprep.subr.mxu0 0.0
  %968 = vmatpush1.msra.mxu0 %v943
  %969 = vmatprep.subr.mxu0 0.0
  %970 = vmatpush1.msra.mxu0 %v944
  %971 = vmatprep.subr.mxu0 0.0
  %972 = vmatpush1.msra.mxu0 %v945
  %973 = vmatprep.subr.mxu0 0.0
  %974 = vmatpush1.msra.mxu0 %v946
  %975 = vmatprep.subr.mxu0 0.0
  %976 = vmatpush1.msra.mxu0 %v947
  %977 = vmatprep.subr.mxu0 0.0
  %978 = vmatpush1.msra.mxu0 %v948
  %979 = vmatprep.subr.mxu0 0.0
  %980 = vmatpush1.msra.mxu0 %v949
  %981 = vmatprep.subr.mxu0 0.0
  %982 = vmatpush1.msra.mxu0 %v950
  %983 = vmatprep.subr.mxu0 0.0
  %984 = vmatpush1.msra.mxu0 %v951
  %985 = vmatprep.subr.mxu0 0.0
  %986 = vmatpush1.msra.mxu0 %v952
  %987 = vmatprep.subr.mxu0 0.0
  %988 = vmatpush1.msra.mxu0 %v953
  %989 = vmatprep.subr.mxu0 0.0
  %990 = vmatpush1.msra.mxu0 %v954
  %991 = vmatprep.subr.mxu0 0.0
  %992 = vmatpush1.msra.mxu0 %v955
  %993 = vmatprep.subr.mxu0 0.0
  %994 = vmatpush1.msra.mxu0 %v956
  %995 = vmatprep.subr.mxu0 0.0
  %996 = vmatpush1.msra.mxu0 %v957
  %997 = vmatprep.subr.mxu0 0.0
  %998 = vmatpush1.msra.mxu0 %v958
  %999 = vmatprep.subr.mxu0 0.0
  %1000 = vmatpush1.msra.mxu0 0.0
  %1001 = vmatprep.subr.mxu0 0.0
  %1002 = vmatpush1.msra.mxu0 0.0
  %1003 = vmatprep.subr.mxu0 0.0
  %1004 = vmatpush1.msra.mxu0 0.0
  %1005 = vmatprep.subr.mxu0 0.0
  %1006 = vmatpush1.msra.mxu0 0.0
  %1007 = vmatprep.subr.mxu0 0.0
  %1008 = vmatpush1.msra.mxu0 0.0
  %1009 = vmatprep.subr.mxu0 0.0
  %1010 = vmatpush1.msra.mxu0 0.0
  %1011 = vmatprep.subr.mxu0 0.0
  %1012 = vmatpush1.msra.mxu0 0.0
  %1013 = vmatprep.subr.mxu0 0.0
  %1014 = vmatpush1.msra.mxu0 0.0
  %1015 = vmatprep.subr.mxu0 0.0
  %1016 = vmatpush1.msra.mxu0 0.0
  %1017 = vmatprep.subr.mxu0 0.0
  %1018 = vmatpush1.msra.mxu0 0.0
  %1019 = vmatprep.subr.mxu0 0.0
  %1020 = vmatpush1.msra.mxu0 0.0
  %1021 = vmatprep.subr.mxu0 0.0
  %1022 = vmatpush1.msra.mxu0 0.0
  %1023 = vmatprep.subr.mxu0 0.0
  %1024 = vmatpush1.msra.mxu0 0.0
  %1025 = vmatprep.subr.mxu0 0.0
  %1026 = vmatpush1.msra.mxu0 0.0
  %1027 = vmatprep.subr.mxu0 0.0
  %1028 = vmatpush1.msra.mxu0 0.0
  %1029 = vmatprep.subr.mxu0 0.0
  %1030 = vmatpush1.msra.mxu0 0.0
  %1031 = vmatprep.mubr.f32.mxu0 0.0
  %1032 = vmatmul.mubr.f32.gmra.mrb[0].mxu0 %v959
  %v1033 = vpop.f32.mrb[0].mxu0
  %v1034 = vadd.f32 0.0, %v1033
  %v1035 = vpop.f32.mrb[0].mxu0
  %1036 = vmatprep.mubr.f32.mxu0 0.0
  %1037 = vmatmul.mubr.f32.gmra.mrb[0].mxu0 %v960
  %v1038 = vpop.f32.mrb[0].mxu0
  %v1039 = vadd.f32 0.0, %v1038
  %v1040 = vpop.f32.mrb[0].mxu0
  %1041 = vmatprep.mubr.f32.mxu0 0.0
  %1042 = vmatmul.mubr.f32.gmra.mrb[0].mxu0 %v961
  %v1043 = vpop.f32.mrb[0].mxu0
  %v1044 = vadd.f32 0.0, %v1043
  %v1045 = vpop.f32.mrb[0].mxu0
  %1046 = vmatprep.mubr.f32.mxu0 0.0
  %1047 = vmatmul.mubr.f32.gmra.mrb[0].mxu0 %v962
  %v1048 = vpop.f32.mrb[0].mxu0
  %v1049 = vadd.f32 0.0, %v1048
  %v1050 = vpop.f32.mrb[0].mxu0
  %1051 = vdwg.mxu0
  %v1052 = vadd.f32 %v882, %v1034
  %v1053 = vadd.f32 %v883, %v1039
  %v1054 = vadd.f32 %v884, %v1044
  %v1055 = vadd.f32 %v885, %v1049
  %v1056 = vld [vmem:[%s3] sm:$0x1]
  %v1058 = vlaneseq
  %v1059 = vshrl.u32 %v1058, 7
  %v1060 = vsub.s32 0, %v1059
  %v1061 = vrot.slane %v1056, %v1060
  %v1063 = vadd.f32 %v1052, %v1061
  %v1064 = vadd.f32 %v1053, %v1061
  %v1065 = vadd.f32 %v1054, %v1061
  %v1066 = vadd.f32 %v1055, %v1061
  %vm1067 = vcmp.ge.f32.partialorder %v1063, 0.0
  %vm1068 = vcmp.ge.f32.partialorder %v1064, 0.0
  %vm1069 = vcmp.ge.f32.partialorder %v1065, 0.0
  %vm1070 = vcmp.ge.f32.partialorder %v1066, 0.0
  %v1071 = vmul.f32 %v1063, 0.01
  %v1072 = vmul.f32 %v1064, 0.01
  %v1073 = vmul.f32 %v1065, 0.01
  %v1074 = vmul.f32 %v1066, 0.01
  %v1075 = vsel %vm1067, %v1063, %v1071
  %v1076 = vsel %vm1068, %v1064, %v1072
  %v1077 = vsel %vm1069, %v1065, %v1073
  %v1078 = vsel %vm1070, %v1066, %v1074
  %1079 = vst [vmem:[%s4] sm:$0xff] %v1075
  %1080 = vst [vmem:[%s4 + $0x8] sm:$0xff] %v1076
  %1081 = vst [vmem:[%s4 + $0x10] sm:$0xff] %v1077
  %1082 = vst [vmem:[%s4 + $0x18] sm:$0xff] %v1078
  // Predicated region
  $region18: #{_lambda_.4} parent=0 // pred_check
    _
  $region19: #{_lambda_.4} parent=0 // pred_check_branch
    %1084 = sbr.rel (0) target = $region21
  $region20: #{_lambda_.4} parent=0 // pred_region
    _
  $region21: #{_lambda_.4} parent=0 // pred_fallthru
    _
  // Predicated region
  $region22: #{_lambda_.4} parent=0 // pred_check
    _
  $region23: #{_lambda_.4} parent=0 // pred_check_branch
    %1086 = sbr.rel (0) target = $region25
  $region24: #{_lambda_.4} parent=0 // pred_region
    _
  $region25: #{_lambda_.4} parent=0 // pred_fallthru
    _

// kernel: _lambda_.3
$region0: #{_lambda_.3}
  #allocation0 [shape = 'u32[]', space=smem, size = 0x4, offset = 0x4, fixed_abs, tag = 'smem constant byte address 0x4 - core index']
  #allocation1 [shape = 'u32[144,128]{1,0:T(1,128)}', space=vmem, size = 0x12000, scoped, tag = 'internal scratch']
  %s0 = inlined_call_operand.vmem [shape: f32[2,9,2,9,8], index: 0, kind: input, shape index: {}]
  %s1 = inlined_call_operand.vmem [shape: f32[3,8,128], index: 1, kind: input, shape index: {}]
  %s2 = inlined_call_operand.vmem [shape: f32[3,4,128], index: 2, kind: input, shape index: {}]
  %s3 = inlined_call_operand.vmem [shape: f32[1,128], index: 3, kind: input, shape index: {}]
  %s4 = inlined_call_operand.vmem [shape: f32[128,128], index: 4, kind: output, shape index: {}]
  %s5 = sld [smem:[#allocation0]]
  $region26: #{_lambda_.3} parent=0
    _
  %s7 = ssub.s32 1, %s5
  %s8 = scalar_select 0, %s7, %s5
  // Predicated region
  $region2: #{_lambda_.3} parent=0 // pred_check
    _
  $region3: #{_lambda_.3} parent=0 // pred_check_branch
    %10 = sbr.rel (0) target = $region5
  $region4: #{_lambda_.3} parent=0 // pred_region
    _
  $region5: #{_lambda_.3} parent=0 // pred_fallthru
    _
  // Predicated region
  $region6: #{_lambda_.3} parent=0 // pred_check
    _
  $region7: #{_lambda_.3} parent=0 // pred_check_branch
    %12 = sbr.rel (0) target = $region9
  $region8: #{_lambda_.3} parent=0 // pred_region
    _
  $region9: #{_lambda_.3} parent=0 // pred_fallthru
    _
  // Predicated region
  $region10: #{_lambda_.3} parent=0 // pred_check
    _
  $region11: #{_lambda_.3} parent=0 // pred_check_branch
    %14 = sbr.rel (0) target = $region13
  $region12: #{_lambda_.3} parent=0 // pred_region
    _
  $region13: #{_lambda_.3} parent=0 // pred_fallthru
    _
  // Predicated region
  $region14: #{_lambda_.3} parent=0 // pred_check
    _
  $region15: #{_lambda_.3} parent=0 // pred_check_branch
    %16 = sbr.rel (0) target = $region17
  $region16: #{_lambda_.3} parent=0 // pred_region
    _
  $region17: #{_lambda_.3} parent=0 // pred_fallthru
    _
  %v17 = vld [vmem:[%s0] sm:$0xff]
  %v18 = vld [vmem:[%s0 + $0x20] sm:$0xff]
  %v19 = vld [vmem:[%s0 + $0x40] sm:$0xff]
  %v20 = vld [vmem:[%s0 + $0x60] sm:$0xff]
  %v21 = vld [vmem:[%s0 + $0x80] sm:$0xff]
  %v22 = vld [vmem:[%s0 + $0xa0] sm:$0xff]
  %v23 = vld [vmem:[%s0 + $0xc0] sm:$0xff]
  %v24 = vld [vmem:[%s0 + $0xe0] sm:$0xff]
  %v25 = vld [vmem:[%s0 + $0x120] sm:$0xff]
  %v26 = vld [vmem:[%s0 + $0x140] sm:$0xff]
  %v27 = vld [vmem:[%s0 + $0x160] sm:$0xff]
  %v28 = vld [vmem:[%s0 + $0x180] sm:$0xff]
  %v29 = vld [vmem:[%s0 + $0x1a0] sm:$0xff]
  %v30 = vld [vmem:[%s0 + $0x1c0] sm:$0xff]
  %v31 = vld [vmem:[%s0 + $0x1e0] sm:$0xff]
  %v32 = vld [vmem:[%s0 + $0x200] sm:$0xff]
  %v33 = vld [vmem:[%s1] sm:$0xff]
  %v34 = vld [vmem:[%s0 + $0x1] sm:$0xff]
  %v35 = vld [vmem:[%s0 + $0x21] sm:$0xff]
  %v36 = vld [vmem:[%s0 + $0x41] sm:$0xff]
  %v37 = vld [vmem:[%s0 + $0x61] sm:$0xff]
  %v38 = vld [vmem:[%s0 + $0x81] sm:$0xff]
  %v39 = vld [vmem:[%s0 + $0xa1] sm:$0xff]
  %v40 = vld [vmem:[%s0 + $0xc1] sm:$0xff]
  %v41 = vld [vmem:[%s0 + $0xe1] sm:$0xff]
  %v42 = vld [vmem:[%s0 + $0x121] sm:$0xff]
  %v43 = vld [vmem:[%s0 + $0x141] sm:$0xff]
  %v44 = vld [vmem:[%s0 + $0x161] sm:$0xff]
  %v45 = vld [vmem:[%s0 + $0x181] sm:$0xff]
  %v46 = vld [vmem:[%s0 + $0x1a1] sm:$0xff]
  %v47 = vld [vmem:[%s0 + $0x1c1] sm:$0xff]
  %v48 = vld [vmem:[%s0 + $0x1e1] sm:$0xff]
  %v49 = vld [vmem:[%s0 + $0x201] sm:$0xff]
  %v50 = vld [vmem:[%s2] sm:$0xf]
  %vm51 = vcmask 31744
  %v53 = vsel %vm51, %v34, 0
  %v56 = vsel %vm51, %v35, 0
  %v59 = vsel %vm51, %v36, 0
  %v62 = vsel %vm51, %v37, 0
  %v65 = vsel %vm51, %v38, 0
  %v68 = vsel %vm51, %v39, 0
  %v71 = vsel %vm51, %v40, 0
  %v74 = vsel %vm51, %v41, 0
  %v77 = vsel %vm51, %v42, 0
  %v80 = vsel %vm51, %v43, 0
  %v83 = vsel %vm51, %v44, 0
  %v86 = vsel %vm51, %v45, 0
  %v89 = vsel %vm51, %v46, 0
  %v92 = vsel %vm51, %v47, 0
  %v95 = vsel %vm51, %v48, 0
  %v98 = vsel %vm51, %v49, 0
  %vm100 = vcmask 1043456
  %v102 = vsel %vm100, %v50, 0
  %104 = vmatprep.subr.mxu0 0.0
  %105 = vmatpush1.msra.mxu0 %v102
  %106 = vmatprep.subr.mxu0 0.0
  %107 = vmatpush1.msra.mxu0 0.0
  %108 = vmatprep.subr.mxu0 0.0
  %109 = vmatpush1.msra.mxu0 0.0
  %110 = vmatprep.subr.mxu0 0.0
  %111 = vmatpush1.msra.mxu0 0.0
  %112 = vmatprep.subr.mxu0 0.0
  %113 = vmatpush1.msra.mxu0 0.0
  %114 = vmatprep.subr.mxu0 0.0
  %115 = vmatpush1.msra.mxu0 0.0
  %116 = vmatprep.subr.mxu0 0.0
  %117 = vmatpush1.msra.mxu0 0.0
  %118 = vmatprep.subr.mxu0 0.0
  %119 = vmatpush1.msra.mxu0 0.0
  %120 = vmatprep.subr.mxu0 0.0
  %121 = vmatpush1.msra.mxu0 0.0
  %122 = vmatprep.subr.mxu0 0.0
  %123 = vmatpush1.msra.mxu0 0.0
  %124 = vmatprep.subr.mxu0 0.0
  %125 = vmatpush1.msra.mxu0 0.0
  %126 = vmatprep.subr.mxu0 0.0
  %127 = vmatpush1.msra.mxu0 0.0
  %128 = vmatprep.subr.mxu0 0.0
  %129 = vmatpush1.msra.mxu0 0.0
  %130 = vmatprep.subr.mxu0 0.0
  %131 = vmatpush1.msra.mxu0 0.0
  %132 = vmatprep.subr.mxu0 0.0
  %133 = vmatpush1.msra.mxu0 0.0
  %134 = vmatprep.subr.mxu0 0.0
  %135 = vmatpush1.msra.mxu0 0.0
  %136 = vmatprep.subr.mxu0 0.0
  %137 = vmatpush1.msra.mxu0 0.0
  %138 = vmatprep.subr.mxu0 0.0
  %139 = vmatpush1.msra.mxu0 0.0
  %140 = vmatprep.subr.mxu0 0.0
  %141 = vmatpush1.msra.mxu0 0.0
  %142 = vmatprep.subr.mxu0 0.0
  %143 = vmatpush1.msra.mxu0 0.0
  %144 = vmatprep.subr.mxu0 0.0
  %145 = vmatpush1.msra.mxu0 0.0
  %146 = vmatprep.subr.mxu0 0.0
  %147 = vmatpush1.msra.mxu0 0.0
  %148 = vmatprep.subr.mxu0 0.0
  %149 = vmatpush1.msra.mxu0 0.0
  %150 = vmatprep.subr.mxu0 0.0
  %151 = vmatpush1.msra.mxu0 0.0
  %152 = vmatprep.subr.mxu0 0.0
  %153 = vmatpush1.msra.mxu0 0.0
  %154 = vmatprep.subr.mxu0 0.0
  %155 = vmatpush1.msra.mxu0 0.0
  %156 = vmatprep.subr.mxu0 0.0
  %157 = vmatpush1.msra.mxu0 0.0
  %158 = vmatprep.subr.mxu0 0.0
  %159 = vmatpush1.msra.mxu0 0.0
  %160 = vmatprep.subr.mxu0 0.0
  %161 = vmatpush1.msra.mxu0 0.0
  %162 = vmatprep.subr.mxu0 0.0
  %163 = vmatpush1.msra.mxu0 0.0
  %164 = vmatprep.subr.mxu0 0.0
  %165 = vmatpush1.msra.mxu0 0.0
  %166 = vmatprep.subr.mxu0 0.0
  %167 = vmatpush1.msra.mxu0 0.0
  %168 = vmatprep.mubr.f32.mxu0 0.0
  %169 = vmatmul.mubr.f32.gmra.mrb[0].mxu0 %v53
  %v170 = vpop.f32.mrb[0].mxu0
  %v171 = vadd.f32 0.0, %v170
  %v172 = vpop.f32.mrb[0].mxu0
  %173 = vmatprep.mubr.f32.mxu0 0.0
  %174 = vmatmul.mubr.f32.gmra.mrb[0].mxu0 %v56
  %v175 = vpop.f32.mrb[0].mxu0
  %v176 = vadd.f32 0.0, %v175
  %v177 = vpop.f32.mrb[0].mxu0
  %178 = vmatprep.mubr.f32.mxu0 0.0
  %179 = vmatmul.mubr.f32.gmra.mrb[0].mxu0 %v59
  %v180 = vpop.f32.mrb[0].mxu0
  %v181 = vadd.f32 0.0, %v180
  %v182 = vpop.f32.mrb[0].mxu0
  %183 = vmatprep.mubr.f32.mxu0 0.0
  %184 = vmatmul.mubr.f32.gmra.mrb[0].mxu0 %v62
  %v185 = vpop.f32.mrb[0].mxu0
  %v186 = vadd.f32 0.0, %v185
  %v187 = vpop.f32.mrb[0].mxu0
  %188 = vmatprep.mubr.f32.mxu0 0.0
  %189 = vmatmul.mubr.f32.gmra.mrb[0].mxu0 %v65
  %v190 = vpop.f32.mrb[0].mxu0
  %v191 = vadd.f32 0.0, %v190
  %v192 = vpop.f32.mrb[0].mxu0
  %193 = vmatprep.mubr.f32.mxu0 0.0
  %194 = vmatmul.mubr.f32.gmra.mrb[0].mxu0 %v68
  %v195 = vpop.f32.mrb[0].mxu0
  %v196 = vadd.f32 0.0, %v195
  %v197 = vpop.f32.mrb[0].mxu0
  %198 = vmatprep.mubr.f32.mxu0 0.0
  %199 = vmatmul.mubr.f32.gmra.mrb[0].mxu0 %v71
  %v200 = vpop.f32.mrb[0].mxu0
  %v201 = vadd.f32 0.0, %v200
  %v202 = vpop.f32.mrb[0].mxu0
  %203 = vmatprep.mubr.f32.mxu0 0.0
  %204 = vmatmul.mubr.f32.gmra.mrb[0].mxu0 %v74
  %v205 = vpop.f32.mrb[0].mxu0
  %v206 = vadd.f32 0.0, %v205
  %v207 = vpop.f32.mrb[0].mxu0
  %208 = vmatprep.mubr.f32.mxu0 0.0
  %209 = vmatmul.mubr.f32.gmra.mrb[0].mxu0 %v77
  %v210 = vpop.f32.mrb[0].mxu0
  %v211 = vadd.f32 0.0, %v210
  %v212 = vpop.f32.mrb[0].mxu0
  %213 = vmatprep.mubr.f32.mxu0 0.0
  %214 = vmatmul.mubr.f32.gmra.mrb[0].mxu0 %v80
  %v215 = vpop.f32.mrb[0].mxu0
  %v216 = vadd.f32 0.0, %v215
  %v217 = vpop.f32.mrb[0].mxu0
  %218 = vmatprep.mubr.f32.mxu0 0.0
  %219 = vmatmul.mubr.f32.gmra.mrb[0].mxu0 %v83
  %v220 = vpop.f32.mrb[0].mxu0
  %v221 = vadd.f32 0.0, %v220
  %v222 = vpop.f32.mrb[0].mxu0
  %223 = vmatprep.mubr.f32.mxu0 0.0
  %224 = vmatmul.mubr.f32.gmra.mrb[0].mxu0 %v86
  %v225 = vpop.f32.mrb[0].mxu0
  %v226 = vadd.f32 0.0, %v225
  %v227 = vpop.f32.mrb[0].mxu0
  %228 = vmatprep.mubr.f32.mxu0 0.0
  %229 = vmatmul.mubr.f32.gmra.mrb[0].mxu0 %v89
  %v230 = vpop.f32.mrb[0].mxu0
  %v231 = vadd.f32 0.0, %v230
  %v232 = vpop.f32.mrb[0].mxu0
  %233 = vmatprep.mubr.f32.mxu0 0.0
  %234 = vmatmul.mubr.f32.gmra.mrb[0].mxu0 %v92
  %v235 = vpop.f32.mrb[0].mxu0
  %v236 = vadd.f32 0.0, %v235
  %v237 = vpop.f32.mrb[0].mxu0
  %238 = vmatprep.mubr.f32.mxu0 0.0
  %239 = vmatmul.mubr.f32.gmra.mrb[0].mxu0 %v95
  %v240 = vpop.f32.mrb[0].mxu0
  %v241 = vadd.f32 0.0, %v240
  %v242 = vpop.f32.mrb[0].mxu0
  %243 = vmatprep.mubr.f32.mxu0 0.0
  %244 = vmatmul.mubr.f32.gmra.mrb[0].mxu0 %v98
  %v245 = vpop.f32.mrb[0].mxu0
  %v246 = vadd.f32 0.0, %v245
  %v247 = vpop.f32.mrb[0].mxu0
  %248 = vdwg.mxu0
  %vm249 = vcmask 64512
  %v251 = vsel %vm249, %v17, 0
  %v254 = vsel %vm249, %v18, 0
  %v257 = vsel %vm249, %v19, 0
  %v260 = vsel %vm249, %v20, 0
  %v263 = vsel %vm249, %v21, 0
  %v266 = vsel %vm249, %v22, 0
  %v269 = vsel %vm249, %v23, 0
  %v272 = vsel %vm249, %v24, 0
  %v275 = vsel %vm249, %v25, 0
  %v278 = vsel %vm249, %v26, 0
  %v281 = vsel %vm249, %v27, 0
  %v284 = vsel %vm249, %v28, 0
  %v287 = vsel %vm249, %v29, 0
  %v290 = vsel %vm249, %v30, 0
  %v293 = vsel %vm249, %v31, 0
  %v296 = vsel %vm249, %v32, 0
  %298 = vmatprep.subr.mxu0 0.0
  %299 = vmatpush1.msra.mxu0 %v33
  %300 = vmatprep.subr.mxu0 0.0
  %301 = vmatpush1.msra.mxu0 0.0
  %302 = vmatprep.subr.mxu0 0.0
  %303 = vmatpush1.msra.mxu0 0.0
  %304 = vmatprep.subr.mxu0 0.0
  %305 = vmatpush1.msra.mxu0 0.0
  %306 = vmatprep.subr.mxu0 0.0
  %307 = vmatpush1.msra.mxu0 0.0
  %308 = vmatprep.subr.mxu0 0.0
  %309 = vmatpush1.msra.mxu0 0.0
  %310 = vmatprep.subr.mxu0 0.0
  %311 = vmatpush1.msra.mxu0 0.0
  %312 = vmatprep.subr.mxu0 0.0
  %313 = vmatpush1.msra.mxu0 0.0
  %314 = vmatprep.subr.mxu0 0.0
  %315 = vmatpush1.msra.mxu0 0.0
  %316 = vmatprep.subr.mxu0 0.0
  %317 = vmatpush1.msra.mxu0 0.0
  %318 = vmatprep.subr.mxu0 0.0
  %319 = vmatpush1.msra.mxu0 0.0
  %320 = vmatprep.subr.mxu0 0.0
  %321 = vmatpush1.msra.mxu0 0.0
  %322 = vmatprep.subr.mxu0 0.0
  %323 = vmatpush1.msra.mxu0 0.0
  %324 = vmatprep.subr.mxu0 0.0
  %325 = vmatpush1.msra.mxu0 0.0
  %326 = vmatprep.subr.mxu0 0.0
  %327 = vmatpush1.msra.mxu0 0.0
  %328 = vmatprep.subr.mxu0 0.0
  %329 = vmatpush1.msra.mxu0 0.0
  %330 = vmatprep.subr.mxu0 0.0
  %331 = vmatpush1.msra.mxu0 0.0
  %332 = vmatprep.subr.mxu0 0.0
  %333 = vmatpush1.msra.mxu0 0.0
  %334 = vmatprep.subr.mxu0 0.0
  %335 = vmatpush1.msra.mxu0 0.0
  %336 = vmatprep.subr.mxu0 0.0
  %337 = vmatpush1.msra.mxu0 0.0
  %338 = vmatprep.subr.mxu0 0.0
  %339 = vmatpush1.msra.mxu0 0.0
  %340 = vmatprep.subr.mxu0 0.0
  %341 = vmatpush1.msra.mxu0 0.0
  %342 = vmatprep.subr.mxu0 0.0
  %343 = vmatpush1.msra.mxu0 0.0
  %344 = vmatprep.subr.mxu0 0.0
  %345 = vmatpush1.msra.mxu0 0.0
  %346 = vmatprep.subr.mxu0 0.0
  %347 = vmatpush1.msra.mxu0 0.0
  %348 = vmatprep.subr.mxu0 0.0
  %349 = vmatpush1.msra.mxu0 0.0
  %350 = vmatprep.subr.mxu0 0.0
  %351 = vmatpush1.msra.mxu0 0.0
  %352 = vmatprep.subr.mxu0 0.0
  %353 = vmatpush1.msra.mxu0 0.0
  %354 = vmatprep.subr.mxu0 0.0
  %355 = vmatpush1.msra.mxu0 0.0
  %356 = vmatprep.subr.mxu0 0.0
  %357 = vmatpush1.msra.mxu0 0.0
  %358 = vmatprep.subr.mxu0 0.0
  %359 = vmatpush1.msra.mxu0 0.0
  %360 = vmatprep.subr.mxu0 0.0
  %361 = vmatpush1.msra.mxu0 0.0
  %362 = vmatprep.mubr.f32.mxu0 0.0
  %363 = vmatmul.mubr.f32.gmra.mrb[0].mxu0 %v251
  %v364 = vpop.f32.mrb[0].mxu0
  %v365 = vadd.f32 %v171, %v364
  %v366 = vpop.f32.mrb[0].mxu0
  %367 = vmatprep.mubr.f32.mxu0 0.0
  %368 = vmatmul.mubr.f32.gmra.mrb[0].mxu0 %v254
  %v369 = vpop.f32.mrb[0].mxu0
  %v370 = vadd.f32 %v176, %v369
  %v371 = vpop.f32.mrb[0].mxu0
  %372 = vmatprep.mubr.f32.mxu0 0.0
  %373 = vmatmul.mubr.f32.gmra.mrb[0].mxu0 %v257
  %v374 = vpop.f32.mrb[0].mxu0
  %v375 = vadd.f32 %v181, %v374
  %v376 = vpop.f32.mrb[0].mxu0
  %377 = vmatprep.mubr.f32.mxu0 0.0
  %378 = vmatmul.mubr.f32.gmra.mrb[0].mxu0 %v260
  %v379 = vpop.f32.mrb[0].mxu0
  %v380 = vadd.f32 %v186, %v379
  %v381 = vpop.f32.mrb[0].mxu0
  %382 = vmatprep.mubr.f32.mxu0 0.0
  %383 = vmatmul.mubr.f32.gmra.mrb[0].mxu0 %v263
  %v384 = vpop.f32.mrb[0].mxu0
  %v385 = vadd.f32 %v191, %v384
  %v386 = vpop.f32.mrb[0].mxu0
  %387 = vmatprep.mubr.f32.mxu0 0.0
  %388 = vmatmul.mubr.f32.gmra.mrb[0].mxu0 %v266
  %v389 = vpop.f32.mrb[0].mxu0
  %v390 = vadd.f32 %v196, %v389
  %v391 = vpop.f32.mrb[0].mxu0
  %392 = vmatprep.mubr.f32.mxu0 0.0
  %393 = vmatmul.mubr.f32.gmra.mrb[0].mxu0 %v269
  %v394 = vpop.f32.mrb[0].mxu0
  %v395 = vadd.f32 %v201, %v394
  %v396 = vpop.f32.mrb[0].mxu0
  %397 = vmatprep.mubr.f32.mxu0 0.0
  %398 = vmatmul.mubr.f32.gmra.mrb[0].mxu0 %v272
  %v399 = vpop.f32.mrb[0].mxu0
  %v400 = vadd.f32 %v206, %v399
  %v401 = vpop.f32.mrb[0].mxu0
  %402 = vmatprep.mubr.f32.mxu0 0.0
  %403 = vmatmul.mubr.f32.gmra.mrb[0].mxu0 %v275
  %v404 = vpop.f32.mrb[0].mxu0
  %v405 = vadd.f32 %v211, %v404
  %v406 = vpop.f32.mrb[0].mxu0
  %407 = vmatprep.mubr.f32.mxu0 0.0
  %408 = vmatmul.mubr.f32.gmra.mrb[0].mxu0 %v278
  %v409 = vpop.f32.mrb[0].mxu0
  %v410 = vadd.f32 %v216, %v409
  %v411 = vpop.f32.mrb[0].mxu0
  %412 = vmatprep.mubr.f32.mxu0 0.0
  %413 = vmatmul.mubr.f32.gmra.mrb[0].mxu0 %v281
  %v414 = vpop.f32.mrb[0].mxu0
  %v415 = vadd.f32 %v221, %v414
  %v416 = vpop.f32.mrb[0].mxu0
  %417 = vmatprep.mubr.f32.mxu0 0.0
  %418 = vmatmul.mubr.f32.gmra.mrb[0].mxu0 %v284
  %v419 = vpop.f32.mrb[0].mxu0
  %v420 = vadd.f32 %v226, %v419
  %v421 = vpop.f32.mrb[0].mxu0
  %422 = vmatprep.mubr.f32.mxu0 0.0
  %423 = vmatmul.mubr.f32.gmra.mrb[0].mxu0 %v287
  %v424 = vpop.f32.mrb[0].mxu0
  %v425 = vadd.f32 %v231, %v424
  %v426 = vpop.f32.mrb[0].mxu0
  %427 = vmatprep.mubr.f32.mxu0 0.0
  %428 = vmatmul.mubr.f32.gmra.mrb[0].mxu0 %v290
  %v429 = vpop.f32.mrb[0].mxu0
  %v430 = vadd.f32 %v236, %v429
  %v431 = vpop.f32.mrb[0].mxu0
  %432 = vmatprep.mubr.f32.mxu0 0.0
  %433 = vmatmul.mubr.f32.gmra.mrb[0].mxu0 %v293
  %v434 = vpop.f32.mrb[0].mxu0
  %v435 = vadd.f32 %v241, %v434
  %v436 = vpop.f32.mrb[0].mxu0
  %437 = vmatprep.mubr.f32.mxu0 0.0
  %438 = vmatmul.mubr.f32.gmra.mrb[0].mxu0 %v296
  %v439 = vpop.f32.mrb[0].mxu0
  %v440 = vadd.f32 %v246, %v439
  %v441 = vpop.f32.mrb[0].mxu0
  %442 = vdwg.mxu0
  %s443 = scalar_lea.vmem %s0, 16
  %v444 = vld [vmem:[%s443] sm:$0xff]
  %v445 = vld [vmem:[%s443 + $0x20] sm:$0xff]
  %v446 = vld [vmem:[%s443 + $0x40] sm:$0xff]
  %v447 = vld [vmem:[%s443 + $0x60] sm:$0xff]
  %v448 = vld [vmem:[%s443 + $0x80] sm:$0xff]
  %v449 = vld [vmem:[%s443 + $0xa0] sm:$0xff]
  %v450 = vld [vmem:[%s443 + $0xc0] sm:$0xff]
  %v451 = vld [vmem:[%s443 + $0xe0] sm:$0xff]
  %v452 = vld [vmem:[%s443 + $0x120] sm:$0xff]
  %v453 = vld [vmem:[%s443 + $0x140] sm:$0xff]
  %v454 = vld [vmem:[%s443 + $0x160] sm:$0xff]
  %v455 = vld [vmem:[%s443 + $0x180] sm:$0xff]
  %v456 = vld [vmem:[%s443 + $0x1a0] sm:$0xff]
  %v457 = vld [vmem:[%s443 + $0x1c0] sm:$0xff]
  %v458 = vld [vmem:[%s443 + $0x1e0] sm:$0xff]
  %v459 = vld [vmem:[%s443 + $0x200] sm:$0xff]
  %s460 = scalar_lea.vmem %s1, 8
  %v461 = vld [vmem:[%s460] sm:$0xff]
  %v463 = vsel %vm249, %v444, 0
  %v466 = vsel %vm249, %v445, 0
  %v469 = vsel %vm249, %v446, 0
  %v472 = vsel %vm249, %v447, 0
  %v475 = vsel %vm249, %v448, 0
  %v478 = vsel %vm249, %v449, 0
  %v481 = vsel %vm249, %v450, 0
  %v484 = vsel %vm249, %v451, 0
  %v487 = vsel %vm249, %v452, 0
  %v490 = vsel %vm249, %v453, 0
  %v493 = vsel %vm249, %v454, 0
  %v496 = vsel %vm249, %v455, 0
  %v499 = vsel %vm249, %v456, 0
  %v502 = vsel %vm249, %v457, 0
  %v505 = vsel %vm249, %v458, 0
  %v508 = vsel %vm249, %v459, 0
  %510 = vmatprep.subr.mxu0 0.0
  %511 = vmatpush1.msra.mxu0 %v461
  %512 = vmatprep.subr.mxu0 0.0
  %513 = vmatpush1.msra.mxu0 0.0
  %514 = vmatprep.subr.mxu0 0.0
  %515 = vmatpush1.msra.mxu0 0.0
  %516 = vmatprep.subr.mxu0 0.0
  %517 = vmatpush1.msra.mxu0 0.0
  %518 = vmatprep.subr.mxu0 0.0
  %519 = vmatpush1.msra.mxu0 0.0
  %520 = vmatprep.subr.mxu0 0.0
  %521 = vmatpush1.msra.mxu0 0.0
  %522 = vmatprep.subr.mxu0 0.0
  %523 = vmatpush1.msra.mxu0 0.0
  %524 = vmatprep.subr.mxu0 0.0
  %525 = vmatpush1.msra.mxu0 0.0
  %526 = vmatprep.subr.mxu0 0.0
  %527 = vmatpush1.msra.mxu0 0.0
  %528 = vmatprep.subr.mxu0 0.0
  %529 = vmatpush1.msra.mxu0 0.0
  %530 = vmatprep.subr.mxu0 0.0
  %531 = vmatpush1.msra.mxu0 0.0
  %532 = vmatprep.subr.mxu0 0.0
  %533 = vmatpush1.msra.mxu0 0.0
  %534 = vmatprep.subr.mxu0 0.0
  %535 = vmatpush1.msra.mxu0 0.0
  %536 = vmatprep.subr.mxu0 0.0
  %537 = vmatpush1.msra.mxu0 0.0
  %538 = vmatprep.subr.mxu0 0.0
  %539 = vmatpush1.msra.mxu0 0.0
  %540 = vmatprep.subr.mxu0 0.0
  %541 = vmatpush1.msra.mxu0 0.0
  %542 = vmatprep.subr.mxu0 0.0
  %543 = vmatpush1.msra.mxu0 0.0
  %544 = vmatprep.subr.mxu0 0.0
  %545 = vmatpush1.msra.mxu0 0.0
  %546 = vmatprep.subr.mxu0 0.0
  %547 = vmatpush1.msra.mxu0 0.0
  %548 = vmatprep.subr.mxu0 0.0
  %549 = vmatpush1.msra.mxu0 0.0
  %550 = vmatprep.subr.mxu0 0.0
  %551 = vmatpush1.msra.mxu0 0.0
  %552 = vmatprep.subr.mxu0 0.0
  %553 = vmatpush1.msra.mxu0 0.0
  %554 = vmatprep.subr.mxu0 0.0
  %555 = vmatpush1.msra.mxu0 0.0
  %556 = vmatprep.subr.mxu0 0.0
  %557 = vmatpush1.msra.mxu0 0.0
  %558 = vmatprep.subr.mxu0 0.0
  %559 = vmatpush1.msra.mxu0 0.0
  %560 = vmatprep.subr.mxu0 0.0
  %561 = vmatpush1.msra.mxu0 0.0
  %562 = vmatprep.subr.mxu0 0.0
  %563 = vmatpush1.msra.mxu0 0.0
  %564 = vmatprep.subr.mxu0 0.0
  %565 = vmatpush1.msra.mxu0 0.0
  %566 = vmatprep.subr.mxu0 0.0
  %567 = vmatpush1.msra.mxu0 0.0
  %568 = vmatprep.subr.mxu0 0.0
  %569 = vmatpush1.msra.mxu0 0.0
  %570 = vmatprep.subr.mxu0 0.0
  %571 = vmatpush1.msra.mxu0 0.0
  %572 = vmatprep.subr.mxu0 0.0
  %573 = vmatpush1.msra.mxu0 0.0
  %574 = vmatprep.mubr.f32.mxu0 0.0
  %575 = vmatmul.mubr.f32.gmra.mrb[0].mxu0 %v463
  %v576 = vpop.f32.mrb[0].mxu0
  %v577 = vadd.f32 0.0, %v576
  %v578 = vpop.f32.mrb[0].mxu0
  %579 = vmatprep.mubr.f32.mxu0 0.0
  %580 = vmatmul.mubr.f32.gmra.mrb[0].mxu0 %v466
  %v581 = vpop.f32.mrb[0].mxu0
  %v582 = vadd.f32 0.0, %v581
  %v583 = vpop.f32.mrb[0].mxu0
  %584 = vmatprep.mubr.f32.mxu0 0.0
  %585 = vmatmul.mubr.f32.gmra.mrb[0].mxu0 %v469
  %v586 = vpop.f32.mrb[0].mxu0
  %v587 = vadd.f32 0.0, %v586
  %v588 = vpop.f32.mrb[0].mxu0
  %589 = vmatprep.mubr.f32.mxu0 0.0
  %590 = vmatmul.mubr.f32.gmra.mrb[0].mxu0 %v472
  %v591 = vpop.f32.mrb[0].mxu0
  %v592 = vadd.f32 0.0, %v591
  %v593 = vpop.f32.mrb[0].mxu0
  %594 = vmatprep.mubr.f32.mxu0 0.0
  %595 = vmatmul.mubr.f32.gmra.mrb[0].mxu0 %v475
  %v596 = vpop.f32.mrb[0].mxu0
  %v597 = vadd.f32 0.0, %v596
  %v598 = vpop.f32.mrb[0].mxu0
  %599 = vmatprep.mubr.f32.mxu0 0.0
  %600 = vmatmul.mubr.f32.gmra.mrb[0].mxu0 %v478
  %v601 = vpop.f32.mrb[0].mxu0
  %v602 = vadd.f32 0.0, %v601
  %v603 = vpop.f32.mrb[0].mxu0
  %604 = vmatprep.mubr.f32.mxu0 0.0
  %605 = vmatmul.mubr.f32.gmra.mrb[0].mxu0 %v481
  %v606 = vpop.f32.mrb[0].mxu0
  %v607 = vadd.f32 0.0, %v606
  %v608 = vpop.f32.mrb[0].mxu0
  %609 = vmatprep.mubr.f32.mxu0 0.0
  %610 = vmatmul.mubr.f32.gmra.mrb[0].mxu0 %v484
  %v611 = vpop.f32.mrb[0].mxu0
  %v612 = vadd.f32 0.0, %v611
  %v613 = vpop.f32.mrb[0].mxu0
  %614 = vmatprep.mubr.f32.mxu0 0.0
  %615 = vmatmul.mubr.f32.gmra.mrb[0].mxu0 %v487
  %v616 = vpop.f32.mrb[0].mxu0
  %v617 = vadd.f32 0.0, %v616
  %v618 = vpop.f32.mrb[0].mxu0
  %619 = vmatprep.mubr.f32.mxu0 0.0
  %620 = vmatmul.mubr.f32.gmra.mrb[0].mxu0 %v490
  %v621 = vpop.f32.mrb[0].mxu0
  %v622 = vadd.f32 0.0, %v621
  %v623 = vpop.f32.mrb[0].mxu0
  %624 = vmatprep.mubr.f32.mxu0 0.0
  %625 = vmatmul.mubr.f32.gmra.mrb[0].mxu0 %v493
  %v626 = vpop.f32.mrb[0].mxu0
  %v627 = vadd.f32 0.0, %v626
  %v628 = vpop.f32.mrb[0].mxu0
  %629 = vmatprep.mubr.f32.mxu0 0.0
  %630 = vmatmul.mubr.f32.gmra.mrb[0].mxu0 %v496
  %v631 = vpop.f32.mrb[0].mxu0
  %v632 = vadd.f32 0.0, %v631
  %v633 = vpop.f32.mrb[0].mxu0
  %634 = vmatprep.mubr.f32.mxu0 0.0
  %635 = vmatmul.mubr.f32.gmra.mrb[0].mxu0 %v499
  %v636 = vpop.f32.mrb[0].mxu0
  %v637 = vadd.f32 0.0, %v636
  %v638 = vpop.f32.mrb[0].mxu0
  %639 = vmatprep.mubr.f32.mxu0 0.0
  %640 = vmatmul.mubr.f32.gmra.mrb[0].mxu0 %v502
  %v641 = vpop.f32.mrb[0].mxu0
  %v642 = vadd.f32 0.0, %v641
  %v643 = vpop.f32.mrb[0].mxu0
  %644 = vmatprep.mubr.f32.mxu0 0.0
  %645 = vmatmul.mubr.f32.gmra.mrb[0].mxu0 %v505
  %v646 = vpop.f32.mrb[0].mxu0
  %v647 = vadd.f32 0.0, %v646
  %v648 = vpop.f32.mrb[0].mxu0
  %649 = vmatprep.mubr.f32.mxu0 0.0
  %650 = vmatmul.mubr.f32.gmra.mrb[0].mxu0 %v508
  %v651 = vpop.f32.mrb[0].mxu0
  %v652 = vadd.f32 0.0, %v651
  %v653 = vpop.f32.mrb[0].mxu0
  %654 = vdwg.mxu0
  %v655 = vadd.f32 %v365, %v577
  %v656 = vadd.f32 %v370, %v582
  %v657 = vadd.f32 %v375, %v587
  %v658 = vadd.f32 %v380, %v592
  %v659 = vadd.f32 %v385, %v597
  %v660 = vadd.f32 %v390, %v602
  %v661 = vadd.f32 %v395, %v607
  %v662 = vadd.f32 %v400, %v612
  %v663 = vadd.f32 %v405, %v617
  %v664 = vadd.f32 %v410, %v622
  %v665 = vadd.f32 %v415, %v627
  %v666 = vadd.f32 %v420, %v632
  %v667 = vadd.f32 %v425, %v637
  %v668 = vadd.f32 %v430, %v642
  %v669 = vadd.f32 %v435, %v647
  %v670 = vadd.f32 %v440, %v652
  %v671 = vld [vmem:[%s443 + $0x1] sm:$0xff]
  %v672 = vld [vmem:[%s443 + $0x21] sm:$0xff]
  %v673 = vld [vmem:[%s443 + $0x41] sm:$0xff]
  %v674 = vld [vmem:[%s443 + $0x61] sm:$0xff]
  %v675 = vld [vmem:[%s443 + $0x81] sm:$0xff]
  %v676 = vld [vmem:[%s443 + $0xa1] sm:$0xff]
  %v677 = vld [vmem:[%s443 + $0xc1] sm:$0xff]
  %v678 = vld [vmem:[%s443 + $0xe1] sm:$0xff]
  %v679 = vld [vmem:[%s443 + $0x121] sm:$0xff]
  %v680 = vld [vmem:[%s443 + $0x141] sm:$0xff]
  %v681 = vld [vmem:[%s443 + $0x161] sm:$0xff]
  %v682 = vld [vmem:[%s443 + $0x181] sm:$0xff]
  %v683 = vld [vmem:[%s443 + $0x1a1] sm:$0xff]
  %v684 = vld [vmem:[%s443 + $0x1c1] sm:$0xff]
  %v685 = vld [vmem:[%s443 + $0x1e1] sm:$0xff]
  %v686 = vld [vmem:[%s443 + $0x201] sm:$0xff]
  %s687 = scalar_lea.vmem %s2, 4
  %v688 = vld [vmem:[%s687] sm:$0xf]
  %v690 = vsel %vm51, %v671, 0
  %v693 = vsel %vm51, %v672, 0
  %v696 = vsel %vm51, %v673, 0
  %v699 = vsel %vm51, %v674, 0
  %v702 = vsel %vm51, %v675, 0
  %v705 = vsel %vm51, %v676, 0
  %v708 = vsel %vm51, %v677, 0
  %v711 = vsel %vm51, %v678, 0
  %v714 = vsel %vm51, %v679, 0
  %v717 = vsel %vm51, %v680, 0
  %v720 = vsel %vm51, %v681, 0
  %v723 = vsel %vm51, %v682, 0
  %v726 = vsel %vm51, %v683, 0
  %v729 = vsel %vm51, %v684, 0
  %v732 = vsel %vm51, %v685, 0
  %v735 = vsel %vm51, %v686, 0
  %v738 = vsel %vm100, %v688, 0
  %740 = vmatprep.subr.mxu0 0.0
  %741 = vmatpush1.msra.mxu0 %v738
  %742 = vmatprep.subr.mxu0 0.0
  %743 = vmatpush1.msra.mxu0 0.0
  %744 = vmatprep.subr.mxu0 0.0
  %745 = vmatpush1.msra.mxu0 0.0
  %746 = vmatprep.subr.mxu0 0.0
  %747 = vmatpush1.msra.mxu0 0.0
  %748 = vmatprep.subr.mxu0 0.0
  %749 = vmatpush1.msra.mxu0 0.0
  %750 = vmatprep.subr.mxu0 0.0
  %751 = vmatpush1.msra.mxu0 0.0
  %752 = vmatprep.subr.mxu0 0.0
  %753 = vmatpush1.msra.mxu0 0.0
  %754 = vmatprep.subr.mxu0 0.0
  %755 = vmatpush1.msra.mxu0 0.0
  %756 = vmatprep.subr.mxu0 0.0
  %757 = vmatpush1.msra.mxu0 0.0
  %758 = vmatprep.subr.mxu0 0.0
  %759 = vmatpush1.msra.mxu0 0.0
  %760 = vmatprep.subr.mxu0 0.0
  %761 = vmatpush1.msra.mxu0 0.0
  %762 = vmatprep.subr.mxu0 0.0
  %763 = vmatpush1.msra.mxu0 0.0
  %764 = vmatprep.subr.mxu0 0.0
  %765 = vmatpush1.msra.mxu0 0.0
  %766 = vmatprep.subr.mxu0 0.0
  %767 = vmatpush1.msra.mxu0 0.0
  %768 = vmatprep.subr.mxu0 0.0
  %769 = vmatpush1.msra.mxu0 0.0
  %770 = vmatprep.subr.mxu0 0.0
  %771 = vmatpush1.msra.mxu0 0.0
  %772 = vmatprep.subr.mxu0 0.0
  %773 = vmatpush1.msra.mxu0 0.0
  %774 = vmatprep.subr.mxu0 0.0
  %775 = vmatpush1.msra.mxu0 0.0
  %776 = vmatprep.subr.mxu0 0.0
  %777 = vmatpush1.msra.mxu0 0.0
  %778 = vmatprep.subr.mxu0 0.0
  %779 = vmatpush1.msra.mxu0 0.0
  %780 = vmatprep.subr.mxu0 0.0
  %781 = vmatpush1.msra.mxu0 0.0
  %782 = vmatprep.subr.mxu0 0.0
  %783 = vmatpush1.msra.mxu0 0.0
  %784 = vmatprep.subr.mxu0 0.0
  %785 = vmatpush1.msra.mxu0 0.0
  %786 = vmatprep.subr.mxu0 0.0
  %787 = vmatpush1.msra.mxu0 0.0
  %788 = vmatprep.subr.mxu0 0.0
  %789 = vmatpush1.msra.mxu0 0.0
  %790 = vmatprep.subr.mxu0 0.0
  %791 = vmatpush1.msra.mxu0 0.0
  %792 = vmatprep.subr.mxu0 0.0
  %793 = vmatpush1.msra.mxu0 0.0
  %794 = vmatprep.subr.mxu0 0.0
  %795 = vmatpush1.msra.mxu0 0.0
  %796 = vmatprep.subr.mxu0 0.0
  %797 = vmatpush1.msra.mxu0 0.0
  %798 = vmatprep.subr.mxu0 0.0
  %799 = vmatpush1.msra.mxu0 0.0
  %800 = vmatprep.subr.mxu0 0.0
  %801 = vmatpush1.msra.mxu0 0.0
  %802 = vmatprep.subr.mxu0 0.0
  %803 = vmatpush1.msra.mxu0 0.0
  %804 = vmatprep.mubr.f32.mxu0 0.0
  %805 = vmatmul.mubr.f32.gmra.mrb[0].mxu0 %v690
  %v806 = vpop.f32.mrb[0].mxu0
  %v807 = vadd.f32 0.0, %v806
  %v808 = vpop.f32.mrb[0].mxu0
  %809 = vmatprep.mubr.f32.mxu0 0.0
  %810 = vmatmul.mubr.f32.gmra.mrb[0].mxu0 %v693
  %v811 = vpop.f32.mrb[0].mxu0
  %v812 = vadd.f32 0.0, %v811
  %v813 = vpop.f32.mrb[0].mxu0
  %814 = vmatprep.mubr.f32.mxu0 0.0
  %815 = vmatmul.mubr.f32.gmra.mrb[0].mxu0 %v696
  %v816 = vpop.f32.mrb[0].mxu0
  %v817 = vadd.f32 0.0, %v816
  %v818 = vpop.f32.mrb[0].mxu0
  %819 = vmatprep.mubr.f32.mxu0 0.0
  %820 = vmatmul.mubr.f32.gmra.mrb[0].mxu0 %v699
  %v821 = vpop.f32.mrb[0].mxu0
  %v822 = vadd.f32 0.0, %v821
  %v823 = vpop.f32.mrb[0].mxu0
  %824 = vmatprep.mubr.f32.mxu0 0.0
  %825 = vmatmul.mubr.f32.gmra.mrb[0].mxu0 %v702
  %v826 = vpop.f32.mrb[0].mxu0
  %v827 = vadd.f32 0.0, %v826
  %v828 = vpop.f32.mrb[0].mxu0
  %829 = vmatprep.mubr.f32.mxu0 0.0
  %830 = vmatmul.mubr.f32.gmra.mrb[0].mxu0 %v705
  %v831 = vpop.f32.mrb[0].mxu0
  %v832 = vadd.f32 0.0, %v831
  %v833 = vpop.f32.mrb[0].mxu0
  %834 = vmatprep.mubr.f32.mxu0 0.0
  %835 = vmatmul.mubr.f32.gmra.mrb[0].mxu0 %v708
  %v836 = vpop.f32.mrb[0].mxu0
  %v837 = vadd.f32 0.0, %v836
  %v838 = vpop.f32.mrb[0].mxu0
  %839 = vmatprep.mubr.f32.mxu0 0.0
  %840 = vmatmul.mubr.f32.gmra.mrb[0].mxu0 %v711
  %v841 = vpop.f32.mrb[0].mxu0
  %v842 = vadd.f32 0.0, %v841
  %v843 = vpop.f32.mrb[0].mxu0
  %844 = vmatprep.mubr.f32.mxu0 0.0
  %845 = vmatmul.mubr.f32.gmra.mrb[0].mxu0 %v714
  %v846 = vpop.f32.mrb[0].mxu0
  %v847 = vadd.f32 0.0, %v846
  %v848 = vpop.f32.mrb[0].mxu0
  %849 = vmatprep.mubr.f32.mxu0 0.0
  %850 = vmatmul.mubr.f32.gmra.mrb[0].mxu0 %v717
  %v851 = vpop.f32.mrb[0].mxu0
  %v852 = vadd.f32 0.0, %v851
  %v853 = vpop.f32.mrb[0].mxu0
  %854 = vmatprep.mubr.f32.mxu0 0.0
  %855 = vmatmul.mubr.f32.gmra.mrb[0].mxu0 %v720
  %v856 = vpop.f32.mrb[0].mxu0
  %v857 = vadd.f32 0.0, %v856
  %v858 = vpop.f32.mrb[0].mxu0
  %859 = vmatprep.mubr.f32.mxu0 0.0
  %860 = vmatmul.mubr.f32.gmra.mrb[0].mxu0 %v723
  %v861 = vpop.f32.mrb[0].mxu0
  %v862 = vadd.f32 0.0, %v861
  %v863 = vpop.f32.mrb[0].mxu0
  %864 = vmatprep.mubr.f32.mxu0 0.0
  %865 = vmatmul.mubr.f32.gmra.mrb[0].mxu0 %v726
  %v866 = vpop.f32.mrb[0].mxu0
  %v867 = vadd.f32 0.0, %v866
  %v868 = vpop.f32.mrb[0].mxu0
  %869 = vmatprep.mubr.f32.mxu0 0.0
  %870 = vmatmul.mubr.f32.gmra.mrb[0].mxu0 %v729
  %v871 = vpop.f32.mrb[0].mxu0
  %v872 = vadd.f32 0.0, %v871
  %v873 = vpop.f32.mrb[0].mxu0
  %874 = vmatprep.mubr.f32.mxu0 0.0
  %875 = vmatmul.mubr.f32.gmra.mrb[0].mxu0 %v732
  %v876 = vpop.f32.mrb[0].mxu0
  %v877 = vadd.f32 0.0, %v876
  %v878 = vpop.f32.mrb[0].mxu0
  %879 = vmatprep.mubr.f32.mxu0 0.0
  %880 = vmatmul.mubr.f32.gmra.mrb[0].mxu0 %v735
  %v881 = vpop.f32.mrb[0].mxu0
  %v882 = vadd.f32 0.0, %v881
  %v883 = vpop.f32.mrb[0].mxu0
  %884 = vdwg.mxu0
  %v885 = vadd.f32 %v655, %v807
  %v886 = vadd.f32 %v656, %v812
  %v887 = vadd.f32 %v657, %v817
  %v888 = vadd.f32 %v658, %v822
  %v889 = vadd.f32 %v659, %v827
  %v890 = vadd.f32 %v660, %v832
  %v891 = vadd.f32 %v661, %v837
  %v892 = vadd.f32 %v662, %v842
  %v893 = vadd.f32 %v663, %v847
  %v894 = vadd.f32 %v664, %v852
  %v895 = vadd.f32 %v665, %v857
  %v896 = vadd.f32 %v666, %v862
  %v897 = vadd.f32 %v667, %v867
  %v898 = vadd.f32 %v668, %v872
  %v899 = vadd.f32 %v669, %v877
  %v900 = vadd.f32 %v670, %v882
  %s901 = scalar_lea.vmem %s0, 32
  %v902 = vld [vmem:[%s901] sm:$0xff]
  %v903 = vld [vmem:[%s901 + $0x20] sm:$0xff]
  %v904 = vld [vmem:[%s901 + $0x40] sm:$0xff]
  %v905 = vld [vmem:[%s901 + $0x60] sm:$0xff]
  %v906 = vld [vmem:[%s901 + $0x80] sm:$0xff]
  %v907 = vld [vmem:[%s901 + $0xa0] sm:$0xff]
  %v908 = vld [vmem:[%s901 + $0xc0] sm:$0xff]
  %v909 = vld [vmem:[%s901 + $0xe0] sm:$0xff]
  %v910 = vld [vmem:[%s901 + $0x120] sm:$0xff]
  %v911 = vld [vmem:[%s901 + $0x140] sm:$0xff]
  %v912 = vld [vmem:[%s901 + $0x160] sm:$0xff]
  %v913 = vld [vmem:[%s901 + $0x180] sm:$0xff]
  %v914 = vld [vmem:[%s901 + $0x1a0] sm:$0xff]
  %v915 = vld [vmem:[%s901 + $0x1c0] sm:$0xff]
  %v916 = vld [vmem:[%s901 + $0x1e0] sm:$0xff]
  %v917 = vld [vmem:[%s901 + $0x200] sm:$0xff]
  %s918 = scalar_lea.vmem %s1, 16
  %v919 = vld [vmem:[%s918] sm:$0xff]
  %v921 = vsel %vm249, %v902, 0
  %v924 = vsel %vm249, %v903, 0
  %v927 = vsel %vm249, %v904, 0
  %v930 = vsel %vm249, %v905, 0
  %v933 = vsel %vm249, %v906, 0
  %v936 = vsel %vm249, %v907, 0
  %v939 = vsel %vm249, %v908, 0
  %v942 = vsel %vm249, %v909, 0
  %v945 = vsel %vm249, %v910, 0
  %v948 = vsel %vm249, %v911, 0
  %v951 = vsel %vm249, %v912, 0
  %v954 = vsel %vm249, %v913, 0
  %v957 = vsel %vm249, %v914, 0
  %v960 = vsel %vm249, %v915, 0
  %v963 = vsel %vm249, %v916, 0
  %v966 = vsel %vm249, %v917, 0
  %968 = vmatprep.subr.mxu0 0.0
  %969 = vmatpush1.msra.mxu0 %v919
  %970 = vmatprep.subr.mxu0 0.0
  %971 = vmatpush1.msra.mxu0 0.0
  %972 = vmatprep.subr.mxu0 0.0
  %973 = vmatpush1.msra.mxu0 0.0
  %974 = vmatprep.subr.mxu0 0.0
  %975 = vmatpush1.msra.mxu0 0.0
  %976 = vmatprep.subr.mxu0 0.0
  %977 = vmatpush1.msra.mxu0 0.0
  %978 = vmatprep.subr.mxu0 0.0
  %979 = vmatpush1.msra.mxu0 0.0
  %980 = vmatprep.subr.mxu0 0.0
  %981 = vmatpush1.msra.mxu0 0.0
  %982 = vmatprep.subr.mxu0 0.0
  %983 = vmatpush1.msra.mxu0 0.0
  %984 = vmatprep.subr.mxu0 0.0
  %985 = vmatpush1.msra.mxu0 0.0
  %986 = vmatprep.subr.mxu0 0.0
  %987 = vmatpush1.msra.mxu0 0.0
  %988 = vmatprep.subr.mxu0 0.0
  %989 = vmatpush1.msra.mxu0 0.0
  %990 = vmatprep.subr.mxu0 0.0
  %991 = vmatpush1.msra.mxu0 0.0
  %992 = vmatprep.subr.mxu0 0.0
  %993 = vmatpush1.msra.mxu0 0.0
  %994 = vmatprep.subr.mxu0 0.0
  %995 = vmatpush1.msra.mxu0 0.0
  %996 = vmatprep.subr.mxu0 0.0
  %997 = vmatpush1.msra.mxu0 0.0
  %998 = vmatprep.subr.mxu0 0.0
  %999 = vmatpush1.msra.mxu0 0.0
  %1000 = vmatprep.subr.mxu0 0.0
  %1001 = vmatpush1.msra.mxu0 0.0
  %1002 = vmatprep.subr.mxu0 0.0
  %1003 = vmatpush1.msra.mxu0 0.0
  %1004 = vmatprep.subr.mxu0 0.0
  %1005 = vmatpush1.msra.mxu0 0.0
  %1006 = vmatprep.subr.mxu0 0.0
  %1007 = vmatpush1.msra.mxu0 0.0
  %1008 = vmatprep.subr.mxu0 0.0
  %1009 = vmatpush1.msra.mxu0 0.0
  %1010 = vmatprep.subr.mxu0 0.0
  %1011 = vmatpush1.msra.mxu0 0.0
  %1012 = vmatprep.subr.mxu0 0.0
  %1013 = vmatpush1.msra.mxu0 0.0
  %1014 = vmatprep.subr.mxu0 0.0
  %1015 = vmatpush1.msra.mxu0 0.0
  %1016 = vmatprep.subr.mxu0 0.0
  %1017 = vmatpush1.msra.mxu0 0.0
  %1018 = vmatprep.subr.mxu0 0.0
  %1019 = vmatpush1.msra.mxu0 0.0
  %1020 = vmatprep.subr.mxu0 0.0
  %1021 = vmatpush1.msra.mxu0 0.0
  %1022 = vmatprep.subr.mxu0 0.0
  %1023 = vmatpush1.msra.mxu0 0.0
  %1024 = vmatprep.subr.mxu0 0.0
  %1025 = vmatpush1.msra.mxu0 0.0
  %1026 = vmatprep.subr.mxu0 0.0
  %1027 = vmatpush1.msra.mxu0 0.0
  %1028 = vmatprep.subr.mxu0 0.0
  %1029 = vmatpush1.msra.mxu0 0.0
  %1030 = vmatprep.subr.mxu0 0.0
  %1031 = vmatpush1.msra.mxu0 0.0
  %1032 = vmatprep.mubr.f32.mxu0 0.0
  %1033 = vmatmul.mubr.f32.gmra.mrb[0].mxu0 %v921
  %v1034 = vpop.f32.mrb[0].mxu0
  %v1035 = vadd.f32 0.0, %v1034
  %v1036 = vpop.f32.mrb[0].mxu0
  %1037 = vmatprep.mubr.f32.mxu0 0.0
  %1038 = vmatmul.mubr.f32.gmra.mrb[0].mxu0 %v924
  %v1039 = vpop.f32.mrb[0].mxu0
  %v1040 = vadd.f32 0.0, %v1039
  %v1041 = vpop.f32.mrb[0].mxu0
  %1042 = vmatprep.mubr.f32.mxu0 0.0
  %1043 = vmatmul.mubr.f32.gmra.mrb[0].mxu0 %v927
  %v1044 = vpop.f32.mrb[0].mxu0
  %v1045 = vadd.f32 0.0, %v1044
  %v1046 = vpop.f32.mrb[0].mxu0
  %1047 = vmatprep.mubr.f32.mxu0 0.0
  %1048 = vmatmul.mubr.f32.gmra.mrb[0].mxu0 %v930
  %v1049 = vpop.f32.mrb[0].mxu0
  %v1050 = vadd.f32 0.0, %v1049
  %v1051 = vpop.f32.mrb[0].mxu0
  %1052 = vmatprep.mubr.f32.mxu0 0.0
  %1053 = vmatmul.mubr.f32.gmra.mrb[0].mxu0 %v933
  %v1054 = vpop.f32.mrb[0].mxu0
  %v1055 = vadd.f32 0.0, %v1054
  %v1056 = vpop.f32.mrb[0].mxu0
  %1057 = vmatprep.mubr.f32.mxu0 0.0
  %1058 = vmatmul.mubr.f32.gmra.mrb[0].mxu0 %v936
  %v1059 = vpop.f32.mrb[0].mxu0
  %v1060 = vadd.f32 0.0, %v1059
  %v1061 = vpop.f32.mrb[0].mxu0
  %1062 = vmatprep.mubr.f32.mxu0 0.0
  %1063 = vmatmul.mubr.f32.gmra.mrb[0].mxu0 %v939
  %v1064 = vpop.f32.mrb[0].mxu0
  %v1065 = vadd.f32 0.0, %v1064
  %v1066 = vpop.f32.mrb[0].mxu0
  %1067 = vmatprep.mubr.f32.mxu0 0.0
  %1068 = vmatmul.mubr.f32.gmra.mrb[0].mxu0 %v942
  %v1069 = vpop.f32.mrb[0].mxu0
  %v1070 = vadd.f32 0.0, %v1069
  %v1071 = vpop.f32.mrb[0].mxu0
  %1072 = vmatprep.mubr.f32.mxu0 0.0
  %1073 = vmatmul.mubr.f32.gmra.mrb[0].mxu0 %v945
  %v1074 = vpop.f32.mrb[0].mxu0
  %v1075 = vadd.f32 0.0, %v1074
  %v1076 = vpop.f32.mrb[0].mxu0
  %1077 = vmatprep.mubr.f32.mxu0 0.0
  %1078 = vmatmul.mubr.f32.gmra.mrb[0].mxu0 %v948
  %v1079 = vpop.f32.mrb[0].mxu0
  %v1080 = vadd.f32 0.0, %v1079
  %v1081 = vpop.f32.mrb[0].mxu0
  %1082 = vmatprep.mubr.f32.mxu0 0.0
  %1083 = vmatmul.mubr.f32.gmra.mrb[0].mxu0 %v951
  %v1084 = vpop.f32.mrb[0].mxu0
  %v1085 = vadd.f32 0.0, %v1084
  %v1086 = vpop.f32.mrb[0].mxu0
  %1087 = vmatprep.mubr.f32.mxu0 0.0
  %1088 = vmatmul.mubr.f32.gmra.mrb[0].mxu0 %v954
  %v1089 = vpop.f32.mrb[0].mxu0
  %v1090 = vadd.f32 0.0, %v1089
  %v1091 = vpop.f32.mrb[0].mxu0
  %1092 = vmatprep.mubr.f32.mxu0 0.0
  %1093 = vmatmul.mubr.f32.gmra.mrb[0].mxu0 %v957
  %v1094 = vpop.f32.mrb[0].mxu0
  %v1095 = vadd.f32 0.0, %v1094
  %v1096 = vpop.f32.mrb[0].mxu0
  %1097 = vmatprep.mubr.f32.mxu0 0.0
  %1098 = vmatmul.mubr.f32.gmra.mrb[0].mxu0 %v960
  %v1099 = vpop.f32.mrb[0].mxu0
  %v1100 = vadd.f32 0.0, %v1099
  %v1101 = vpop.f32.mrb[0].mxu0
  %1102 = vmatprep.mubr.f32.mxu0 0.0
  %1103 = vmatmul.mubr.f32.gmra.mrb[0].mxu0 %v963
  %v1104 = vpop.f32.mrb[0].mxu0
  %v1105 = vadd.f32 0.0, %v1104
  %v1106 = vpop.f32.mrb[0].mxu0
  %1107 = vmatprep.mubr.f32.mxu0 0.0
  %1108 = vmatmul.mubr.f32.gmra.mrb[0].mxu0 %v966
  %v1109 = vpop.f32.mrb[0].mxu0
  %v1110 = vadd.f32 0.0, %v1109
  %v1111 = vpop.f32.mrb[0].mxu0
  %1112 = vdwg.mxu0
  %v1113 = vadd.f32 %v885, %v1035
  %v1114 = vadd.f32 %v886, %v1040
  %v1115 = vadd.f32 %v887, %v1045
  %v1116 = vadd.f32 %v888, %v1050
  %v1117 = vadd.f32 %v889, %v1055
  %v1118 = vadd.f32 %v890, %v1060
  %v1119 = vadd.f32 %v891, %v1065
  %v1120 = vadd.f32 %v892, %v1070
  %v1121 = vadd.f32 %v893, %v1075
  %v1122 = vadd.f32 %v894, %v1080
  %v1123 = vadd.f32 %v895, %v1085
  %v1124 = vadd.f32 %v896, %v1090
  %v1125 = vadd.f32 %v897, %v1095
  %v1126 = vadd.f32 %v898, %v1100
  %v1127 = vadd.f32 %v899, %v1105
  %v1128 = vadd.f32 %v900, %v1110
  %v1129 = vld [vmem:[%s901 + $0x1] sm:$0xff]
  %v1130 = vld [vmem:[%s901 + $0x21] sm:$0xff]
  %v1131 = vld [vmem:[%s901 + $0x41] sm:$0xff]
  %v1132 = vld [vmem:[%s901 + $0x61] sm:$0xff]
  %v1133 = vld [vmem:[%s901 + $0x81] sm:$0xff]
  %v1134 = vld [vmem:[%s901 + $0xa1] sm:$0xff]
  %v1135 = vld [vmem:[%s901 + $0xc1] sm:$0xff]
  %v1136 = vld [vmem:[%s901 + $0xe1] sm:$0xff]
  %v1137 = vld [vmem:[%s901 + $0x121] sm:$0xff]
  %v1138 = vld [vmem:[%s901 + $0x141] sm:$0xff]
  %v1139 = vld [vmem:[%s901 + $0x161] sm:$0xff]
  %v1140 = vld [vmem:[%s901 + $0x181] sm:$0xff]
  %v1141 = vld [vmem:[%s901 + $0x1a1] sm:$0xff]
  %v1142 = vld [vmem:[%s901 + $0x1c1] sm:$0xff]
  %v1143 = vld [vmem:[%s901 + $0x1e1] sm:$0xff]
  %v1144 = vld [vmem:[%s901 + $0x201] sm:$0xff]
  %s1145 = scalar_lea.vmem %s2, 8
  %v1146 = vld [vmem:[%s1145] sm:$0xf]
  %v1148 = vsel %vm51, %v1129, 0
  %v1151 = vsel %vm51, %v1130, 0
  %v1154 = vsel %vm51, %v1131, 0
  %v1157 = vsel %vm51, %v1132, 0
  %v1160 = vsel %vm51, %v1133, 0
  %v1163 = vsel %vm51, %v1134, 0
  %v1166 = vsel %vm51, %v1135, 0
  %v1169 = vsel %vm51, %v1136, 0
  %v1172 = vsel %vm51, %v1137, 0
  %v1175 = vsel %vm51, %v1138, 0
  %v1178 = vsel %vm51, %v1139, 0
  %v1181 = vsel %vm51, %v1140, 0
  %v1184 = vsel %vm51, %v1141, 0
  %v1187 = vsel %vm51, %v1142, 0
  %v1190 = vsel %vm51, %v1143, 0
  %v1193 = vsel %vm51, %v1144, 0
  %v1196 = vsel %vm100, %v1146, 0
  %1198 = vmatprep.subr.mxu0 0.0
  %1199 = vmatpush1.msra.mxu0 %v1196
  %1200 = vmatprep.subr.mxu0 0.0
  %1201 = vmatpush1.msra.mxu0 0.0
  %1202 = vmatprep.subr.mxu0 0.0
  %1203 = vmatpush1.msra.mxu0 0.0
  %1204 = vmatprep.subr.mxu0 0.0
  %1205 = vmatpush1.msra.mxu0 0.0
  %1206 = vmatprep.subr.mxu0 0.0
  %1207 = vmatpush1.msra.mxu0 0.0
  %1208 = vmatprep.subr.mxu0 0.0
  %1209 = vmatpush1.msra.mxu0 0.0
  %1210 = vmatprep.subr.mxu0 0.0
  %1211 = vmatpush1.msra.mxu0 0.0
  %1212 = vmatprep.subr.mxu0 0.0
  %1213 = vmatpush1.msra.mxu0 0.0
  %1214 = vmatprep.subr.mxu0 0.0
  %1215 = vmatpush1.msra.mxu0 0.0
  %1216 = vmatprep.subr.mxu0 0.0
  %1217 = vmatpush1.msra.mxu0 0.0
  %1218 = vmatprep.subr.mxu0 0.0
  %1219 = vmatpush1.msra.mxu0 0.0
  %1220 = vmatprep.subr.mxu0 0.0
  %1221 = vmatpush1.msra.mxu0 0.0
  %1222 = vmatprep.subr.mxu0 0.0
  %1223 = vmatpush1.msra.mxu0 0.0
  %1224 = vmatprep.subr.mxu0 0.0
  %1225 = vmatpush1.msra.mxu0 0.0
  %1226 = vmatprep.subr.mxu0 0.0
  %1227 = vmatpush1.msra.mxu0 0.0
  %1228 = vmatprep.subr.mxu0 0.0
  %1229 = vmatpush1.msra.mxu0 0.0
  %1230 = vmatprep.subr.mxu0 0.0
  %1231 = vmatpush1.msra.mxu0 0.0
  %1232 = vmatprep.subr.mxu0 0.0
  %1233 = vmatpush1.msra.mxu0 0.0
  %1234 = vmatprep.subr.mxu0 0.0
  %1235 = vmatpush1.msra.mxu0 0.0
  %1236 = vmatprep.subr.mxu0 0.0
  %1237 = vmatpush1.msra.mxu0 0.0
  %1238 = vmatprep.subr.mxu0 0.0
  %1239 = vmatpush1.msra.mxu0 0.0
  %1240 = vmatprep.subr.mxu0 0.0
  %1241 = vmatpush1.msra.mxu0 0.0
  %1242 = vmatprep.subr.mxu0 0.0
  %1243 = vmatpush1.msra.mxu0 0.0
  %1244 = vmatprep.subr.mxu0 0.0
  %1245 = vmatpush1.msra.mxu0 0.0
  %1246 = vmatprep.subr.mxu0 0.0
  %1247 = vmatpush1.msra.mxu0 0.0
  %1248 = vmatprep.subr.mxu0 0.0
  %1249 = vmatpush1.msra.mxu0 0.0
  %1250 = vmatprep.subr.mxu0 0.0
  %1251 = vmatpush1.msra.mxu0 0.0
  %1252 = vmatprep.subr.mxu0 0.0
  %1253 = vmatpush1.msra.mxu0 0.0
  %1254 = vmatprep.subr.mxu0 0.0
  %1255 = vmatpush1.msra.mxu0 0.0
  %1256 = vmatprep.subr.mxu0 0.0
  %1257 = vmatpush1.msra.mxu0 0.0
  %1258 = vmatprep.subr.mxu0 0.0
  %1259 = vmatpush1.msra.mxu0 0.0
  %1260 = vmatprep.subr.mxu0 0.0
  %1261 = vmatpush1.msra.mxu0 0.0
  %1262 = vmatprep.mubr.f32.mxu0 0.0
  %1263 = vmatmul.mubr.f32.gmra.mrb[0].mxu0 %v1148
  %v1264 = vpop.f32.mrb[0].mxu0
  %v1265 = vadd.f32 0.0, %v1264
  %v1266 = vpop.f32.mrb[0].mxu0
  %1267 = vmatprep.mubr.f32.mxu0 0.0
  %1268 = vmatmul.mubr.f32.gmra.mrb[0].mxu0 %v1151
  %v1269 = vpop.f32.mrb[0].mxu0
  %v1270 = vadd.f32 0.0, %v1269
  %v1271 = vpop.f32.mrb[0].mxu0
  %1272 = vmatprep.mubr.f32.mxu0 0.0
  %1273 = vmatmul.mubr.f32.gmra.mrb[0].mxu0 %v1154
  %v1274 = vpop.f32.mrb[0].mxu0
  %v1275 = vadd.f32 0.0, %v1274
  %v1276 = vpop.f32.mrb[0].mxu0
  %1277 = vmatprep.mubr.f32.mxu0 0.0
  %1278 = vmatmul.mubr.f32.gmra.mrb[0].mxu0 %v1157
  %v1279 = vpop.f32.mrb[0].mxu0
  %v1280 = vadd.f32 0.0, %v1279
  %v1281 = vpop.f32.mrb[0].mxu0
  %1282 = vmatprep.mubr.f32.mxu0 0.0
  %1283 = vmatmul.mubr.f32.gmra.mrb[0].mxu0 %v1160
  %v1284 = vpop.f32.mrb[0].mxu0
  %v1285 = vadd.f32 0.0, %v1284
  %v1286 = vpop.f32.mrb[0].mxu0
  %1287 = vmatprep.mubr.f32.mxu0 0.0
  %1288 = vmatmul.mubr.f32.gmra.mrb[0].mxu0 %v1163
  %v1289 = vpop.f32.mrb[0].mxu0
  %v1290 = vadd.f32 0.0, %v1289
  %v1291 = vpop.f32.mrb[0].mxu0
  %1292 = vmatprep.mubr.f32.mxu0 0.0
  %1293 = vmatmul.mubr.f32.gmra.mrb[0].mxu0 %v1166
  %v1294 = vpop.f32.mrb[0].mxu0
  %v1295 = vadd.f32 0.0, %v1294
  %v1296 = vpop.f32.mrb[0].mxu0
  %1297 = vmatprep.mubr.f32.mxu0 0.0
  %1298 = vmatmul.mubr.f32.gmra.mrb[0].mxu0 %v1169
  %v1299 = vpop.f32.mrb[0].mxu0
  %v1300 = vadd.f32 0.0, %v1299
  %v1301 = vpop.f32.mrb[0].mxu0
  %1302 = vmatprep.mubr.f32.mxu0 0.0
  %1303 = vmatmul.mubr.f32.gmra.mrb[0].mxu0 %v1172
  %v1304 = vpop.f32.mrb[0].mxu0
  %v1305 = vadd.f32 0.0, %v1304
  %v1306 = vpop.f32.mrb[0].mxu0
  %1307 = vmatprep.mubr.f32.mxu0 0.0
  %1308 = vmatmul.mubr.f32.gmra.mrb[0].mxu0 %v1175
  %v1309 = vpop.f32.mrb[0].mxu0
  %v1310 = vadd.f32 0.0, %v1309
  %v1311 = vpop.f32.mrb[0].mxu0
  %1312 = vmatprep.mubr.f32.mxu0 0.0
  %1313 = vmatmul.mubr.f32.gmra.mrb[0].mxu0 %v1178
  %v1314 = vpop.f32.mrb[0].mxu0
  %v1315 = vadd.f32 0.0, %v1314
  %v1316 = vpop.f32.mrb[0].mxu0
  %1317 = vmatprep.mubr.f32.mxu0 0.0
  %1318 = vmatmul.mubr.f32.gmra.mrb[0].mxu0 %v1181
  %v1319 = vpop.f32.mrb[0].mxu0
  %v1320 = vadd.f32 0.0, %v1319
  %v1321 = vpop.f32.mrb[0].mxu0
  %1322 = vmatprep.mubr.f32.mxu0 0.0
  %1323 = vmatmul.mubr.f32.gmra.mrb[0].mxu0 %v1184
  %v1324 = vpop.f32.mrb[0].mxu0
  %v1325 = vadd.f32 0.0, %v1324
  %v1326 = vpop.f32.mrb[0].mxu0
  %1327 = vmatprep.mubr.f32.mxu0 0.0
  %1328 = vmatmul.mubr.f32.gmra.mrb[0].mxu0 %v1187
  %v1329 = vpop.f32.mrb[0].mxu0
  %v1330 = vadd.f32 0.0, %v1329
  %v1331 = vpop.f32.mrb[0].mxu0
  %1332 = vmatprep.mubr.f32.mxu0 0.0
  %1333 = vmatmul.mubr.f32.gmra.mrb[0].mxu0 %v1190
  %v1334 = vpop.f32.mrb[0].mxu0
  %v1335 = vadd.f32 0.0, %v1334
  %v1336 = vpop.f32.mrb[0].mxu0
  %1337 = vmatprep.mubr.f32.mxu0 0.0
  %1338 = vmatmul.mubr.f32.gmra.mrb[0].mxu0 %v1193
  %v1339 = vpop.f32.mrb[0].mxu0
  %v1340 = vadd.f32 0.0, %v1339
  %v1341 = vpop.f32.mrb[0].mxu0
  %1342 = vdwg.mxu0
  %v1343 = vadd.f32 %v1113, %v1265
  %v1344 = vadd.f32 %v1114, %v1270
  %v1345 = vadd.f32 %v1115, %v1275
  %v1346 = vadd.f32 %v1116, %v1280
  %v1347 = vadd.f32 %v1117, %v1285
  %v1348 = vadd.f32 %v1118, %v1290
  %v1349 = vadd.f32 %v1119, %v1295
  %v1350 = vadd.f32 %v1120, %v1300
  %v1351 = vadd.f32 %v1121, %v1305
  %v1352 = vadd.f32 %v1122, %v1310
  %v1353 = vadd.f32 %v1123, %v1315
  %v1354 = vadd.f32 %v1124, %v1320
  %v1355 = vadd.f32 %v1125, %v1325
  %v1356 = vadd.f32 %v1126, %v1330
  %v1357 = vadd.f32 %v1127, %v1335
  %v1358 = vadd.f32 %v1128, %v1340
  %v1359 = vld [vmem:[%s3] sm:$0x1]
  %v1361 = vlaneseq
  %v1362 = vshrl.u32 %v1361, 7
  %v1363 = vsub.s32 0, %v1362
  %v1364 = vrot.slane %v1359, %v1363
  %v1366 = vadd.f32 %v1343, %v1364
  %v1367 = vadd.f32 %v1344, %v1364
  %v1368 = vadd.f32 %v1345, %v1364
  %v1369 = vadd.f32 %v1346, %v1364
  %v1370 = vadd.f32 %v1347, %v1364
  %v1371 = vadd.f32 %v1348, %v1364
  %v1372 = vadd.f32 %v1349, %v1364
  %v1373 = vadd.f32 %v1350, %v1364
  %v1374 = vadd.f32 %v1351, %v1364
  %v1375 = vadd.f32 %v1352, %v1364
  %v1376 = vadd.f32 %v1353, %v1364
  %v1377 = vadd.f32 %v1354, %v1364
  %v1378 = vadd.f32 %v1355, %v1364
  %v1379 = vadd.f32 %v1356, %v1364
  %v1380 = vadd.f32 %v1357, %v1364
  %v1381 = vadd.f32 %v1358, %v1364
  %vm1382 = vcmp.ge.f32.partialorder %v1366, 0.0
  %vm1383 = vcmp.ge.f32.partialorder %v1367, 0.0
  %vm1384 = vcmp.ge.f32.partialorder %v1368, 0.0
  %vm1385 = vcmp.ge.f32.partialorder %v1369, 0.0
  %vm1386 = vcmp.ge.f32.partialorder %v1370, 0.0
  %vm1387 = vcmp.ge.f32.partialorder %v1371, 0.0
  %vm1388 = vcmp.ge.f32.partialorder %v1372, 0.0
  %vm1389 = vcmp.ge.f32.partialorder %v1373, 0.0
  %vm1390 = vcmp.ge.f32.partialorder %v1374, 0.0
  %vm1391 = vcmp.ge.f32.partialorder %v1375, 0.0
  %vm1392 = vcmp.ge.f32.partialorder %v1376, 0.0
  %vm1393 = vcmp.ge.f32.partialorder %v1377, 0.0
  %vm1394 = vcmp.ge.f32.partialorder %v1378, 0.0
  %vm1395 = vcmp.ge.f32.partialorder %v1379, 0.0
  %vm1396 = vcmp.ge.f32.partialorder %v1380, 0.0
  %vm1397 = vcmp.ge.f32.partialorder %v1381, 0.0
  %v1398 = vmul.f32 %v1366, 0.01
  %v1399 = vmul.f32 %v1367, 0.01
  %v1400 = vmul.f32 %v1368, 0.01
  %v1401 = vmul.f32 %v1369, 0.01
  %v1402 = vmul.f32 %v1370, 0.01
  %v1403 = vmul.f32 %v1371, 0.01
  %v1404 = vmul.f32 %v1372, 0.01
  %v1405 = vmul.f32 %v1373, 0.01
  %v1406 = vmul.f32 %v1374, 0.01
  %v1407 = vmul.f32 %v1375, 0.01
  %v1408 = vmul.f32 %v1376, 0.01
  %v1409 = vmul.f32 %v1377, 0.01
  %v1410 = vmul.f32 %v1378, 0.01
  %v1411 = vmul.f32 %v1379, 0.01
  %v1412 = vmul.f32 %v1380, 0.01
  %v1413 = vmul.f32 %v1381, 0.01
  %v1414 = vsel %vm1382, %v1366, %v1398
  %v1415 = vsel %vm1383, %v1367, %v1399
  %v1416 = vsel %vm1384, %v1368, %v1400
  %v1417 = vsel %vm1385, %v1369, %v1401
  %v1418 = vsel %vm1386, %v1370, %v1402
  %v1419 = vsel %vm1387, %v1371, %v1403
  %v1420 = vsel %vm1388, %v1372, %v1404
  %v1421 = vsel %vm1389, %v1373, %v1405
  %v1422 = vsel %vm1390, %v1374, %v1406
  %v1423 = vsel %vm1391, %v1375, %v1407
  %v1424 = vsel %vm1392, %v1376, %v1408
  %v1425 = vsel %vm1393, %v1377, %v1409
  %v1426 = vsel %vm1394, %v1378, %v1410
  %v1427 = vsel %vm1395, %v1379, %v1411
  %v1428 = vsel %vm1396, %v1380, %v1412
  %v1429 = vsel %vm1397, %v1381, %v1413
  %1430 = vst [vmem:[%s4] sm:$0xff] %v1414
  %1431 = vst [vmem:[%s4 + $0x8] sm:$0xff] %v1415
  %1432 = vst [vmem:[%s4 + $0x10] sm:$0xff] %v1416
  %1433 = vst [vmem:[%s4 + $0x18] sm:$0xff] %v1417
  %1434 = vst [vmem:[%s4 + $0x20] sm:$0xff] %v1418
  %1435 = vst [vmem:[%s4 + $0x28] sm:$0xff] %v1419
  %1436 = vst [vmem:[%s4 + $0x30] sm:$0xff] %v1420
  %1437 = vst [vmem:[%s4 + $0x38] sm:$0xff] %v1421
  %1438 = vst [vmem:[%s4 + $0x40] sm:$0xff] %v1422
  %1439 = vst [vmem:[%s4 + $0x48] sm:$0xff] %v1423
  %1440 = vst [vmem:[%s4 + $0x50] sm:$0xff] %v1424
  %1441 = vst [vmem:[%s4 + $0x58] sm:$0xff] %v1425
  %1442 = vst [vmem:[%s4 + $0x60] sm:$0xff] %v1426
  %1443 = vst [vmem:[%s4 + $0x68] sm:$0xff] %v1427
  %1444 = vst [vmem:[%s4 + $0x70] sm:$0xff] %v1428
  %1445 = vst [vmem:[%s4 + $0x78] sm:$0xff] %v1429
  // Predicated region
  $region18: #{_lambda_.3} parent=0 // pred_check
    _
  $region19: #{_lambda_.3} parent=0 // pred_check_branch
    %1447 = sbr.rel (0) target = $region21
  $region20: #{_lambda_.3} parent=0 // pred_region
    _
  $region21: #{_lambda_.3} parent=0 // pred_fallthru
    _
  // Predicated region
  $region22: #{_lambda_.3} parent=0 // pred_check
    _
  $region23: #{_lambda_.3} parent=0 // pred_check_branch
    %1449 = sbr.rel (0) target = $region25
  $region24: #{_lambda_.3} parent=0 // pred_region
    _
  $region25: #{_lambda_.3} parent=0 // pred_fallthru
    _

// kernel: _lambda_.5
$region0: #{_lambda_.5}
  #allocation0 [shape = 'u32[]', space=smem, size = 0x4, offset = 0x4, fixed_abs, tag = 'smem constant byte address 0x4 - core index']
  #allocation1 [shape = 'u32[144,128]{1,0:T(1,128)}', space=vmem, size = 0x12000, scoped, tag = 'internal scratch']
  %s0 = inlined_call_operand.vmem [shape: f32[6,6,2,128], index: 0, kind: input, shape index: {}]
  %s1 = inlined_call_operand.vmem [shape: f32[1152,128], index: 1, kind: input, shape index: {}]
  %s2 = inlined_call_operand.vmem [shape: f32[1,128], index: 2, kind: input, shape index: {}]
  %s3 = inlined_call_operand.vmem [shape: f32[512,128], index: 3, kind: input, shape index: {}]
  %s4 = inlined_call_operand.vmem [shape: f32[1,128], index: 4, kind: input, shape index: {}]
  %s5 = inlined_call_operand.vmem [shape: f32[128,128], index: 5, kind: input, shape index: {}]
  %s6 = inlined_call_operand.vmem [shape: f32[1,128], index: 6, kind: input, shape index: {}]
  %s7 = inlined_call_operand.hbm [shape: f32[2,128], index: 7, kind: output, shape index: {}]
  %s8 = sld [smem:[#allocation0]]
  $region38: #{_lambda_.5} parent=0
    _
  %s10 = ssub.s32 1, %s8
  %s11 = scalar_select 0, %s10, %s8
  $region1: #{_lambda_.5} parent=0
    #allocation2 [shape = 'u8[1024]{0}', space=vmem, size = 0x400, scoped, tag = 'output window, operand 0, single buffered']
    #allocation3 [shape = 's32[1]{0}', space=sflag, size = 0x4, scoped, tag = 'scoped memory for _lambda_.5']
    %12 = vsyncpa [#allocation3], 0
    // Predicated region
    $region2: #{_lambda_.5} parent=1 // pred_check
      _
    $region3: #{_lambda_.5} parent=1 // pred_check_branch
      %14 = sbr.rel (0) target = $region5
    $region4: #{_lambda_.5} parent=1 // pred_region
      _
    $region5: #{_lambda_.5} parent=1 // pred_fallthru
      _
    // Predicated region
    $region6: #{_lambda_.5} parent=1 // pred_check
      _
    $region7: #{_lambda_.5} parent=1 // pred_check_branch
      %16 = sbr.rel (0) target = $region9
    $region8: #{_lambda_.5} parent=1 // pred_region
      _
    $region9: #{_lambda_.5} parent=1 // pred_fallthru
      _
    // Predicated region
    $region10: #{_lambda_.5} parent=1 // pred_check
      _
    $region11: #{_lambda_.5} parent=1 // pred_check_branch
      %18 = sbr.rel (0) target = $region13
    $region12: #{_lambda_.5} parent=1 // pred_region
      _
    $region13: #{_lambda_.5} parent=1 // pred_fallthru
      _
    // Predicated region
    $region14: #{_lambda_.5} parent=1 // pred_check
      _
    $region15: #{_lambda_.5} parent=1 // pred_check_branch
      %20 = sbr.rel (0) target = $region17
    $region16: #{_lambda_.5} parent=1 // pred_region
      _
    $region17: #{_lambda_.5} parent=1 // pred_fallthru
      _
    // Predicated region
    $region18: #{_lambda_.5} parent=1 // pred_check
      _
    $region19: #{_lambda_.5} parent=1 // pred_check_branch
      %22 = sbr.rel (0) target = $region21
    $region20: #{_lambda_.5} parent=1 // pred_region
      _
    $region21: #{_lambda_.5} parent=1 // pred_fallthru
      _
    // Predicated region
    $region22: #{_lambda_.5} parent=1 // pred_check
      _
    $region23: #{_lambda_.5} parent=1 // pred_check_branch
      %24 = sbr.rel (0) target = $region25
    $region24: #{_lambda_.5} parent=1 // pred_region
      _
    $region25: #{_lambda_.5} parent=1 // pred_fallthru
      _
    // Predicated region
    $region26: #{_lambda_.5} parent=1 // pred_check
      _
    $region27: #{_lambda_.5} parent=1 // pred_check_branch
      %26 = sbr.rel (0) target = $region29
    $region28: #{_lambda_.5} parent=1 // pred_region
      _
    $region29: #{_lambda_.5} parent=1 // pred_fallthru
      _
    %v27 = vld [vmem:[%s0] sm:$0x3]
    %s28 = scalar_lea.vmem %s0, 2
    %v29 = vld [vmem:[%s28] sm:$0x3]
    %s30 = scalar_lea.vmem %s0, 4
    %v31 = vld [vmem:[%s30] sm:$0x3]
    %s32 = scalar_lea.vmem %s0, 12
    %v33 = vld [vmem:[%s32] sm:$0x3]
    %s34 = scalar_lea.vmem %s0, 14
    %v35 = vld [vmem:[%s34] sm:$0x3]
    %s36 = scalar_lea.vmem %s0, 16
    %v37 = vld [vmem:[%s36] sm:$0x3]
    %s38 = scalar_lea.vmem %s0, 24
    %v39 = vld [vmem:[%s38] sm:$0x3]
    %s40 = scalar_lea.vmem %s0, 26
    %v41 = vld [vmem:[%s40] sm:$0x3]
    %s42 = scalar_lea.vmem %s0, 28
    %v43 = vld [vmem:[%s42] sm:$0x3]
    %s44 = scalar_lea.vmem %s0, 6
    %v45 = vld [vmem:[%s44] sm:$0x3]
    %s46 = scalar_lea.vmem %s0, 8
    %v47 = vld [vmem:[%s46] sm:$0x3]
    %s48 = scalar_lea.vmem %s0, 18
    %v49 = vld [vmem:[%s48] sm:$0x3]
    %s50 = scalar_lea.vmem %s0, 20
    %v51 = vld [vmem:[%s50] sm:$0x3]
    %s52 = scalar_lea.vmem %s0, 30
    %v53 = vld [vmem:[%s52] sm:$0x3]
    %s54 = scalar_lea.vmem %s0, 32
    %v55 = vld [vmem:[%s54] sm:$0x3]
    %s56 = scalar_lea.vmem %s0, 36
    %v57 = vld [vmem:[%s56] sm:$0x3]
    %s58 = scalar_lea.vmem %s0, 38
    %v59 = vld [vmem:[%s58] sm:$0x3]
    %s60 = scalar_lea.vmem %s0, 40
    %v61 = vld [vmem:[%s60] sm:$0x3]
    %s62 = scalar_lea.vmem %s0, 48
    %v63 = vld [vmem:[%s62] sm:$0x3]
    %s64 = scalar_lea.vmem %s0, 50
    %v65 = vld [vmem:[%s64] sm:$0x3]
    %s66 = scalar_lea.vmem %s0, 52
    %v67 = vld [vmem:[%s66] sm:$0x3]
    %s68 = scalar_lea.vmem %s0, 42
    %v69 = vld [vmem:[%s68] sm:$0x3]
    %s70 = scalar_lea.vmem %s0, 44
    %v71 = vld [vmem:[%s70] sm:$0x3]
    %s72 = scalar_lea.vmem %s0, 54
    %v73 = vld [vmem:[%s72] sm:$0x3]
    %s74 = scalar_lea.vmem %s0, 56
    %v75 = vld [vmem:[%s74] sm:$0x3]
    %v85 = vrot.slane %v31, 6
    %v86 = vrot.slane %v45, 6
    %v87 = vrot.slane %v47, 6
    %v88 = vrot.slane %v37, 6
    %v89 = vrot.slane %v49, 6
    %v90 = vrot.slane %v51, 6
    %v91 = vrot.slane %v43, 6
    %v92 = vrot.slane %v53, 6
    %v93 = vrot.slane %v55, 6
    %v111 = vrot.slane %v39, 4
    %v112 = vrot.slane %v41, 4
    %v113 = vrot.slane %v43, 4
    %v114 = vrot.slane %v57, 4
    %v115 = vrot.slane %v59, 4
    %v116 = vrot.slane %v61, 4
    %v117 = vrot.slane %v63, 4
    %v118 = vrot.slane %v65, 4
    %v119 = vrot.slane %v67, 4
    %v133 = vrot.slane %v43, 2
    %v134 = vrot.slane %v53, 2
    %v135 = vrot.slane %v55, 2
    %v136 = vrot.slane %v61, 2
    %v137 = vrot.slane %v69, 2
    %v138 = vrot.slane %v71, 2
    %v139 = vrot.slane %v67, 2
    %v140 = vrot.slane %v73, 2
    %v141 = vrot.slane %v75, 2
    %vm151 = vcmask 1041408
    %v152 = vsel %vm151, %v27, %v85
    %v153 = vsel %vm151, %v29, %v86
    %v154 = vsel %vm151, %v31, %v87
    %v155 = vsel %vm151, %v33, %v88
    %v156 = vsel %vm151, %v35, %v89
    %v157 = vsel %vm151, %v37, %v90
    %v158 = vsel %vm151, %v39, %v91
    %v159 = vsel %vm151, %v41, %v92
    %v160 = vsel %vm151, %v43, %v93
    %vm161 = vcmask 1043456
    %v162 = vsel %vm161, %v152, %v111
    %v163 = vsel %vm161, %v153, %v112
    %v164 = vsel %vm161, %v154, %v113
    %v165 = vsel %vm161, %v155, %v114
    %v166 = vsel %vm161, %v156, %v115
    %v167 = vsel %vm161, %v157, %v116
    %v168 = vsel %vm161, %v158, %v117
    %v169 = vsel %vm161, %v159, %v118
    %v170 = vsel %vm161, %v160, %v119
    %vm171 = vcmask 1045504
    %v172 = vsel %vm171, %v162, %v133
    %v173 = vsel %vm171, %v163, %v134
    %v174 = vsel %vm171, %v164, %v135
    %v175 = vsel %vm171, %v165, %v136
    %v176 = vsel %vm171, %v166, %v137
    %v177 = vsel %vm171, %v167, %v138
    %v178 = vsel %vm171, %v168, %v139
    %v179 = vsel %vm171, %v169, %v140
    %v180 = vsel %vm171, %v170, %v141
    %v181 = vld [vmem:[%s1] sm:$0xff]
    %v182 = vld [vmem:[%s1 + $0x8] sm:$0xff]
    %v183 = vld [vmem:[%s1 + $0x10] sm:$0xff]
    %v184 = vld [vmem:[%s1 + $0x18] sm:$0xff]
    %v185 = vld [vmem:[%s1 + $0x20] sm:$0xff]
    %v186 = vld [vmem:[%s1 + $0x28] sm:$0xff]
    %v187 = vld [vmem:[%s1 + $0x30] sm:$0xff]
    %v188 = vld [vmem:[%s1 + $0x38] sm:$0xff]
    %v189 = vld [vmem:[%s1 + $0x40] sm:$0xff]
    %v190 = vld [vmem:[%s1 + $0x48] sm:$0xff]
    %v191 = vld [vmem:[%s1 + $0x50] sm:$0xff]
    %v192 = vld [vmem:[%s1 + $0x58] sm:$0xff]
    %v193 = vld [vmem:[%s1 + $0x60] sm:$0xff]
    %v194 = vld [vmem:[%s1 + $0x68] sm:$0xff]
    %v195 = vld [vmem:[%s1 + $0x70] sm:$0xff]
    %v196 = vld [vmem:[%s1 + $0x78] sm:$0xff]
    %v197 = vld [vmem:[%s1 + $0x80] sm:$0xff]
    %v198 = vld [vmem:[%s1 + $0x88] sm:$0xff]
    %v199 = vld [vmem:[%s1 + $0x90] sm:$0xff]
    %v200 = vld [vmem:[%s1 + $0x98] sm:$0xff]
    %v201 = vld [vmem:[%s1 + $0xa0] sm:$0xff]
    %v202 = vld [vmem:[%s1 + $0xa8] sm:$0xff]
    %v203 = vld [vmem:[%s1 + $0xb0] sm:$0xff]
    %v204 = vld [vmem:[%s1 + $0xb8] sm:$0xff]
    %v205 = vld [vmem:[%s1 + $0xc0] sm:$0xff]
    %v206 = vld [vmem:[%s1 + $0xc8] sm:$0xff]
    %v207 = vld [vmem:[%s1 + $0xd0] sm:$0xff]
    %v208 = vld [vmem:[%s1 + $0xd8] sm:$0xff]
    %v209 = vld [vmem:[%s1 + $0xe0] sm:$0xff]
    %v210 = vld [vmem:[%s1 + $0xe8] sm:$0xff]
    %v211 = vld [vmem:[%s1 + $0xf0] sm:$0xff]
    %v212 = vld [vmem:[%s1 + $0xf8] sm:$0xff]
    %v213 = vld [vmem:[%s1 + $0x100] sm:$0xff]
    %v214 = vld [vmem:[%s1 + $0x108] sm:$0xff]
    %v215 = vld [vmem:[%s1 + $0x110] sm:$0xff]
    %v216 = vld [vmem:[%s1 + $0x118] sm:$0xff]
    %v217 = vld [vmem:[%s1 + $0x120] sm:$0xff]
    %v218 = vld [vmem:[%s1 + $0x128] sm:$0xff]
    %v219 = vld [vmem:[%s1 + $0x130] sm:$0xff]
    %v220 = vld [vmem:[%s1 + $0x138] sm:$0xff]
    %v221 = vld [vmem:[%s1 + $0x140] sm:$0xff]
    %v222 = vld [vmem:[%s1 + $0x148] sm:$0xff]
    %v223 = vld [vmem:[%s1 + $0x150] sm:$0xff]
    %v224 = vld [vmem:[%s1 + $0x158] sm:$0xff]
    %v225 = vld [vmem:[%s1 + $0x160] sm:$0xff]
    %v226 = vld [vmem:[%s1 + $0x168] sm:$0xff]
    %v227 = vld [vmem:[%s1 + $0x170] sm:$0xff]
    %v228 = vld [vmem:[%s1 + $0x178] sm:$0xff]
    %v229 = vld [vmem:[%s1 + $0x180] sm:$0xff]
    %v230 = vld [vmem:[%s1 + $0x188] sm:$0xff]
    %v231 = vld [vmem:[%s1 + $0x190] sm:$0xff]
    %v232 = vld [vmem:[%s1 + $0x198] sm:$0xff]
    %v233 = vld [vmem:[%s1 + $0x1a0] sm:$0xff]
    %v234 = vld [vmem:[%s1 + $0x1a8] sm:$0xff]
    %v235 = vld [vmem:[%s1 + $0x1b0] sm:$0xff]
    %v236 = vld [vmem:[%s1 + $0x1b8] sm:$0xff]
    %v237 = vld [vmem:[%s1 + $0x1c0] sm:$0xff]
    %v238 = vld [vmem:[%s1 + $0x1c8] sm:$0xff]
    %v239 = vld [vmem:[%s1 + $0x1d0] sm:$0xff]
    %v240 = vld [vmem:[%s1 + $0x1d8] sm:$0xff]
    %v241 = vld [vmem:[%s1 + $0x1e0] sm:$0xff]
    %v242 = vld [vmem:[%s1 + $0x1e8] sm:$0xff]
    %v243 = vld [vmem:[%s1 + $0x1f0] sm:$0xff]
    %v244 = vld [vmem:[%s1 + $0x1f8] sm:$0xff]
    %v245 = vld [vmem:[%s1 + $0x200] sm:$0xff]
    %v246 = vld [vmem:[%s1 + $0x208] sm:$0xff]
    %v247 = vld [vmem:[%s1 + $0x210] sm:$0xff]
    %v248 = vld [vmem:[%s1 + $0x218] sm:$0xff]
    %v249 = vld [vmem:[%s1 + $0x220] sm:$0xff]
    %v250 = vld [vmem:[%s1 + $0x228] sm:$0xff]
    %v251 = vld [vmem:[%s1 + $0x230] sm:$0xff]
    %v252 = vld [vmem:[%s1 + $0x238] sm:$0xff]
    %v253 = vld [vmem:[%s1 + $0x240] sm:$0xff]
    %v254 = vld [vmem:[%s1 + $0x248] sm:$0xff]
    %v255 = vld [vmem:[%s1 + $0x250] sm:$0xff]
    %v256 = vld [vmem:[%s1 + $0x258] sm:$0xff]
    %v257 = vld [vmem:[%s1 + $0x260] sm:$0xff]
    %v258 = vld [vmem:[%s1 + $0x268] sm:$0xff]
    %v259 = vld [vmem:[%s1 + $0x270] sm:$0xff]
    %v260 = vld [vmem:[%s1 + $0x278] sm:$0xff]
    %v261 = vld [vmem:[%s1 + $0x280] sm:$0xff]
    %v262 = vld [vmem:[%s1 + $0x288] sm:$0xff]
    %v263 = vld [vmem:[%s1 + $0x290] sm:$0xff]
    %v264 = vld [vmem:[%s1 + $0x298] sm:$0xff]
    %v265 = vld [vmem:[%s1 + $0x2a0] sm:$0xff]
    %v266 = vld [vmem:[%s1 + $0x2a8] sm:$0xff]
    %v267 = vld [vmem:[%s1 + $0x2b0] sm:$0xff]
    %v268 = vld [vmem:[%s1 + $0x2b8] sm:$0xff]
    %v269 = vld [vmem:[%s1 + $0x2c0] sm:$0xff]
    %v270 = vld [vmem:[%s1 + $0x2c8] sm:$0xff]
    %v271 = vld [vmem:[%s1 + $0x2d0] sm:$0xff]
    %v272 = vld [vmem:[%s1 + $0x2d8] sm:$0xff]
    %v273 = vld [vmem:[%s1 + $0x2e0] sm:$0xff]
    %v274 = vld [vmem:[%s1 + $0x2e8] sm:$0xff]
    %v275 = vld [vmem:[%s1 + $0x2f0] sm:$0xff]
    %v276 = vld [vmem:[%s1 + $0x2f8] sm:$0xff]
    %v277 = vld [vmem:[%s1 + $0x300] sm:$0xff]
    %v278 = vld [vmem:[%s1 + $0x308] sm:$0xff]
    %v279 = vld [vmem:[%s1 + $0x310] sm:$0xff]
    %v280 = vld [vmem:[%s1 + $0x318] sm:$0xff]
    %v281 = vld [vmem:[%s1 + $0x320] sm:$0xff]
    %v282 = vld [vmem:[%s1 + $0x328] sm:$0xff]
    %v283 = vld [vmem:[%s1 + $0x330] sm:$0xff]
    %v284 = vld [vmem:[%s1 + $0x338] sm:$0xff]
    %v285 = vld [vmem:[%s1 + $0x340] sm:$0xff]
    %v286 = vld [vmem:[%s1 + $0x348] sm:$0xff]
    %v287 = vld [vmem:[%s1 + $0x350] sm:$0xff]
    %v288 = vld [vmem:[%s1 + $0x358] sm:$0xff]
    %v289 = vld [vmem:[%s1 + $0x360] sm:$0xff]
    %v290 = vld [vmem:[%s1 + $0x368] sm:$0xff]
    %v291 = vld [vmem:[%s1 + $0x370] sm:$0xff]
    %v292 = vld [vmem:[%s1 + $0x378] sm:$0xff]
    %v293 = vld [vmem:[%s1 + $0x380] sm:$0xff]
    %v294 = vld [vmem:[%s1 + $0x388] sm:$0xff]
    %v295 = vld [vmem:[%s1 + $0x390] sm:$0xff]
    %v296 = vld [vmem:[%s1 + $0x398] sm:$0xff]
    %v297 = vld [vmem:[%s1 + $0x3a0] sm:$0xff]
    %v298 = vld [vmem:[%s1 + $0x3a8] sm:$0xff]
    %v299 = vld [vmem:[%s1 + $0x3b0] sm:$0xff]
    %v300 = vld [vmem:[%s1 + $0x3b8] sm:$0xff]
    %v301 = vld [vmem:[%s1 + $0x3c0] sm:$0xff]
    %v302 = vld [vmem:[%s1 + $0x3c8] sm:$0xff]
    %v303 = vld [vmem:[%s1 + $0x3d0] sm:$0xff]
    %v304 = vld [vmem:[%s1 + $0x3d8] sm:$0xff]
    %v305 = vld [vmem:[%s1 + $0x3e0] sm:$0xff]
    %v306 = vld [vmem:[%s1 + $0x3e8] sm:$0xff]
    %v307 = vld [vmem:[%s1 + $0x3f0] sm:$0xff]
    %v308 = vld [vmem:[%s1 + $0x3f8] sm:$0xff]
    %v309 = vld [vmem:[%s1 + $0x400] sm:$0xff]
    %v310 = vld [vmem:[%s1 + $0x408] sm:$0xff]
    %v311 = vld [vmem:[%s1 + $0x410] sm:$0xff]
    %v312 = vld [vmem:[%s1 + $0x418] sm:$0xff]
    %v313 = vld [vmem:[%s1 + $0x420] sm:$0xff]
    %v314 = vld [vmem:[%s1 + $0x428] sm:$0xff]
    %v315 = vld [vmem:[%s1 + $0x430] sm:$0xff]
    %v316 = vld [vmem:[%s1 + $0x438] sm:$0xff]
    %v317 = vld [vmem:[%s1 + $0x440] sm:$0xff]
    %v318 = vld [vmem:[%s1 + $0x448] sm:$0xff]
    %v319 = vld [vmem:[%s1 + $0x450] sm:$0xff]
    %v320 = vld [vmem:[%s1 + $0x458] sm:$0xff]
    %v321 = vld [vmem:[%s1 + $0x460] sm:$0xff]
    %v322 = vld [vmem:[%s1 + $0x468] sm:$0xff]
    %v323 = vld [vmem:[%s1 + $0x470] sm:$0xff]
    %v324 = vld [vmem:[%s1 + $0x478] sm:$0xff]
    %v325 = vld [vmem:[%s2] sm:$0x1]
    %v327 = vlaneseq
    %v328 = vshrl.u32 %v327, 7
    %v329 = vsub.s32 0, %v328
    %v330 = vrot.slane %v325, %v329
    %332 = vmatprep.subr.mxu0 0.0
    %333 = vmatpush1.msra.mxu0 %v181
    %334 = vmatprep.subr.mxu0 0.0
    %335 = vmatpush1.msra.mxu0 %v182
    %336 = vmatprep.subr.mxu0 0.0
    %337 = vmatpush1.msra.mxu0 %v183
    %338 = vmatprep.subr.mxu0 0.0
    %339 = vmatpush1.msra.mxu0 %v184
    %340 = vmatprep.subr.mxu0 0.0
    %341 = vmatpush1.msra.mxu0 %v185
    %342 = vmatprep.subr.mxu0 0.0
    %343 = vmatpush1.msra.mxu0 %v186
    %344 = vmatprep.subr.mxu0 0.0
    %345 = vmatpush1.msra.mxu0 %v187
    %346 = vmatprep.subr.mxu0 0.0
    %347 = vmatpush1.msra.mxu0 %v188
    %348 = vmatprep.subr.mxu0 0.0
    %349 = vmatpush1.msra.mxu0 %v189
    %350 = vmatprep.subr.mxu0 0.0
    %351 = vmatpush1.msra.mxu0 %v190
    %352 = vmatprep.subr.mxu0 0.0
    %353 = vmatpush1.msra.mxu0 %v191
    %354 = vmatprep.subr.mxu0 0.0
    %355 = vmatpush1.msra.mxu0 %v192
    %356 = vmatprep.subr.mxu0 0.0
    %357 = vmatpush1.msra.mxu0 %v193
    %358 = vmatprep.subr.mxu0 0.0
    %359 = vmatpush1.msra.mxu0 %v194
    %360 = vmatprep.subr.mxu0 0.0
    %361 = vmatpush1.msra.mxu0 %v195
    %362 = vmatprep.subr.mxu0 0.0
    %363 = vmatpush1.msra.mxu0 %v196
    %364 = vmatprep.subr.mxu0 0.0
    %365 = vmatpush1.msra.mxu0 %v197
    %366 = vmatprep.subr.mxu0 0.0
    %367 = vmatpush1.msra.mxu0 %v198
    %368 = vmatprep.subr.mxu0 0.0
    %369 = vmatpush1.msra.mxu0 %v199
    %370 = vmatprep.subr.mxu0 0.0
    %371 = vmatpush1.msra.mxu0 %v200
    %372 = vmatprep.subr.mxu0 0.0
    %373 = vmatpush1.msra.mxu0 %v201
    %374 = vmatprep.subr.mxu0 0.0
    %375 = vmatpush1.msra.mxu0 %v202
    %376 = vmatprep.subr.mxu0 0.0
    %377 = vmatpush1.msra.mxu0 %v203
    %378 = vmatprep.subr.mxu0 0.0
    %379 = vmatpush1.msra.mxu0 %v204
    %380 = vmatprep.subr.mxu0 0.0
    %381 = vmatpush1.msra.mxu0 %v205
    %382 = vmatprep.subr.mxu0 0.0
    %383 = vmatpush1.msra.mxu0 %v206
    %384 = vmatprep.subr.mxu0 0.0
    %385 = vmatpush1.msra.mxu0 %v207
    %386 = vmatprep.subr.mxu0 0.0
    %387 = vmatpush1.msra.mxu0 %v208
    %388 = vmatprep.subr.mxu0 0.0
    %389 = vmatpush1.msra.mxu0 %v209
    %390 = vmatprep.subr.mxu0 0.0
    %391 = vmatpush1.msra.mxu0 %v210
    %392 = vmatprep.subr.mxu0 0.0
    %393 = vmatpush1.msra.mxu0 %v211
    %394 = vmatprep.subr.mxu0 0.0
    %395 = vmatpush1.msra.mxu0 %v212
    %396 = vmatprep.mubr.f32.mxu0 %v173
    %397 = vmatmul.mubr.f32.gmra.mrb[0].mxu0 %v172
    %v398 = vpop.f32.mrb[0].mxu0
    %v399 = vadd.f32 %v330, %v398
    %v400 = vpop.f32.mrb[0].mxu0
    %401 = vdwg.mxu0
    %402 = vmatprep.subr.mxu0 0.0
    %403 = vmatpush1.msra.mxu0 %v213
    %404 = vmatprep.subr.mxu0 0.0
    %405 = vmatpush1.msra.mxu0 %v214
    %406 = vmatprep.subr.mxu0 0.0
    %407 = vmatpush1.msra.mxu0 %v215
    %408 = vmatprep.subr.mxu0 0.0
    %409 = vmatpush1.msra.mxu0 %v216
    %410 = vmatprep.subr.mxu0 0.0
    %411 = vmatpush1.msra.mxu0 %v217
    %412 = vmatprep.subr.mxu0 0.0
    %413 = vmatpush1.msra.mxu0 %v218
    %414 = vmatprep.subr.mxu0 0.0
    %415 = vmatpush1.msra.mxu0 %v219
    %416 = vmatprep.subr.mxu0 0.0
    %417 = vmatpush1.msra.mxu0 %v220
    %418 = vmatprep.subr.mxu0 0.0
    %419 = vmatpush1.msra.mxu0 %v221
    %420 = vmatprep.subr.mxu0 0.0
    %421 = vmatpush1.msra.mxu0 %v222
    %422 = vmatprep.subr.mxu0 0.0
    %423 = vmatpush1.msra.mxu0 %v223
    %424 = vmatprep.subr.mxu0 0.0
    %425 = vmatpush1.msra.mxu0 %v224
    %426 = vmatprep.subr.mxu0 0.0
    %427 = vmatpush1.msra.mxu0 %v225
    %428 = vmatprep.subr.mxu0 0.0
    %429 = vmatpush1.msra.mxu0 %v226
    %430 = vmatprep.subr.mxu0 0.0
    %431 = vmatpush1.msra.mxu0 %v227
    %432 = vmatprep.subr.mxu0 0.0
    %433 = vmatpush1.msra.mxu0 %v228
    %434 = vmatprep.subr.mxu0 0.0
    %435 = vmatpush1.msra.mxu0 %v229
    %436 = vmatprep.subr.mxu0 0.0
    %437 = vmatpush1.msra.mxu0 %v230
    %438 = vmatprep.subr.mxu0 0.0
    %439 = vmatpush1.msra.mxu0 %v231
    %440 = vmatprep.subr.mxu0 0.0
    %441 = vmatpush1.msra.mxu0 %v232
    %442 = vmatprep.subr.mxu0 0.0
    %443 = vmatpush1.msra.mxu0 %v233
    %444 = vmatprep.subr.mxu0 0.0
    %445 = vmatpush1.msra.mxu0 %v234
    %446 = vmatprep.subr.mxu0 0.0
    %447 = vmatpush1.msra.mxu0 %v235
    %448 = vmatprep.subr.mxu0 0.0
    %449 = vmatpush1.msra.mxu0 %v236
    %450 = vmatprep.subr.mxu0 0.0
    %451 = vmatpush1.msra.mxu0 %v237
    %452 = vmatprep.subr.mxu0 0.0
    %453 = vmatpush1.msra.mxu0 %v238
    %454 = vmatprep.subr.mxu0 0.0
    %455 = vmatpush1.msra.mxu0 %v239
    %456 = vmatprep.subr.mxu0 0.0
    %457 = vmatpush1.msra.mxu0 %v240
    %458 = vmatprep.subr.mxu0 0.0
    %459 = vmatpush1.msra.mxu0 %v241
    %460 = vmatprep.subr.mxu0 0.0
    %461 = vmatpush1.msra.mxu0 %v242
    %462 = vmatprep.subr.mxu0 0.0
    %463 = vmatpush1.msra.mxu0 %v243
    %464 = vmatprep.subr.mxu0 0.0
    %465 = vmatpush1.msra.mxu0 %v244
    %466 = vmatprep.mubr.f32.mxu0 %v175
    %467 = vmatmul.mubr.f32.gmra.mrb[0].mxu0 %v174
    %v468 = vpop.f32.mrb[0].mxu0
    %v469 = vadd.f32 %v399, %v468
    %v470 = vpop.f32.mrb[0].mxu0
    %471 = vdwg.mxu0
    %472 = vmatprep.subr.mxu0 0.0
    %473 = vmatpush1.msra.mxu0 %v245
    %474 = vmatprep.subr.mxu0 0.0
    %475 = vmatpush1.msra.mxu0 %v246
    %476 = vmatprep.subr.mxu0 0.0
    %477 = vmatpush1.msra.mxu0 %v247
    %478 = vmatprep.subr.mxu0 0.0
    %479 = vmatpush1.msra.mxu0 %v248
    %480 = vmatprep.subr.mxu0 0.0
    %481 = vmatpush1.msra.mxu0 %v249
    %482 = vmatprep.subr.mxu0 0.0
    %483 = vmatpush1.msra.mxu0 %v250
    %484 = vmatprep.subr.mxu0 0.0
    %485 = vmatpush1.msra.mxu0 %v251
    %486 = vmatprep.subr.mxu0 0.0
    %487 = vmatpush1.msra.mxu0 %v252
    %488 = vmatprep.subr.mxu0 0.0
    %489 = vmatpush1.msra.mxu0 %v253
    %490 = vmatprep.subr.mxu0 0.0
    %491 = vmatpush1.msra.mxu0 %v254
    %492 = vmatprep.subr.mxu0 0.0
    %493 = vmatpush1.msra.mxu0 %v255
    %494 = vmatprep.subr.mxu0 0.0
    %495 = vmatpush1.msra.mxu0 %v256
    %496 = vmatprep.subr.mxu0 0.0
    %497 = vmatpush1.msra.mxu0 %v257
    %498 = vmatprep.subr.mxu0 0.0
    %499 = vmatpush1.msra.mxu0 %v258
    %500 = vmatprep.subr.mxu0 0.0
    %501 = vmatpush1.msra.mxu0 %v259
    %502 = vmatprep.subr.mxu0 0.0
    %503 = vmatpush1.msra.mxu0 %v260
    %504 = vmatprep.subr.mxu0 0.0
    %505 = vmatpush1.msra.mxu0 %v261
    %506 = vmatprep.subr.mxu0 0.0
    %507 = vmatpush1.msra.mxu0 %v262
    %508 = vmatprep.subr.mxu0 0.0
    %509 = vmatpush1.msra.mxu0 %v263
    %510 = vmatprep.subr.mxu0 0.0
    %511 = vmatpush1.msra.mxu0 %v264
    %512 = vmatprep.subr.mxu0 0.0
    %513 = vmatpush1.msra.mxu0 %v265
    %514 = vmatprep.subr.mxu0 0.0
    %515 = vmatpush1.msra.mxu0 %v266
    %516 = vmatprep.subr.mxu0 0.0
    %517 = vmatpush1.msra.mxu0 %v267
    %518 = vmatprep.subr.mxu0 0.0
    %519 = vmatpush1.msra.mxu0 %v268
    %520 = vmatprep.subr.mxu0 0.0
    %521 = vmatpush1.msra.mxu0 %v269
    %522 = vmatprep.subr.mxu0 0.0
    %523 = vmatpush1.msra.mxu0 %v270
    %524 = vmatprep.subr.mxu0 0.0
    %525 = vmatpush1.msra.mxu0 %v271
    %526 = vmatprep.subr.mxu0 0.0
    %527 = vmatpush1.msra.mxu0 %v272
    %528 = vmatprep.subr.mxu0 0.0
    %529 = vmatpush1.msra.mxu0 %v273
    %530 = vmatprep.subr.mxu0 0.0
    %531 = vmatpush1.msra.mxu0 %v274
    %532 = vmatprep.subr.mxu0 0.0
    %533 = vmatpush1.msra.mxu0 %v275
    %534 = vmatprep.subr.mxu0 0.0
    %535 = vmatpush1.msra.mxu0 %v276
    %536 = vmatprep.mubr.f32.mxu0 %v177
    %537 = vmatmul.mubr.f32.gmra.mrb[0].mxu0 %v176
    %v538 = vpop.f32.mrb[0].mxu0
    %v539 = vadd.f32 %v469, %v538
    %v540 = vpop.f32.mrb[0].mxu0
    %541 = vdwg.mxu0
    %542 = vmatprep.subr.mxu0 0.0
    %543 = vmatpush1.msra.mxu0 %v277
    %544 = vmatprep.subr.mxu0 0.0
    %545 = vmatpush1.msra.mxu0 %v278
    %546 = vmatprep.subr.mxu0 0.0
    %547 = vmatpush1.msra.mxu0 %v279
    %548 = vmatprep.subr.mxu0 0.0
    %549 = vmatpush1.msra.mxu0 %v280
    %550 = vmatprep.subr.mxu0 0.0
    %551 = vmatpush1.msra.mxu0 %v281
    %552 = vmatprep.subr.mxu0 0.0
    %553 = vmatpush1.msra.mxu0 %v282
    %554 = vmatprep.subr.mxu0 0.0
    %555 = vmatpush1.msra.mxu0 %v283
    %556 = vmatprep.subr.mxu0 0.0
    %557 = vmatpush1.msra.mxu0 %v284
    %558 = vmatprep.subr.mxu0 0.0
    %559 = vmatpush1.msra.mxu0 %v285
    %560 = vmatprep.subr.mxu0 0.0
    %561 = vmatpush1.msra.mxu0 %v286
    %562 = vmatprep.subr.mxu0 0.0
    %563 = vmatpush1.msra.mxu0 %v287
    %564 = vmatprep.subr.mxu0 0.0
    %565 = vmatpush1.msra.mxu0 %v288
    %566 = vmatprep.subr.mxu0 0.0
    %567 = vmatpush1.msra.mxu0 %v289
    %568 = vmatprep.subr.mxu0 0.0
    %569 = vmatpush1.msra.mxu0 %v290
    %570 = vmatprep.subr.mxu0 0.0
    %571 = vmatpush1.msra.mxu0 %v291
    %572 = vmatprep.subr.mxu0 0.0
    %573 = vmatpush1.msra.mxu0 %v292
    %574 = vmatprep.subr.mxu0 0.0
    %575 = vmatpush1.msra.mxu0 %v293
    %576 = vmatprep.subr.mxu0 0.0
    %577 = vmatpush1.msra.mxu0 %v294
    %578 = vmatprep.subr.mxu0 0.0
    %579 = vmatpush1.msra.mxu0 %v295
    %580 = vmatprep.subr.mxu0 0.0
    %581 = vmatpush1.msra.mxu0 %v296
    %582 = vmatprep.subr.mxu0 0.0
    %583 = vmatpush1.msra.mxu0 %v297
    %584 = vmatprep.subr.mxu0 0.0
    %585 = vmatpush1.msra.mxu0 %v298
    %586 = vmatprep.subr.mxu0 0.0
    %587 = vmatpush1.msra.mxu0 %v299
    %588 = vmatprep.subr.mxu0 0.0
    %589 = vmatpush1.msra.mxu0 %v300
    %590 = vmatprep.subr.mxu0 0.0
    %591 = vmatpush1.msra.mxu0 %v301
    %592 = vmatprep.subr.mxu0 0.0
    %593 = vmatpush1.msra.mxu0 %v302
    %594 = vmatprep.subr.mxu0 0.0
    %595 = vmatpush1.msra.mxu0 %v303
    %596 = vmatprep.subr.mxu0 0.0
    %597 = vmatpush1.msra.mxu0 %v304
    %598 = vmatprep.subr.mxu0 0.0
    %599 = vmatpush1.msra.mxu0 %v305
    %600 = vmatprep.subr.mxu0 0.0
    %601 = vmatpush1.msra.mxu0 %v306
    %602 = vmatprep.subr.mxu0 0.0
    %603 = vmatpush1.msra.mxu0 %v307
    %604 = vmatprep.subr.mxu0 0.0
    %605 = vmatpush1.msra.mxu0 %v308
    %606 = vmatprep.mubr.f32.mxu0 %v179
    %607 = vmatmul.mubr.f32.gmra.mrb[0].mxu0 %v178
    %v608 = vpop.f32.mrb[0].mxu0
    %v609 = vadd.f32 %v539, %v608
    %v610 = vpop.f32.mrb[0].mxu0
    %611 = vdwg.mxu0
    %612 = vmatprep.subr.mxu0 0.0
    %613 = vmatpush1.msra.mxu0 %v309
    %614 = vmatprep.subr.mxu0 0.0
    %615 = vmatpush1.msra.mxu0 %v310
    %616 = vmatprep.subr.mxu0 0.0
    %617 = vmatpush1.msra.mxu0 %v311
    %618 = vmatprep.subr.mxu0 0.0
    %619 = vmatpush1.msra.mxu0 %v312
    %620 = vmatprep.subr.mxu0 0.0
    %621 = vmatpush1.msra.mxu0 %v313
    %622 = vmatprep.subr.mxu0 0.0
    %623 = vmatpush1.msra.mxu0 %v314
    %624 = vmatprep.subr.mxu0 0.0
    %625 = vmatpush1.msra.mxu0 %v315
    %626 = vmatprep.subr.mxu0 0.0
    %627 = vmatpush1.msra.mxu0 %v316
    %628 = vmatprep.subr.mxu0 0.0
    %629 = vmatpush1.msra.mxu0 %v317
    %630 = vmatprep.subr.mxu0 0.0
    %631 = vmatpush1.msra.mxu0 %v318
    %632 = vmatprep.subr.mxu0 0.0
    %633 = vmatpush1.msra.mxu0 %v319
    %634 = vmatprep.subr.mxu0 0.0
    %635 = vmatpush1.msra.mxu0 %v320
    %636 = vmatprep.subr.mxu0 0.0
    %637 = vmatpush1.msra.mxu0 %v321
    %638 = vmatprep.subr.mxu0 0.0
    %639 = vmatpush1.msra.mxu0 %v322
    %640 = vmatprep.subr.mxu0 0.0
    %641 = vmatpush1.msra.mxu0 %v323
    %642 = vmatprep.subr.mxu0 0.0
    %643 = vmatpush1.msra.mxu0 %v324
    %644 = vmatprep.subr.mxu0 0.0
    %645 = vmatpush1.msra.mxu0 0.0
    %646 = vmatprep.subr.mxu0 0.0
    %647 = vmatpush1.msra.mxu0 0.0
    %648 = vmatprep.subr.mxu0 0.0
    %649 = vmatpush1.msra.mxu0 0.0
    %650 = vmatprep.subr.mxu0 0.0
    %651 = vmatpush1.msra.mxu0 0.0
    %652 = vmatprep.subr.mxu0 0.0
    %653 = vmatpush1.msra.mxu0 0.0
    %654 = vmatprep.subr.mxu0 0.0
    %655 = vmatpush1.msra.mxu0 0.0
    %656 = vmatprep.subr.mxu0 0.0
    %657 = vmatpush1.msra.mxu0 0.0
    %658 = vmatprep.subr.mxu0 0.0
    %659 = vmatpush1.msra.mxu0 0.0
    %660 = vmatprep.subr.mxu0 0.0
    %661 = vmatpush1.msra.mxu0 0.0
    %662 = vmatprep.subr.mxu0 0.0
    %663 = vmatpush1.msra.mxu0 0.0
    %664 = vmatprep.subr.mxu0 0.0
    %665 = vmatpush1.msra.mxu0 0.0
    %666 = vmatprep.subr.mxu0 0.0
    %667 = vmatpush1.msra.mxu0 0.0
    %668 = vmatprep.subr.mxu0 0.0
    %669 = vmatpush1.msra.mxu0 0.0
    %670 = vmatprep.subr.mxu0 0.0
    %671 = vmatpush1.msra.mxu0 0.0
    %672 = vmatprep.subr.mxu0 0.0
    %673 = vmatpush1.msra.mxu0 0.0
    %674 = vmatprep.subr.mxu0 0.0
    %675 = vmatpush1.msra.mxu0 0.0
    %676 = vmatprep.mubr.f32.mxu0 0.0
    %677 = vmatmul.mubr.f32.gmra.mrb[0].mxu0 %v180
    %v678 = vpop.f32.mrb[0].mxu0
    %v679 = vadd.f32 %v609, %v678
    %v680 = vpop.f32.mrb[0].mxu0
    %681 = vdwg.mxu0
    %vm682 = vcmp.ge.f32.partialorder %v679, 0.0
    %v683 = vmul.f32 %v679, 0.01
    %v684 = vsel %vm682, %v679, %v683
    %v686 = vrot.slane %v684, 2
    %v688 = vrot.slane %v684, 4
    %v690 = vrot.slane %v684, 6
    %v692 = vld [vmem:[%s3] sm:$0xff]
    %v693 = vld [vmem:[%s3 + $0x8] sm:$0xff]
    %v694 = vld [vmem:[%s3 + $0x10] sm:$0xff]
    %v695 = vld [vmem:[%s3 + $0x18] sm:$0xff]
    %v696 = vld [vmem:[%s3 + $0x20] sm:$0xff]
    %v697 = vld [vmem:[%s3 + $0x28] sm:$0xff]
    %v698 = vld [vmem:[%s3 + $0x30] sm:$0xff]
    %v699 = vld [vmem:[%s3 + $0x38] sm:$0xff]
    %v700 = vld [vmem:[%s3 + $0x40] sm:$0xff]
    %v701 = vld [vmem:[%s3 + $0x48] sm:$0xff]
    %v702 = vld [vmem:[%s3 + $0x50] sm:$0xff]
    %v703 = vld [vmem:[%s3 + $0x58] sm:$0xff]
    %v704 = vld [vmem:[%s3 + $0x60] sm:$0xff]
    %v705 = vld [vmem:[%s3 + $0x68] sm:$0xff]
    %v706 = vld [vmem:[%s3 + $0x70] sm:$0xff]
    %v707 = vld [vmem:[%s3 + $0x78] sm:$0xff]
    %v708 = vld [vmem:[%s3 + $0x80] sm:$0xff]
    %v709 = vld [vmem:[%s3 + $0x88] sm:$0xff]
    %v710 = vld [vmem:[%s3 + $0x90] sm:$0xff]
    %v711 = vld [vmem:[%s3 + $0x98] sm:$0xff]
    %v712 = vld [vmem:[%s3 + $0xa0] sm:$0xff]
    %v713 = vld [vmem:[%s3 + $0xa8] sm:$0xff]
    %v714 = vld [vmem:[%s3 + $0xb0] sm:$0xff]
    %v715 = vld [vmem:[%s3 + $0xb8] sm:$0xff]
    %v716 = vld [vmem:[%s3 + $0xc0] sm:$0xff]
    %v717 = vld [vmem:[%s3 + $0xc8] sm:$0xff]
    %v718 = vld [vmem:[%s3 + $0xd0] sm:$0xff]
    %v719 = vld [vmem:[%s3 + $0xd8] sm:$0xff]
    %v720 = vld [vmem:[%s3 + $0xe0] sm:$0xff]
    %v721 = vld [vmem:[%s3 + $0xe8] sm:$0xff]
    %v722 = vld [vmem:[%s3 + $0xf0] sm:$0xff]
    %v723 = vld [vmem:[%s3 + $0xf8] sm:$0xff]
    %v724 = vld [vmem:[%s3 + $0x100] sm:$0xff]
    %v725 = vld [vmem:[%s3 + $0x108] sm:$0xff]
    %v726 = vld [vmem:[%s3 + $0x110] sm:$0xff]
    %v727 = vld [vmem:[%s3 + $0x118] sm:$0xff]
    %v728 = vld [vmem:[%s3 + $0x120] sm:$0xff]
    %v729 = vld [vmem:[%s3 + $0x128] sm:$0xff]
    %v730 = vld [vmem:[%s3 + $0x130] sm:$0xff]
    %v731 = vld [vmem:[%s3 + $0x138] sm:$0xff]
    %v732 = vld [vmem:[%s3 + $0x140] sm:$0xff]
    %v733 = vld [vmem:[%s3 + $0x148] sm:$0xff]
    %v734 = vld [vmem:[%s3 + $0x150] sm:$0xff]
    %v735 = vld [vmem:[%s3 + $0x158] sm:$0xff]
    %v736 = vld [vmem:[%s3 + $0x160] sm:$0xff]
    %v737 = vld [vmem:[%s3 + $0x168] sm:$0xff]
    %v738 = vld [vmem:[%s3 + $0x170] sm:$0xff]
    %v739 = vld [vmem:[%s3 + $0x178] sm:$0xff]
    %v740 = vld [vmem:[%s3 + $0x180] sm:$0xff]
    %v741 = vld [vmem:[%s3 + $0x188] sm:$0xff]
    %v742 = vld [vmem:[%s3 + $0x190] sm:$0xff]
    %v743 = vld [vmem:[%s3 + $0x198] sm:$0xff]
    %v744 = vld [vmem:[%s3 + $0x1a0] sm:$0xff]
    %v745 = vld [vmem:[%s3 + $0x1a8] sm:$0xff]
    %v746 = vld [vmem:[%s3 + $0x1b0] sm:$0xff]
    %v747 = vld [vmem:[%s3 + $0x1b8] sm:$0xff]
    %v748 = vld [vmem:[%s3 + $0x1c0] sm:$0xff]
    %v749 = vld [vmem:[%s3 + $0x1c8] sm:$0xff]
    %v750 = vld [vmem:[%s3 + $0x1d0] sm:$0xff]
    %v751 = vld [vmem:[%s3 + $0x1d8] sm:$0xff]
    %v752 = vld [vmem:[%s3 + $0x1e0] sm:$0xff]
    %v753 = vld [vmem:[%s3 + $0x1e8] sm:$0xff]
    %v754 = vld [vmem:[%s3 + $0x1f0] sm:$0xff]
    %v755 = vld [vmem:[%s3 + $0x1f8] sm:$0xff]
    %v756 = vld [vmem:[%s4] sm:$0x1]
    %v758 = vlaneseq
    %v759 = vshrl.u32 %v758, 7
    %v760 = vsub.s32 0, %v759
    %v761 = vrot.slane %v756, %v760
    %763 = vmatprep.subr.mxu0 0.0
    %764 = vmatpush1.msra.mxu0 %v692
    %765 = vmatprep.subr.mxu0 0.0
    %766 = vmatpush1.msra.mxu0 %v693
    %767 = vmatprep.subr.mxu0 0.0
    %768 = vmatpush1.msra.mxu0 %v694
    %769 = vmatprep.subr.mxu0 0.0
    %770 = vmatpush1.msra.mxu0 %v695
    %771 = vmatprep.subr.mxu0 0.0
    %772 = vmatpush1.msra.mxu0 %v696
    %773 = vmatprep.subr.mxu0 0.0
    %774 = vmatpush1.msra.mxu0 %v697
    %775 = vmatprep.subr.mxu0 0.0
    %776 = vmatpush1.msra.mxu0 %v698
    %777 = vmatprep.subr.mxu0 0.0
    %778 = vmatpush1.msra.mxu0 %v699
    %779 = vmatprep.subr.mxu0 0.0
    %780 = vmatpush1.msra.mxu0 %v700
    %781 = vmatprep.subr.mxu0 0.0
    %782 = vmatpush1.msra.mxu0 %v701
    %783 = vmatprep.subr.mxu0 0.0
    %784 = vmatpush1.msra.mxu0 %v702
    %785 = vmatprep.subr.mxu0 0.0
    %786 = vmatpush1.msra.mxu0 %v703
    %787 = vmatprep.subr.mxu0 0.0
    %788 = vmatpush1.msra.mxu0 %v704
    %789 = vmatprep.subr.mxu0 0.0
    %790 = vmatpush1.msra.mxu0 %v705
    %791 = vmatprep.subr.mxu0 0.0
    %792 = vmatpush1.msra.mxu0 %v706
    %793 = vmatprep.subr.mxu0 0.0
    %794 = vmatpush1.msra.mxu0 %v707
    %795 = vmatprep.subr.mxu0 0.0
    %796 = vmatpush1.msra.mxu0 %v708
    %797 = vmatprep.subr.mxu0 0.0
    %798 = vmatpush1.msra.mxu0 %v709
    %799 = vmatprep.subr.mxu0 0.0
    %800 = vmatpush1.msra.mxu0 %v710
    %801 = vmatprep.subr.mxu0 0.0
    %802 = vmatpush1.msra.mxu0 %v711
    %803 = vmatprep.subr.mxu0 0.0
    %804 = vmatpush1.msra.mxu0 %v712
    %805 = vmatprep.subr.mxu0 0.0
    %806 = vmatpush1.msra.mxu0 %v713
    %807 = vmatprep.subr.mxu0 0.0
    %808 = vmatpush1.msra.mxu0 %v714
    %809 = vmatprep.subr.mxu0 0.0
    %810 = vmatpush1.msra.mxu0 %v715
    %811 = vmatprep.subr.mxu0 0.0
    %812 = vmatpush1.msra.mxu0 %v716
    %813 = vmatprep.subr.mxu0 0.0
    %814 = vmatpush1.msra.mxu0 %v717
    %815 = vmatprep.subr.mxu0 0.0
    %816 = vmatpush1.msra.mxu0 %v718
    %817 = vmatprep.subr.mxu0 0.0
    %818 = vmatpush1.msra.mxu0 %v719
    %819 = vmatprep.subr.mxu0 0.0
    %820 = vmatpush1.msra.mxu0 %v720
    %821 = vmatprep.subr.mxu0 0.0
    %822 = vmatpush1.msra.mxu0 %v721
    %823 = vmatprep.subr.mxu0 0.0
    %824 = vmatpush1.msra.mxu0 %v722
    %825 = vmatprep.subr.mxu0 0.0
    %826 = vmatpush1.msra.mxu0 %v723
    %827 = vmatprep.mubr.f32.mxu0 %v686
    %828 = vmatmul.mubr.f32.gmra.mrb[0].mxu0 %v684
    %v829 = vpop.f32.mrb[0].mxu0
    %v830 = vadd.f32 %v761, %v829
    %v831 = vpop.f32.mrb[0].mxu0
    %832 = vdwg.mxu0
    %833 = vmatprep.subr.mxu0 0.0
    %834 = vmatpush1.msra.mxu0 %v724
    %835 = vmatprep.subr.mxu0 0.0
    %836 = vmatpush1.msra.mxu0 %v725
    %837 = vmatprep.subr.mxu0 0.0
    %838 = vmatpush1.msra.mxu0 %v726
    %839 = vmatprep.subr.mxu0 0.0
    %840 = vmatpush1.msra.mxu0 %v727
    %841 = vmatprep.subr.mxu0 0.0
    %842 = vmatpush1.msra.mxu0 %v728
    %843 = vmatprep.subr.mxu0 0.0
    %844 = vmatpush1.msra.mxu0 %v729
    %845 = vmatprep.subr.mxu0 0.0
    %846 = vmatpush1.msra.mxu0 %v730
    %847 = vmatprep.subr.mxu0 0.0
    %848 = vmatpush1.msra.mxu0 %v731
    %849 = vmatprep.subr.mxu0 0.0
    %850 = vmatpush1.msra.mxu0 %v732
    %851 = vmatprep.subr.mxu0 0.0
    %852 = vmatpush1.msra.mxu0 %v733
    %853 = vmatprep.subr.mxu0 0.0
    %854 = vmatpush1.msra.mxu0 %v734
    %855 = vmatprep.subr.mxu0 0.0
    %856 = vmatpush1.msra.mxu0 %v735
    %857 = vmatprep.subr.mxu0 0.0
    %858 = vmatpush1.msra.mxu0 %v736
    %859 = vmatprep.subr.mxu0 0.0
    %860 = vmatpush1.msra.mxu0 %v737
    %861 = vmatprep.subr.mxu0 0.0
    %862 = vmatpush1.msra.mxu0 %v738
    %863 = vmatprep.subr.mxu0 0.0
    %864 = vmatpush1.msra.mxu0 %v739
    %865 = vmatprep.subr.mxu0 0.0
    %866 = vmatpush1.msra.mxu0 %v740
    %867 = vmatprep.subr.mxu0 0.0
    %868 = vmatpush1.msra.mxu0 %v741
    %869 = vmatprep.subr.mxu0 0.0
    %870 = vmatpush1.msra.mxu0 %v742
    %871 = vmatprep.subr.mxu0 0.0
    %872 = vmatpush1.msra.mxu0 %v743
    %873 = vmatprep.subr.mxu0 0.0
    %874 = vmatpush1.msra.mxu0 %v744
    %875 = vmatprep.subr.mxu0 0.0
    %876 = vmatpush1.msra.mxu0 %v745
    %877 = vmatprep.subr.mxu0 0.0
    %878 = vmatpush1.msra.mxu0 %v746
    %879 = vmatprep.subr.mxu0 0.0
    %880 = vmatpush1.msra.mxu0 %v747
    %881 = vmatprep.subr.mxu0 0.0
    %882 = vmatpush1.msra.mxu0 %v748
    %883 = vmatprep.subr.mxu0 0.0
    %884 = vmatpush1.msra.mxu0 %v749
    %885 = vmatprep.subr.mxu0 0.0
    %886 = vmatpush1.msra.mxu0 %v750
    %887 = vmatprep.subr.mxu0 0.0
    %888 = vmatpush1.msra.mxu0 %v751
    %889 = vmatprep.subr.mxu0 0.0
    %890 = vmatpush1.msra.mxu0 %v752
    %891 = vmatprep.subr.mxu0 0.0
    %892 = vmatpush1.msra.mxu0 %v753
    %893 = vmatprep.subr.mxu0 0.0
    %894 = vmatpush1.msra.mxu0 %v754
    %895 = vmatprep.subr.mxu0 0.0
    %896 = vmatpush1.msra.mxu0 %v755
    %897 = vmatprep.mubr.f32.mxu0 %v690
    %898 = vmatmul.mubr.f32.gmra.mrb[0].mxu0 %v688
    %v899 = vpop.f32.mrb[0].mxu0
    %v900 = vadd.f32 %v830, %v899
    %v901 = vpop.f32.mrb[0].mxu0
    %902 = vdwg.mxu0
    %vm903 = vcmp.ge.f32.partialorder %v900, 0.0
    %v904 = vmul.f32 %v900, 0.01
    %v905 = vsel %vm903, %v900, %v904
    %v906 = vld [vmem:[%s5] sm:$0xff]
    %v907 = vld [vmem:[%s5 + $0x8] sm:$0xff]
    %v908 = vld [vmem:[%s5 + $0x10] sm:$0xff]
    %v909 = vld [vmem:[%s5 + $0x18] sm:$0xff]
    %v910 = vld [vmem:[%s5 + $0x20] sm:$0xff]
    %v911 = vld [vmem:[%s5 + $0x28] sm:$0xff]
    %v912 = vld [vmem:[%s5 + $0x30] sm:$0xff]
    %v913 = vld [vmem:[%s5 + $0x38] sm:$0xff]
    %v914 = vld [vmem:[%s5 + $0x40] sm:$0xff]
    %v915 = vld [vmem:[%s5 + $0x48] sm:$0xff]
    %v916 = vld [vmem:[%s5 + $0x50] sm:$0xff]
    %v917 = vld [vmem:[%s5 + $0x58] sm:$0xff]
    %v918 = vld [vmem:[%s5 + $0x60] sm:$0xff]
    %v919 = vld [vmem:[%s5 + $0x68] sm:$0xff]
    %v920 = vld [vmem:[%s5 + $0x70] sm:$0xff]
    %v921 = vld [vmem:[%s5 + $0x78] sm:$0xff]
    %v922 = vld [vmem:[%s6] sm:$0x1]
    %v924 = vlaneseq
    %v925 = vshrl.u32 %v924, 7
    %v926 = vsub.s32 0, %v925
    %v927 = vrot.slane %v922, %v926
    %929 = vmatprep.subr.mxu0 0.0
    %930 = vmatpush1.msra.mxu0 %v906
    %931 = vmatprep.subr.mxu0 0.0
    %932 = vmatpush1.msra.mxu0 %v907
    %933 = vmatprep.subr.mxu0 0.0
    %934 = vmatpush1.msra.mxu0 %v908
    %935 = vmatprep.subr.mxu0 0.0
    %936 = vmatpush1.msra.mxu0 %v909
    %937 = vmatprep.subr.mxu0 0.0
    %938 = vmatpush1.msra.mxu0 %v910
    %939 = vmatprep.subr.mxu0 0.0
    %940 = vmatpush1.msra.mxu0 %v911
    %941 = vmatprep.subr.mxu0 0.0
    %942 = vmatpush1.msra.mxu0 %v912
    %943 = vmatprep.subr.mxu0 0.0
    %944 = vmatpush1.msra.mxu0 %v913
    %945 = vmatprep.subr.mxu0 0.0
    %946 = vmatpush1.msra.mxu0 %v914
    %947 = vmatprep.subr.mxu0 0.0
    %948 = vmatpush1.msra.mxu0 %v915
    %949 = vmatprep.subr.mxu0 0.0
    %950 = vmatpush1.msra.mxu0 %v916
    %951 = vmatprep.subr.mxu0 0.0
    %952 = vmatpush1.msra.mxu0 %v917
    %953 = vmatprep.subr.mxu0 0.0
    %954 = vmatpush1.msra.mxu0 %v918
    %955 = vmatprep.subr.mxu0 0.0
    %956 = vmatpush1.msra.mxu0 %v919
    %957 = vmatprep.subr.mxu0 0.0
    %958 = vmatpush1.msra.mxu0 %v920
    %959 = vmatprep.subr.mxu0 0.0
    %960 = vmatpush1.msra.mxu0 %v921
    %961 = vmatprep.subr.mxu0 0.0
    %962 = vmatpush1.msra.mxu0 0.0
    %963 = vmatprep.subr.mxu0 0.0
    %964 = vmatpush1.msra.mxu0 0.0
    %965 = vmatprep.subr.mxu0 0.0
    %966 = vmatpush1.msra.mxu0 0.0
    %967 = vmatprep.subr.mxu0 0.0
    %968 = vmatpush1.msra.mxu0 0.0
    %969 = vmatprep.subr.mxu0 0.0
    %970 = vmatpush1.msra.mxu0 0.0
    %971 = vmatprep.subr.mxu0 0.0
    %972 = vmatpush1.msra.mxu0 0.0
    %973 = vmatprep.subr.mxu0 0.0
    %974 = vmatpush1.msra.mxu0 0.0
    %975 = vmatprep.subr.mxu0 0.0
    %976 = vmatpush1.msra.mxu0 0.0
    %977 = vmatprep.subr.mxu0 0.0
    %978 = vmatpush1.msra.mxu0 0.0
    %979 = vmatprep.subr.mxu0 0.0
    %980 = vmatpush1.msra.mxu0 0.0
    %981 = vmatprep.subr.mxu0 0.0
    %982 = vmatpush1.msra.mxu0 0.0
    %983 = vmatprep.subr.mxu0 0.0
    %984 = vmatpush1.msra.mxu0 0.0
    %985 = vmatprep.subr.mxu0 0.0
    %986 = vmatpush1.msra.mxu0 0.0
    %987 = vmatprep.subr.mxu0 0.0
    %988 = vmatpush1.msra.mxu0 0.0
    %989 = vmatprep.subr.mxu0 0.0
    %990 = vmatpush1.msra.mxu0 0.0
    %991 = vmatprep.subr.mxu0 0.0
    %992 = vmatpush1.msra.mxu0 0.0
    %993 = vmatprep.mubr.f32.mxu0 0.0
    %994 = vmatmul.mubr.f32.gmra.mrb[0].mxu0 %v905
    %v995 = vpop.f32.mrb[0].mxu0
    %v996 = vadd.f32 %v927, %v995
    %v997 = vpop.f32.mrb[0].mxu0
    %998 = vdwg.mxu0
    %999 = vst [vmem:[#allocation2] sm:$0x3] %v996
    // Predicated region
    $region30: #{_lambda_.5} parent=1 // pred_check
      _
    $region31: #{_lambda_.5} parent=1 // pred_check_branch
      %1001 = sbr.rel (0) target = $region33
    $region32: #{_lambda_.5} parent=1 // pred_region
      %s1003 = ssub.s32 32, 32
      %1004 = vsyncadd [#allocation3], %s1003
      %s1006 = sshll.u32 [#allocation2], 4
      %s1007 = int_to_ptr.vmem [resolvable:$true] %s1006
      %1009 = dma.vmem_to_hbm [thread:$0]  %s1007, 32, %s7, [#allocation3]
    $region33: #{_lambda_.5} parent=1 // pred_fallthru
      _
    // Predicated region
    $region34: #{_lambda_.5} parent=1 // pred_check
      _
    $region35: #{_lambda_.5} parent=1 // pred_check_branch
      %1011 = sbr.rel (0) target = $region37
    $region36: #{_lambda_.5} parent=1 // pred_region
      %1012 = dma.done [#allocation3], 32
    $region37: #{_lambda_.5} parent=1 // pred_fallthru
      _
    %1013 = vsyncpa [#allocation3], 1

</llo_original>
